<compile_context>
chip_gen: v7x
topology: tpu7x:2x2x1
jax: 0.10.0
libtpu: 0.0.40
codegen_flags: <defaults>
</compile_context>

<pallas_src>
import jax
import jax.numpy as jnp
from jax.experimental import pallas as pl
from jax.experimental.pallas import tpu as pltpu

EPS = 1e-5     # BatchNorm2d default eps
GUARD = 8      # sublane-aligned row guard around the staged activations


def _conv_block_kernel(xg_ref, mask_ref, m1_ref, m2_ref, fold_ref, gamma_ref, beta_ref,
                       out_ref, hg_ref):
    R, L = out_ref.shape                 # R = N*Hp padded image rows, L = W*Cout lanes
    mask = mask_ref[...]                 # (R, 1): 1.0 on real image rows, 0.0 on padding rows
    gamma = gamma_ref[...]               # (1, L): per-channel gamma tiled over width
    beta = beta_ref[...]                 # (1, L)
    fold = fold_ref[...]                 # (L, L): folds (width, chan) lanes -> chan, pre-scaled by 1/n

    def stage(buf_ref, value):
        # Write `value` (R rows) at row GUARD of buf_ref, zeroing ONLY the guard bands.
        # All stores start on 8-row boundaries; the interior store overwrites any overlap.
        total, lanes = buf_ref.shape
        bot = (GUARD + R) // 8 * 8
        buf_ref[pl.ds(0, GUARD), :] = jnp.zeros((GUARD, lanes), jnp.float32)
        buf_ref[pl.ds(bot, total - bot), :] = jnp.zeros((total - bot, lanes), jnp.float32)
        buf_ref[pl.ds(GUARD, R), :] = value

    def conv3x3(src_ref, m_ref):
        # 3x3 "same" conv = three row-shifted matmuls with band weight matrices.
        # bf16 MXU operands (single pass), f32 accumulation.
        acc = jnp.zeros((R, L), jnp.float32)
        for kh in range(3):
            a = src_ref[pl.ds(GUARD - 1 + kh, R), :].astype(jnp.bfloat16)
            acc = acc + jnp.dot(a, m_ref[kh], preferred_element_type=jnp.float32)
        return acc

    def bn_relu(acc, mask_output):
        # Training-mode BatchNorm2d (biased batch stats over the N*H*W real pixels),
        # single-pass sum / sum-of-squares, folded to per-channel values, then applied
        # as a fused per-lane scale/shift followed by ReLU.  When mask_output is set,
        # padding rows are re-zeroed so the next conv sees true zero padding.
        acc = acc * mask
        mean = jnp.dot(jnp.sum(acc, axis=0, keepdims=True), fold,
                       preferred_element_type=jnp.float32,
                       precision=jax.lax.Precision.HIGHEST)
        msq = jnp.dot(jnp.sum(acc * acc, axis=0, keepdims=True), fold,
                      preferred_element_type=jnp.float32,
                      precision=jax.lax.Precision.HIGHEST)
        var = msq - mean * mean
        scale = gamma * jax.lax.rsqrt(var + EPS)
        shift = beta - mean * scale
        y = jnp.maximum(acc * scale + shift, 0.0)
        return y * mask if mask_output else y

    # conv1 input arrives pre-guarded from the wrapper (zero rows above/below).
    h = bn_relu(conv3x3(xg_ref, m1_ref), mask_output=True)     # conv1 -> BN -> ReLU
    stage(hg_ref, h)                                            # conv2 input, row-guarded
    out_ref[...] = bn_relu(conv3x3(hg_ref, m2_ref), mask_output=False)  # conv2 -> BN -> ReLU


def _band_matrices(w, W, in_is_padded):
    """Block-Toeplitz matrices M[kh] (3, in_width*Cin, W*Cout) so that a 3x3 'same' conv
    equals sum_kh shift_rows(X, kh-1) @ M[kh] over the (rows, width*channels) layout."""
    Cout, Cin = w.shape[0], w.shape[1]
    in_width = W + 2 if in_is_padded else W
    wt = jnp.transpose(w, (2, 3, 1, 0))                          # wt[kh, kw, ci, co]
    if in_is_padded:
        kw = jnp.arange(in_width)[:, None] - jnp.arange(W)[None, :]
    else:  # unpadded-width input lanes: width-edge taps simply drop out (they are zeros)
        kw = jnp.arange(in_width)[:, None] + 1 - jnp.arange(W)[None, :]
    valid = (kw >= 0) & (kw <= 2)
    m = wt[:, jnp.clip(kw, 0, 2)] * valid[None, :, :, None, None]  # (3, in_w, W, Cin, Cout)
    m = jnp.transpose(m, (0, 1, 3, 2, 4))                          # (3, in_w, Cin, W, Cout)
    return m.reshape(3, in_width * Cin, W * Cout)


def _vmem_bytes(rows, lanes, itemsize):
    """Rough VMEM footprint of a 2-D operand after (8, 128) tile padding."""
    return ((rows + 7) // 8 * 8) * ((lanes + 127) // 128 * 128) * itemsize


def conv_block_forward(x_nchw, params):
    """Pallas ConvBlock forward. x_nchw: (N, Cin, H, W) float32 -> (N, Cout, H, W)."""
    w1, b1, w2, b2, gamma, beta = params
    del b1, b2  # conv biases cancel exactly under training-mode BatchNorm (mean subtraction)
    N, Cin, H, W = x_nchw.shape
    Cout = w1.shape[0]
    Hp, Wp = H + 2, W + 2
    R = N * Hp                       # padded image rows
    Rg = R + 2 * GUARD               # row-guarded buffers (pre-guarded input / staged interm.)
    L = W * Cout                     # lane width of intermediates / output

    # ---- layout glue: NCHW -> zero-padded row-major (R, Wp*Cin), then pre-guard rows ----
    x_rows = jnp.pad(jnp.transpose(x_nchw, (0, 2, 3, 1)),
                     ((0, 0), (1, 1), (1, 1), (0, 0))).reshape(R, Wp * Cin)
    x_rows = jnp.pad(x_rows, ((GUARD, GUARD), (0, 0)))           # (Rg, Wp*Cin), guard rows = 0

    # ---- conv weights -> band (block-Toeplitz) matrices, bf16 MXU operands ----
    m1 = _band_matrices(w1, W, in_is_padded=True).astype(jnp.bfloat16)    # (3, Wp*Cin, L)
    m2 = _band_matrices(w2, W, in_is_padded=False).astype(jnp.bfloat16)   # (3, L, L)

    # ---- BatchNorm helpers over the (width, channel) lane layout ----
    co = jnp.tile(jnp.arange(Cout), W)                                    # lane -> channel id
    fold = (co[:, None] == co[None, :]).astype(jnp.float32) / float(N * H * W)  # (L, L), holds 1/n
    gamma_t = jnp.tile(gamma, W).reshape(1, L)
    beta_t = jnp.tile(beta, W).reshape(1, L)

    # rows that are real image rows (hp in [1, H]); padding rows are masked out of stats
    hp = jnp.arange(R) % Hp
    rowmask = ((hp >= 1) & (hp <= H)).astype(jnp.float32).reshape(R, 1)

    # ---- whole problem stays VMEM-resident: check the padded footprint ----
    est = (_vmem_bytes(Rg, Wp * Cin, 4) + _vmem_bytes(R, 1, 4)
           + _vmem_bytes(3 * Wp * Cin, L, 2) + _vmem_bytes(3 * L, L, 2)
           + _vmem_bytes(L, L, 4) + 2 * _vmem_bytes(1, L, 4)
           + _vmem_bytes(R, L, 4)                                    # output
           + _vmem_bytes(Rg, L, 4))                                  # scratch (staged interm.)
    vmem_limit = 48 * 1024 * 1024   # conservative even for v7x's 64 MiB VMEM
    assert 2 * est < vmem_limit, f"feature map too large for VMEM-resident kernel ({est} B)"
    # TODO(synk): for feature maps that exceed VMEM, tile the row dimension with a grid
    # (1-row halo) and split each BatchNorm into accumulate-stats / normalize passes;
    # mark the row axis "parallel" so v7x shards it across both TensorCores.

    vmem = lambda: pl.BlockSpec(memory_space=pltpu.MemorySpace.VMEM)

    y_rows = pl.pallas_call(
        _conv_block_kernel,
        out_shape=jax.ShapeDtypeStruct((R, L), jnp.float32),
        in_specs=[vmem() for _ in range(7)],
        out_specs=vmem(),
        scratch_shapes=[pltpu.VMEM((Rg, L), jnp.float32)],
        compiler_params=pltpu.CompilerParams(vmem_limit_bytes=vmem_limit),
    )(x_rows, rowmask, m1, m2, fold, gamma_t, beta_t)

    # row layout -> NCHW (drop the padding rows)
    y = y_rows.reshape(N, Hp, W, Cout)[:, 1:H + 1]
    return jnp.transpose(y, (0, 3, 1, 2))


def conv_block_reference(x, params):
    """Pure-JAX reference mirroring the PyTorch forward (training-mode BatchNorm, f32)."""
    w1, b1, w2, b2, gamma, beta = params

    def conv(x, w, b):
        y = jax.lax.conv_general_dilated(
            x, w, window_strides=(1, 1), padding='SAME',
            dimension_numbers=('NCHW', 'OIHW', 'NCHW'),
            precision=jax.lax.Precision.HIGHEST)
        return y + b[None, :, None, None]

    def bn(x):
        mean = jnp.mean(x, axis=(0, 2, 3), keepdims=True)
        var = jnp.mean((x - mean) ** 2, axis=(0, 2, 3), keepdims=True)
        return ((x - mean) * jax.lax.rsqrt(var + EPS)
                * gamma[None, :, None, None] + beta[None, :, None, None])

    h = jnp.maximum(bn(conv(x, w1, b1)), 0.0)
    return jnp.maximum(bn(conv(h, w2, b2)), 0.0)


if __name__ == "__main__":
    N, Cin, Cout, H, W = 2, 4, 8, 16, 16
    keys = jax.random.split(jax.random.PRNGKey(0), 5)
    x = jax.random.normal(keys[0], (N, Cin, H, W), jnp.float32)
    w1 = jax.random.normal(keys[1], (Cout, Cin, 3, 3), jnp.float32) * 0.2
    b1 = jax.random.normal(keys[2], (Cout,), jnp.float32) * 0.1
    w2 = jax.random.normal(keys[3], (Cout, Cout, 3, 3), jnp.float32) * 0.2
    b2 = jax.random.normal(keys[4], (Cout,), jnp.float32) * 0.1
    gamma = jnp.ones((Cout,), jnp.float32)   # BatchNorm2d affine defaults
    beta = jnp.zeros((Cout,), jnp.float32)
    params = (w1, b1, w2, b2, gamma, beta)

    y = jax.block_until_ready(conv_block_forward(x, params))
    y_ref = jax.block_until_ready(conv_block_reference(x, params))

    assert y.shape == (N, Cout, H, W), y.shape
    max_err = float(jnp.max(jnp.abs(y - y_ref)))
    # Conv matmuls use bf16 operands on the MXU (single pass, f32 accumulation); worst-case
    # |err| vs the f32 reference at these magnitudes is ~1e-2.
    assert max_err < 3e-2, f"max abs err {max_err}"
    print("KERNEL_OK")
</pallas_src>

<mosaic_0001>
module attributes {stable_mosaic.version = 11 : i64} {
  func.func @_conv_block_kernel(%arg0: memref<52x72xf32, #tpu.memory_space<vmem>>, %arg1: memref<36x1xf32, #tpu.memory_space<vmem>>, %arg2: memref<3x72x128xbf16, #tpu.memory_space<vmem>>, %arg3: memref<3x128x128xbf16, #tpu.memory_space<vmem>>, %arg4: memref<128x128xf32, #tpu.memory_space<vmem>>, %arg5: memref<1x128xf32, #tpu.memory_space<vmem>>, %arg6: memref<1x128xf32, #tpu.memory_space<vmem>>, %arg7: memref<36x128xf32, #tpu.memory_space<vmem>>, %arg8: memref<52x128xf32, #tpu.memory_space<vmem>>) attributes {dimension_semantics = [], scalar_prefetch = 0 : i64, scratch_operands = 1 : i64, tpu.core_type = #tpu.core_type<tc>} {
    %c0 = arith.constant 0 : index
    %c0_0 = arith.constant 0 : index
    %0 = vector.load %arg1[%c0, %c0_0] : memref<36x1xf32, #tpu.memory_space<vmem>>, vector<36x1xf32>
    %c0_1 = arith.constant 0 : index
    %c0_2 = arith.constant 0 : index
    %1 = vector.load %arg5[%c0_1, %c0_2] : memref<1x128xf32, #tpu.memory_space<vmem>>, vector<1x128xf32>
    %c0_3 = arith.constant 0 : index
    %c0_4 = arith.constant 0 : index
    %2 = vector.load %arg6[%c0_3, %c0_4] : memref<1x128xf32, #tpu.memory_space<vmem>>, vector<1x128xf32>
    %c0_5 = arith.constant 0 : index
    %c0_6 = arith.constant 0 : index
    %3 = vector.load %arg4[%c0_5, %c0_6] : memref<128x128xf32, #tpu.memory_space<vmem>>, vector<128x128xf32>
    %cst = arith.constant 0.000000e+00 : f32
    %4 = vector.broadcast %cst : f32 to vector<36x128xf32>
    %c7 = arith.constant 7 : index
    %c0_7 = arith.constant 0 : index
    %5 = vector.load %arg0[%c7, %c0_7] : memref<52x72xf32, #tpu.memory_space<vmem>>, vector<36x72xf32>
    %6 = arith.truncf %5 : vector<36x72xf32> to vector<36x72xbf16>
    %c0_8 = arith.constant 0 : index
    %c0_9 = arith.constant 0 : index
    %c0_10 = arith.constant 0 : index
    %7 = vector.load %arg2[%c0_8, %c0_9, %c0_10] : memref<3x72x128xbf16, #tpu.memory_space<vmem>>, vector<1x72x128xbf16>
    %8 = vector.shape_cast %7 : vector<1x72x128xbf16> to vector<72x128xbf16>
    %cst_11 = arith.constant dense<0.000000e+00> : vector<36x128xf32>
    %9 = tpu.matmul %6, %8, %cst_11 {dimension_numbers = #tpu.dot_dimension_numbers<[1], [0], [0], [1], [0, 0, 1, 1], [], []>} : vector<36x72xbf16>, vector<72x128xbf16>, vector<36x128xf32> -> vector<36x128xf32>
    %10 = arith.addf %4, %9 : vector<36x128xf32>
    %c8 = arith.constant 8 : index
    %c0_12 = arith.constant 0 : index
    %11 = vector.load %arg0[%c8, %c0_12] : memref<52x72xf32, #tpu.memory_space<vmem>>, vector<36x72xf32>
    %12 = arith.truncf %11 : vector<36x72xf32> to vector<36x72xbf16>
    %c1 = arith.constant 1 : index
    %c0_13 = arith.constant 0 : index
    %c0_14 = arith.constant 0 : index
    %13 = vector.load %arg2[%c1, %c0_13, %c0_14] : memref<3x72x128xbf16, #tpu.memory_space<vmem>>, vector<1x72x128xbf16>
    %14 = vector.shape_cast %13 : vector<1x72x128xbf16> to vector<72x128xbf16>
    %cst_15 = arith.constant dense<0.000000e+00> : vector<36x128xf32>
    %15 = tpu.matmul %12, %14, %cst_15 {dimension_numbers = #tpu.dot_dimension_numbers<[1], [0], [0], [1], [0, 0, 1, 1], [], []>} : vector<36x72xbf16>, vector<72x128xbf16>, vector<36x128xf32> -> vector<36x128xf32>
    %16 = arith.addf %10, %15 : vector<36x128xf32>
    %c9 = arith.constant 9 : index
    %c0_16 = arith.constant 0 : index
    %17 = vector.load %arg0[%c9, %c0_16] : memref<52x72xf32, #tpu.memory_space<vmem>>, vector<36x72xf32>
    %18 = arith.truncf %17 : vector<36x72xf32> to vector<36x72xbf16>
    %c2 = arith.constant 2 : index
    %c0_17 = arith.constant 0 : index
    %c0_18 = arith.constant 0 : index
    %19 = vector.load %arg2[%c2, %c0_17, %c0_18] : memref<3x72x128xbf16, #tpu.memory_space<vmem>>, vector<1x72x128xbf16>
    %20 = vector.shape_cast %19 : vector<1x72x128xbf16> to vector<72x128xbf16>
    %cst_19 = arith.constant dense<0.000000e+00> : vector<36x128xf32>
    %21 = tpu.matmul %18, %20, %cst_19 {dimension_numbers = #tpu.dot_dimension_numbers<[1], [0], [0], [1], [0, 0, 1, 1], [], []>} : vector<36x72xbf16>, vector<72x128xbf16>, vector<36x128xf32> -> vector<36x128xf32>
    %22 = arith.addf %16, %21 : vector<36x128xf32>
    %23 = vector.broadcast %0 : vector<36x1xf32> to vector<36x128xf32>
    %24 = arith.mulf %22, %23 : vector<36x128xf32>
    %cst_20 = arith.constant dense<0.000000e+00> : vector<128xf32>
    %25 = vector.multi_reduction <add>, %24, %cst_20 [0] : vector<36x128xf32> to vector<128xf32>
    %26 = vector.shape_cast %25 : vector<128xf32> to vector<1x128xf32>
    %cst_21 = arith.constant dense<0.000000e+00> : vector<1x128xf32>
    %27 = tpu.matmul %26, %3, %cst_21 {dimension_numbers = #tpu.dot_dimension_numbers<[1], [0], [0], [1], [0, 0, 1, 1], [], []>, precision = #tpu.contract_precision<fp32>} : vector<1x128xf32>, vector<128x128xf32>, vector<1x128xf32> -> vector<1x128xf32>
    %28 = arith.mulf %24, %24 : vector<36x128xf32>
    %cst_22 = arith.constant dense<0.000000e+00> : vector<128xf32>
    %29 = vector.multi_reduction <add>, %28, %cst_22 [0] : vector<36x128xf32> to vector<128xf32>
    %30 = vector.shape_cast %29 : vector<128xf32> to vector<1x128xf32>
    %cst_23 = arith.constant dense<0.000000e+00> : vector<1x128xf32>
    %31 = tpu.matmul %30, %3, %cst_23 {dimension_numbers = #tpu.dot_dimension_numbers<[1], [0], [0], [1], [0, 0, 1, 1], [], []>, precision = #tpu.contract_precision<fp32>} : vector<1x128xf32>, vector<128x128xf32>, vector<1x128xf32> -> vector<1x128xf32>
    %32 = arith.mulf %27, %27 : vector<1x128xf32>
    %33 = arith.subf %31, %32 : vector<1x128xf32>
    %cst_24 = arith.constant 9.99999974E-6 : f32
    %34 = vector.broadcast %cst_24 : f32 to vector<1x128xf32>
    %35 = arith.addf %33, %34 : vector<1x128xf32>
    %36 = math.rsqrt %35 : vector<1x128xf32>
    %37 = arith.mulf %1, %36 : vector<1x128xf32>
    %38 = arith.mulf %27, %37 : vector<1x128xf32>
    %39 = arith.subf %2, %38 : vector<1x128xf32>
    %40 = vector.broadcast %37 : vector<1x128xf32> to vector<36x128xf32>
    %41 = arith.mulf %24, %40 : vector<36x128xf32>
    %42 = vector.broadcast %39 : vector<1x128xf32> to vector<36x128xf32>
    %43 = arith.addf %41, %42 : vector<36x128xf32>
    %cst_25 = arith.constant 0.000000e+00 : f32
    %44 = vector.broadcast %cst_25 : f32 to vector<36x128xf32>
    %45 = arith.maximumf %43, %44 : vector<36x128xf32>
    %46 = vector.broadcast %0 : vector<36x1xf32> to vector<36x128xf32>
    %47 = arith.mulf %45, %46 : vector<36x128xf32>
    %cst_26 = arith.constant 0.000000e+00 : f32
    %48 = vector.broadcast %cst_26 : f32 to vector<8x128xf32>
    %c0_27 = arith.constant 0 : index
    %c0_28 = arith.constant 0 : index
    %49 = vector.load %arg8[%c0_27, %c0_28] : memref<52x128xf32, #tpu.memory_space<vmem>>, vector<8x128xf32>
    tpu.vector_store %arg8[%c0_27, %c0_28], %48 {strides = array<i32>} : memref<52x128xf32, #tpu.memory_space<vmem>>, vector<8x128xf32>,
    %cst_29 = arith.constant 0.000000e+00 : f32
    %50 = vector.broadcast %cst_29 : f32 to vector<12x128xf32>
    %c40 = arith.constant 40 : index
    %c0_30 = arith.constant 0 : index
    %51 = vector.load %arg8[%c40, %c0_30] : memref<52x128xf32, #tpu.memory_space<vmem>>, vector<12x128xf32>
    tpu.vector_store %arg8[%c40, %c0_30], %50 {strides = array<i32>} : memref<52x128xf32, #tpu.memory_space<vmem>>, vector<12x128xf32>,
    %c8_31 = arith.constant 8 : index
    %c0_32 = arith.constant 0 : index
    %52 = vector.load %arg8[%c8_31, %c0_32] : memref<52x128xf32, #tpu.memory_space<vmem>>, vector<36x128xf32>
    tpu.vector_store %arg8[%c8_31, %c0_32], %47 {strides = array<i32>} : memref<52x128xf32, #tpu.memory_space<vmem>>, vector<36x128xf32>,
    %cst_33 = arith.constant 0.000000e+00 : f32
    %53 = vector.broadcast %cst_33 : f32 to vector<36x128xf32>
    %c7_34 = arith.constant 7 : index
    %c0_35 = arith.constant 0 : index
    %54 = vector.load %arg8[%c7_34, %c0_35] : memref<52x128xf32, #tpu.memory_space<vmem>>, vector<36x128xf32>
    %55 = arith.truncf %54 : vector<36x128xf32> to vector<36x128xbf16>
    %c0_36 = arith.constant 0 : index
    %c0_37 = arith.constant 0 : index
    %c0_38 = arith.constant 0 : index
    %56 = vector.load %arg3[%c0_36, %c0_37, %c0_38] : memref<3x128x128xbf16, #tpu.memory_space<vmem>>, vector<1x128x128xbf16>
    %57 = vector.shape_cast %56 : vector<1x128x128xbf16> to vector<128x128xbf16>
    %cst_39 = arith.constant dense<0.000000e+00> : vector<36x128xf32>
    %58 = tpu.matmul %55, %57, %cst_39 {dimension_numbers = #tpu.dot_dimension_numbers<[1], [0], [0], [1], [0, 0, 1, 1], [], []>} : vector<36x128xbf16>, vector<128x128xbf16>, vector<36x128xf32> -> vector<36x128xf32>
    %59 = arith.addf %53, %58 : vector<36x128xf32>
    %c8_40 = arith.constant 8 : index
    %c0_41 = arith.constant 0 : index
    %60 = vector.load %arg8[%c8_40, %c0_41] : memref<52x128xf32, #tpu.memory_space<vmem>>, vector<36x128xf32>
    %61 = arith.truncf %60 : vector<36x128xf32> to vector<36x128xbf16>
    %c1_42 = arith.constant 1 : index
    %c0_43 = arith.constant 0 : index
    %c0_44 = arith.constant 0 : index
    %62 = vector.load %arg3[%c1_42, %c0_43, %c0_44] : memref<3x128x128xbf16, #tpu.memory_space<vmem>>, vector<1x128x128xbf16>
    %63 = vector.shape_cast %62 : vector<1x128x128xbf16> to vector<128x128xbf16>
    %cst_45 = arith.constant dense<0.000000e+00> : vector<36x128xf32>
    %64 = tpu.matmul %61, %63, %cst_45 {dimension_numbers = #tpu.dot_dimension_numbers<[1], [0], [0], [1], [0, 0, 1, 1], [], []>} : vector<36x128xbf16>, vector<128x128xbf16>, vector<36x128xf32> -> vector<36x128xf32>
    %65 = arith.addf %59, %64 : vector<36x128xf32>
    %c9_46 = arith.constant 9 : index
    %c0_47 = arith.constant 0 : index
    %66 = vector.load %arg8[%c9_46, %c0_47] : memref<52x128xf32, #tpu.memory_space<vmem>>, vector<36x128xf32>
    %67 = arith.truncf %66 : vector<36x128xf32> to vector<36x128xbf16>
    %c2_48 = arith.constant 2 : index
    %c0_49 = arith.constant 0 : index
    %c0_50 = arith.constant 0 : index
    %68 = vector.load %arg3[%c2_48, %c0_49, %c0_50] : memref<3x128x128xbf16, #tpu.memory_space<vmem>>, vector<1x128x128xbf16>
    %69 = vector.shape_cast %68 : vector<1x128x128xbf16> to vector<128x128xbf16>
    %cst_51 = arith.constant dense<0.000000e+00> : vector<36x128xf32>
    %70 = tpu.matmul %67, %69, %cst_51 {dimension_numbers = #tpu.dot_dimension_numbers<[1], [0], [0], [1], [0, 0, 1, 1], [], []>} : vector<36x128xbf16>, vector<128x128xbf16>, vector<36x128xf32> -> vector<36x128xf32>
    %71 = arith.addf %65, %70 : vector<36x128xf32>
    %72 = vector.broadcast %0 : vector<36x1xf32> to vector<36x128xf32>
    %73 = arith.mulf %71, %72 : vector<36x128xf32>
    %cst_52 = arith.constant dense<0.000000e+00> : vector<128xf32>
    %74 = vector.multi_reduction <add>, %73, %cst_52 [0] : vector<36x128xf32> to vector<128xf32>
    %75 = vector.shape_cast %74 : vector<128xf32> to vector<1x128xf32>
    %cst_53 = arith.constant dense<0.000000e+00> : vector<1x128xf32>
    %76 = tpu.matmul %75, %3, %cst_53 {dimension_numbers = #tpu.dot_dimension_numbers<[1], [0], [0], [1], [0, 0, 1, 1], [], []>, precision = #tpu.contract_precision<fp32>} : vector<1x128xf32>, vector<128x128xf32>, vector<1x128xf32> -> vector<1x128xf32>
    %77 = arith.mulf %73, %73 : vector<36x128xf32>
    %cst_54 = arith.constant dense<0.000000e+00> : vector<128xf32>
    %78 = vector.multi_reduction <add>, %77, %cst_54 [0] : vector<36x128xf32> to vector<128xf32>
    %79 = vector.shape_cast %78 : vector<128xf32> to vector<1x128xf32>
    %cst_55 = arith.constant dense<0.000000e+00> : vector<1x128xf32>
    %80 = tpu.matmul %79, %3, %cst_55 {dimension_numbers = #tpu.dot_dimension_numbers<[1], [0], [0], [1], [0, 0, 1, 1], [], []>, precision = #tpu.contract_precision<fp32>} : vector<1x128xf32>, vector<128x128xf32>, vector<1x128xf32> -> vector<1x128xf32>
    %81 = arith.mulf %76, %76 : vector<1x128xf32>
    %82 = arith.subf %80, %81 : vector<1x128xf32>
    %cst_56 = arith.constant 9.99999974E-6 : f32
    %83 = vector.broadcast %cst_56 : f32 to vector<1x128xf32>
    %84 = arith.addf %82, %83 : vector<1x128xf32>
    %85 = math.rsqrt %84 : vector<1x128xf32>
    %86 = arith.mulf %1, %85 : vector<1x128xf32>
    %87 = arith.mulf %76, %86 : vector<1x128xf32>
    %88 = arith.subf %2, %87 : vector<1x128xf32>
    %89 = vector.broadcast %86 : vector<1x128xf32> to vector<36x128xf32>
    %90 = arith.mulf %73, %89 : vector<36x128xf32>
    %91 = vector.broadcast %88 : vector<1x128xf32> to vector<36x128xf32>
    %92 = arith.addf %90, %91 : vector<36x128xf32>
    %cst_57 = arith.constant 0.000000e+00 : f32
    %93 = vector.broadcast %cst_57 : f32 to vector<36x128xf32>
    %94 = arith.maximumf %92, %93 : vector<36x128xf32>
    %c0_58 = arith.constant 0 : index
    %c0_59 = arith.constant 0 : index
    %95 = vector.load %arg7[%c0_58, %c0_59] : memref<36x128xf32, #tpu.memory_space<vmem>>, vector<36x128xf32>
    tpu.vector_store %arg7[%c0_58, %c0_59], %94 {strides = array<i32>} : memref<36x128xf32, #tpu.memory_space<vmem>>, vector<36x128xf32>,
    return
  }
}

</mosaic_0001>

<llo_original>
// kernel: tpu_custom_call.1
$region0: #{tpu_custom_call.1}
  #allocation0 [shape = 'u32[]', space=smem, size = 0x4, offset = 0x4, fixed_abs, tag = 'smem constant byte address 0x4 - core index']
  #allocation1 [shape = 'u32[144,128]{1,0:T(1,128)}', space=vmem, size = 0x12000, scoped, tag = 'internal scratch']
  #allocation2 [shape = 'f32[52,128]{1,0:T(8,128)}', space=vmem, size = 0x7000, scoped, tag = 'scratch operand']
  %s0 = inlined_call_operand.hbm [shape: f32[52,72], index: 0, kind: input, shape index: {}]
  %s1 = inlined_call_operand.vmem [shape: f32[36,1], index: 1, kind: input, shape index: {}]
  %s2 = inlined_call_operand.hbm [shape: bf16[3,72,128], index: 2, kind: input, shape index: {}]
  %s3 = inlined_call_operand.hbm [shape: bf16[3,128,128], index: 3, kind: input, shape index: {}]
  %s4 = inlined_call_operand.hbm [shape: f32[128,128], index: 4, kind: input, shape index: {}]
  %s5 = inlined_call_operand.vmem [shape: f32[1,128], index: 5, kind: input, shape index: {}]
  %s6 = inlined_call_operand.vmem [shape: f32[1,128], index: 6, kind: input, shape index: {}]
  %s7 = inlined_call_operand.hbm [shape: f32[36,128], index: 7, kind: output, shape index: {}]
  %s8 = sld [smem:[#allocation0]]
  $region54: #{tpu_custom_call.1} parent=0
    _
  %s10 = ssub.s32 1, %s8
  %s11 = scalar_select 0, %s10, %s8
  $region1: #{tpu_custom_call.1} parent=0
    #allocation3 [shape = 'u8[28672]{0}', space=vmem, size = 0x7000, scoped, tag = 'input window, operand 0, single buffered']
    #allocation4 [shape = 's32[1]{0}', space=sflag, size = 0x4, scoped, tag = 'scoped memory for tpu_custom_call.1']
    #allocation5 [shape = 's32[1]{0}', space=sflag, size = 0x4, scoped, tag = 'scoped memory for tpu_custom_call.1']
    #allocation6 [shape = 'u8[55296]{0}', space=vmem, size = 0xd800, scoped, tag = 'input window, operand 2, single buffered']
    #allocation7 [shape = 's32[1]{0}', space=sflag, size = 0x4, scoped, tag = 'scoped memory for tpu_custom_call.1']
    #allocation8 [shape = 'u8[98304]{0}', space=vmem, size = 0x18000, scoped, tag = 'input window, operand 3, single buffered']
    #allocation9 [shape = 'u8[65536]{0}', space=vmem, size = 0x10000, scoped, tag = 'input window, operand 4, single buffered']
    #allocation10 [shape = 's32[1]{0}', space=sflag, size = 0x4, scoped, tag = 'scoped memory for tpu_custom_call.1']
    #allocation11 [shape = 'u8[20480]{0}', space=vmem, size = 0x5000, scoped, tag = 'output window, operand 0, single buffered']
    %12 = vsyncpa [#allocation4], 0
    %13 = vsyncpa [#allocation7], 0
    %14 = vsyncpa [#allocation10], 0
    %15 = vsyncpa [#allocation5], 0
    // Predicated region
    $region2: #{tpu_custom_call.1} parent=1 // pred_check
      _
    $region3: #{tpu_custom_call.1} parent=1 // pred_check_branch
      %17 = sbr.rel (0) target = $region5
    $region4: #{tpu_custom_call.1} parent=1 // pred_region
      %s19 = ssub.s32 896, 896
      %20 = vsyncadd [#allocation4], %s19
      %s21 = sshll.u32 [#allocation3], 4
      %s22 = int_to_ptr.vmem [resolvable:$true] %s21
      %27 = dma.hbm_to_vmem [thread:$0]  %s0, 896, %s22, [#allocation4], 128, 128, 8
    $region5: #{tpu_custom_call.1} parent=1 // pred_fallthru
      _
    // Predicated region
    $region6: #{tpu_custom_call.1} parent=1 // pred_check
      _
    $region7: #{tpu_custom_call.1} parent=1 // pred_check_branch
      %29 = sbr.rel (0) target = $region9
    $region8: #{tpu_custom_call.1} parent=1 // pred_region
      _
    $region9: #{tpu_custom_call.1} parent=1 // pred_fallthru
      _
    // Predicated region
    $region10: #{tpu_custom_call.1} parent=1 // pred_check
      _
    $region11: #{tpu_custom_call.1} parent=1 // pred_check_branch
      %31 = sbr.rel (0) target = $region13
    $region12: #{tpu_custom_call.1} parent=1 // pred_region
      %s33 = ssub.s32 1728, 1728
      %34 = vsyncadd [#allocation7], %s33
      %s35 = sshll.u32 [#allocation6], 4
      %s36 = int_to_ptr.vmem [resolvable:$true] %s35
      %41 = dma.hbm_to_vmem [thread:$0]  %s2, 1728, %s36, [#allocation7], 64, 64, 4
    $region13: #{tpu_custom_call.1} parent=1 // pred_fallthru
      _
    // Predicated region
    $region14: #{tpu_custom_call.1} parent=1 // pred_check
      _
    $region15: #{tpu_custom_call.1} parent=1 // pred_check_branch
      %43 = sbr.rel (0) target = $region17
    $region16: #{tpu_custom_call.1} parent=1 // pred_region
      %s45 = ssub.s32 3072, 3072
      %46 = vsyncadd [#allocation7], %s45
      %s47 = sshll.u32 [#allocation8], 4
      %s48 = int_to_ptr.vmem [resolvable:$true] %s47
      %53 = dma.hbm_to_vmem [thread:$0]  %s3, 3072, %s48, [#allocation7], 64, 64, 4
    $region17: #{tpu_custom_call.1} parent=1 // pred_fallthru
      _
    // Predicated region
    $region18: #{tpu_custom_call.1} parent=1 // pred_check
      _
    $region19: #{tpu_custom_call.1} parent=1 // pred_check_branch
      %55 = sbr.rel (0) target = $region21
    $region20: #{tpu_custom_call.1} parent=1 // pred_region
      %s57 = ssub.s32 2048, 2048
      %58 = vsyncadd [#allocation10], %s57
      %s59 = sshll.u32 [#allocation9], 4
      %s60 = int_to_ptr.vmem [resolvable:$true] %s59
      %65 = dma.hbm_to_vmem [thread:$0]  %s4, 2048, %s60, [#allocation10], 128, 128, 8
    $region21: #{tpu_custom_call.1} parent=1 // pred_fallthru
      _
    // Predicated region
    $region22: #{tpu_custom_call.1} parent=1 // pred_check
      _
    $region23: #{tpu_custom_call.1} parent=1 // pred_check_branch
      %67 = sbr.rel (0) target = $region25
    $region24: #{tpu_custom_call.1} parent=1 // pred_region
      _
    $region25: #{tpu_custom_call.1} parent=1 // pred_fallthru
      _
    // Predicated region
    $region26: #{tpu_custom_call.1} parent=1 // pred_check
      _
    $region27: #{tpu_custom_call.1} parent=1 // pred_check_branch
      %69 = sbr.rel (0) target = $region29
    $region28: #{tpu_custom_call.1} parent=1 // pred_region
      _
    $region29: #{tpu_custom_call.1} parent=1 // pred_fallthru
      _
    // Predicated region
    $region30: #{tpu_custom_call.1} parent=1 // pred_check
      _
    $region31: #{tpu_custom_call.1} parent=1 // pred_check_branch
      %71 = sbr.rel (0) target = $region33
    $region32: #{tpu_custom_call.1} parent=1 // pred_region
      %72 = dma.done [#allocation4], 896
    $region33: #{tpu_custom_call.1} parent=1 // pred_fallthru
      _
    // Predicated region
    $region34: #{tpu_custom_call.1} parent=1 // pred_check
      _
    $region35: #{tpu_custom_call.1} parent=1 // pred_check_branch
      %74 = sbr.rel (0) target = $region37
    $region36: #{tpu_custom_call.1} parent=1 // pred_region
      %75 = dma.done [#allocation7], 1728
    $region37: #{tpu_custom_call.1} parent=1 // pred_fallthru
      _
    // Predicated region
    $region38: #{tpu_custom_call.1} parent=1 // pred_check
      _
    $region39: #{tpu_custom_call.1} parent=1 // pred_check_branch
      %77 = sbr.rel (0) target = $region41
    $region40: #{tpu_custom_call.1} parent=1 // pred_region
      %78 = dma.done [#allocation7], 3072
    $region41: #{tpu_custom_call.1} parent=1 // pred_fallthru
      _
    // Predicated region
    $region42: #{tpu_custom_call.1} parent=1 // pred_check
      _
    $region43: #{tpu_custom_call.1} parent=1 // pred_check_branch
      %80 = sbr.rel (0) target = $region45
    $region44: #{tpu_custom_call.1} parent=1 // pred_region
      %81 = dma.done [#allocation10], 2048
    $region45: #{tpu_custom_call.1} parent=1 // pred_fallthru
      _
    %v83 = vld [vmem:[%s1] sm:$0xff]
    %v84 = vld [vmem:[%s1 + $0x8] sm:$0xff]
    %v85 = vld [vmem:[%s1 + $0x10] sm:$0xff]
    %v86 = vld [vmem:[%s1 + $0x18] sm:$0xff]
    %v87 = vld [vmem:[%s1 + $0x20] sm:$0xf]
    %v88 = vld [vmem:[%s5] sm:$0x1]
    %v89 = vld [vmem:[%s6] sm:$0x1]
    %v90 = vld [vmem:[#allocation9] sm:$0xff]
    %v91 = vld [vmem:[#allocation9 + $0x8] sm:$0xff]
    %v92 = vld [vmem:[#allocation9 + $0x10] sm:$0xff]
    %v93 = vld [vmem:[#allocation9 + $0x18] sm:$0xff]
    %v94 = vld [vmem:[#allocation9 + $0x20] sm:$0xff]
    %v95 = vld [vmem:[#allocation9 + $0x28] sm:$0xff]
    %v96 = vld [vmem:[#allocation9 + $0x30] sm:$0xff]
    %v97 = vld [vmem:[#allocation9 + $0x38] sm:$0xff]
    %v98 = vld [vmem:[#allocation9 + $0x40] sm:$0xff]
    %v99 = vld [vmem:[#allocation9 + $0x48] sm:$0xff]
    %v100 = vld [vmem:[#allocation9 + $0x50] sm:$0xff]
    %v101 = vld [vmem:[#allocation9 + $0x58] sm:$0xff]
    %v102 = vld [vmem:[#allocation9 + $0x60] sm:$0xff]
    %v103 = vld [vmem:[#allocation9 + $0x68] sm:$0xff]
    %v104 = vld [vmem:[#allocation9 + $0x70] sm:$0xff]
    %v105 = vld [vmem:[#allocation9 + $0x78] sm:$0xff]
    %v106 = vld [vmem:[#allocation3 + $0x7] sm:$0xff]
    %v107 = vld [vmem:[#allocation3 + $0xf] sm:$0xff]
    %v108 = vld [vmem:[#allocation3 + $0x17] sm:$0xff]
    %v109 = vld [vmem:[#allocation3 + $0x1f] sm:$0xff]
    %v110 = vld [vmem:[#allocation3 + $0x27] sm:$0xf]
    %v111 = vpack.c.bf16 %v107, %v106
    %v112 = vpack.c.bf16 %v109, %v108
    %v113 = vpack.c.bf16 %v110, %v110
    %v114 = vld [vmem:[#allocation6] sm:$0xf]
    %v115 = vld [vmem:[#allocation6 + $0x4] sm:$0xf]
    %v116 = vld [vmem:[#allocation6 + $0x8] sm:$0xf]
    %v117 = vld [vmem:[#allocation6 + $0xc] sm:$0xf]
    %v118 = vld [vmem:[#allocation6 + $0x10] sm:$0xf]
    %v119 = vld [vmem:[#allocation6 + $0x14] sm:$0xf]
    %v120 = vld [vmem:[#allocation6 + $0x18] sm:$0xf]
    %v121 = vld [vmem:[#allocation6 + $0x1c] sm:$0xf]
    %v122 = vld [vmem:[#allocation6 + $0x20] sm:$0xf]
    %v123 = vld [vmem:[#allocation3 + $0x8] sm:$0xff]
    %v124 = vld [vmem:[#allocation3 + $0x10] sm:$0xff]
    %v125 = vld [vmem:[#allocation3 + $0x18] sm:$0xff]
    %v126 = vld [vmem:[#allocation3 + $0x20] sm:$0xff]
    %v127 = vld [vmem:[#allocation3 + $0x28] sm:$0xf]
    %v128 = vpack.c.bf16 %v124, %v123
    %v129 = vpack.c.bf16 %v126, %v125
    %v130 = vpack.c.bf16 %v127, %v127
    %s131 = scalar_lea.vmem [#allocation6], 36
    %v132 = vld [vmem:[%s131] sm:$0xf]
    %v133 = vld [vmem:[%s131 + $0x4] sm:$0xf]
    %v134 = vld [vmem:[%s131 + $0x8] sm:$0xf]
    %v135 = vld [vmem:[%s131 + $0xc] sm:$0xf]
    %v136 = vld [vmem:[%s131 + $0x10] sm:$0xf]
    %v137 = vld [vmem:[%s131 + $0x14] sm:$0xf]
    %v138 = vld [vmem:[%s131 + $0x18] sm:$0xf]
    %v139 = vld [vmem:[%s131 + $0x1c] sm:$0xf]
    %v140 = vld [vmem:[%s131 + $0x20] sm:$0xf]
    %v150 = vunpack.c.l.b16 %v132
    %v151 = vunpack.c.l.b16 %v133
    %v152 = vunpack.c.l.b16 %v134
    %v153 = vunpack.c.l.b16 %v135
    %v154 = vunpack.c.l.b16 %v136
    %v155 = vunpack.c.l.b16 %v137
    %v156 = vunpack.c.l.b16 %v138
    %v157 = vunpack.c.l.b16 %v139
    %v158 = vunpack.c.l.b16 %v140
    %v159 = vpack.c.b16 %v151, %v150
    %v160 = vpack.c.b16 %v153, %v152
    %v161 = vpack.c.b16 %v155, %v154
    %v162 = vpack.c.b16 %v157, %v156
    %v163 = vpack.c.b16 %v158, %v158
    %vm168 = vcmask 588800
    %v170 = vsel %vm168, %v128, 0
    %v173 = vsel %vm168, %v129, 0
    %v176 = vsel %vm168, %v130, 0
    %vm178 = vcmask 1043456
    %v180 = vsel %vm178, %v163, 0
    %182 = vmatprep.subr.bf16.mxu0 0
    %183 = vmatpush1.bf16.msra.mxu0 %v159
    %184 = vmatprep.subr.bf16.mxu0 0
    %185 = vmatpush1.bf16.msra.mxu0 %v160
    %186 = vmatprep.subr.bf16.mxu0 0
    %187 = vmatpush1.bf16.msra.mxu0 %v161
    %188 = vmatprep.subr.bf16.mxu0 0
    %189 = vmatpush1.bf16.msra.mxu0 %v162
    %190 = vmatprep.subr.bf16.mxu0 0
    %191 = vmatpush1.bf16.msra.mxu0 %v180
    %192 = vmatprep.subr.bf16.mxu0 0
    %193 = vmatpush1.bf16.msra.mxu0 0
    %194 = vmatprep.subr.bf16.mxu0 0
    %195 = vmatpush1.bf16.msra.mxu0 0
    %196 = vmatprep.subr.bf16.mxu0 0
    %197 = vmatpush1.bf16.msra.mxu0 0
    %198 = vmatprep.subr.bf16.mxu0 0
    %199 = vmatpush1.bf16.msra.mxu0 0
    %200 = vmatprep.subr.bf16.mxu0 0
    %201 = vmatpush1.bf16.msra.mxu0 0
    %202 = vmatprep.subr.bf16.mxu0 0
    %203 = vmatpush1.bf16.msra.mxu0 0
    %204 = vmatprep.subr.bf16.mxu0 0
    %205 = vmatpush1.bf16.msra.mxu0 0
    %206 = vmatprep.subr.bf16.mxu0 0
    %207 = vmatpush1.bf16.msra.mxu0 0
    %208 = vmatprep.subr.bf16.mxu0 0
    %209 = vmatpush1.bf16.msra.mxu0 0
    %210 = vmatprep.subr.bf16.mxu0 0
    %211 = vmatpush1.bf16.msra.mxu0 0
    %212 = vmatprep.subr.bf16.mxu0 0
    %213 = vmatpush1.bf16.msra.mxu0 0
    %214 = vmatprep.mubr.bf16.mxu0 0
    %215 = vmatmul.mubr.bf16.gmra.mrb[0].mxu0 %v170
    %v216 = vpop.f32.mrb[0].mxu0
    %v217 = vadd.f32 0.0, %v216
    %v218 = vpop.f32.mrb[0].mxu0
    %v219 = vpop.f32.mrb[0].mxu0
    %v220 = vadd.f32 0.0, %v219
    %v221 = vpop.f32.mrb[0].mxu0
    %222 = vmatprep.mubr.bf16.mxu0 0
    %223 = vmatmul.mubr.bf16.gmra.mrb[0].mxu0 %v173
    %v224 = vpop.f32.mrb[0].mxu0
    %v225 = vadd.f32 0.0, %v224
    %v226 = vpop.f32.mrb[0].mxu0
    %v227 = vpop.f32.mrb[0].mxu0
    %v228 = vadd.f32 0.0, %v227
    %v229 = vpop.f32.mrb[0].mxu0
    %230 = vmatprep.mubr.bf16.mxu0 0
    %231 = vmatmul.mubr.bf16.gmra.mrb[0].mxu0 %v176
    %v232 = vpop.f32.mrb[0].mxu0
    %v233 = vadd.f32 0.0, %v232
    %v234 = vpop.f32.mrb[0].mxu0
    %v235 = vpop.f32.mrb[0].mxu0
    %v236 = vpop.f32.mrb[0].mxu0
    %237 = vdwg.mxu0
    %v247 = vunpack.c.l.b16 %v114
    %v248 = vunpack.c.l.b16 %v115
    %v249 = vunpack.c.l.b16 %v116
    %v250 = vunpack.c.l.b16 %v117
    %v251 = vunpack.c.l.b16 %v118
    %v252 = vunpack.c.l.b16 %v119
    %v253 = vunpack.c.l.b16 %v120
    %v254 = vunpack.c.l.b16 %v121
    %v255 = vunpack.c.l.b16 %v122
    %v256 = vpack.c.b16 %v248, %v247
    %v257 = vpack.c.b16 %v250, %v249
    %v258 = vpack.c.b16 %v252, %v251
    %v259 = vpack.c.b16 %v254, %v253
    %v260 = vpack.c.b16 %v255, %v255
    %v266 = vsel %vm168, %v111, 0
    %v269 = vsel %vm168, %v112, 0
    %v272 = vsel %vm168, %v113, 0
    %v275 = vsel %vm178, %v260, 0
    %277 = vmatprep.subr.bf16.mxu0 0
    %278 = vmatpush1.bf16.msra.mxu0 %v256
    %279 = vmatprep.subr.bf16.mxu0 0
    %280 = vmatpush1.bf16.msra.mxu0 %v257
    %281 = vmatprep.subr.bf16.mxu0 0
    %282 = vmatpush1.bf16.msra.mxu0 %v258
    %283 = vmatprep.subr.bf16.mxu0 0
    %284 = vmatpush1.bf16.msra.mxu0 %v259
    %285 = vmatprep.subr.bf16.mxu0 0
    %286 = vmatpush1.bf16.msra.mxu0 %v275
    %287 = vmatprep.subr.bf16.mxu0 0
    %288 = vmatpush1.bf16.msra.mxu0 0
    %289 = vmatprep.subr.bf16.mxu0 0
    %290 = vmatpush1.bf16.msra.mxu0 0
    %291 = vmatprep.subr.bf16.mxu0 0
    %292 = vmatpush1.bf16.msra.mxu0 0
    %293 = vmatprep.subr.bf16.mxu0 0
    %294 = vmatpush1.bf16.msra.mxu0 0
    %295 = vmatprep.subr.bf16.mxu0 0
    %296 = vmatpush1.bf16.msra.mxu0 0
    %297 = vmatprep.subr.bf16.mxu0 0
    %298 = vmatpush1.bf16.msra.mxu0 0
    %299 = vmatprep.subr.bf16.mxu0 0
    %300 = vmatpush1.bf16.msra.mxu0 0
    %301 = vmatprep.subr.bf16.mxu0 0
    %302 = vmatpush1.bf16.msra.mxu0 0
    %303 = vmatprep.subr.bf16.mxu0 0
    %304 = vmatpush1.bf16.msra.mxu0 0
    %305 = vmatprep.subr.bf16.mxu0 0
    %306 = vmatpush1.bf16.msra.mxu0 0
    %307 = vmatprep.subr.bf16.mxu0 0
    %308 = vmatpush1.bf16.msra.mxu0 0
    %309 = vmatprep.mubr.bf16.mxu0 0
    %310 = vmatmul.mubr.bf16.gmra.mrb[0].mxu0 %v266
    %v311 = vpop.f32.mrb[0].mxu0
    %v312 = vadd.f32 %v217, %v311
    %v313 = vpop.f32.mrb[0].mxu0
    %v314 = vpop.f32.mrb[0].mxu0
    %v315 = vadd.f32 %v220, %v314
    %v316 = vpop.f32.mrb[0].mxu0
    %317 = vmatprep.mubr.bf16.mxu0 0
    %318 = vmatmul.mubr.bf16.gmra.mrb[0].mxu0 %v269
    %v319 = vpop.f32.mrb[0].mxu0
    %v320 = vadd.f32 %v225, %v319
    %v321 = vpop.f32.mrb[0].mxu0
    %v322 = vpop.f32.mrb[0].mxu0
    %v323 = vadd.f32 %v228, %v322
    %v324 = vpop.f32.mrb[0].mxu0
    %325 = vmatprep.mubr.bf16.mxu0 0
    %326 = vmatmul.mubr.bf16.gmra.mrb[0].mxu0 %v272
    %v327 = vpop.f32.mrb[0].mxu0
    %v328 = vadd.f32 %v233, %v327
    %v329 = vpop.f32.mrb[0].mxu0
    %v330 = vpop.f32.mrb[0].mxu0
    %v331 = vpop.f32.mrb[0].mxu0
    %332 = vdwg.mxu0
    %v333 = vld [vmem:[#allocation3 + $0x9] sm:$0xff]
    %v334 = vld [vmem:[#allocation3 + $0x11] sm:$0xff]
    %v335 = vld [vmem:[#allocation3 + $0x19] sm:$0xff]
    %v336 = vld [vmem:[#allocation3 + $0x21] sm:$0xff]
    %v337 = vld [vmem:[#allocation3 + $0x29] sm:$0xf]
    %v338 = vpack.c.bf16 %v334, %v333
    %v339 = vpack.c.bf16 %v336, %v335
    %v340 = vpack.c.bf16 %v337, %v337
    %s341 = scalar_lea.vmem [#allocation6], 72
    %v342 = vld [vmem:[%s341] sm:$0xf]
    %v343 = vld [vmem:[%s341 + $0x4] sm:$0xf]
    %v344 = vld [vmem:[%s341 + $0x8] sm:$0xf]
    %v345 = vld [vmem:[%s341 + $0xc] sm:$0xf]
    %v346 = vld [vmem:[%s341 + $0x10] sm:$0xf]
    %v347 = vld [vmem:[%s341 + $0x14] sm:$0xf]
    %v348 = vld [vmem:[%s341 + $0x18] sm:$0xf]
    %v349 = vld [vmem:[%s341 + $0x1c] sm:$0xf]
    %v350 = vld [vmem:[%s341 + $0x20] sm:$0xf]
    %v360 = vunpack.c.l.b16 %v342
    %v361 = vunpack.c.l.b16 %v343
    %v362 = vunpack.c.l.b16 %v344
    %v363 = vunpack.c.l.b16 %v345
    %v364 = vunpack.c.l.b16 %v346
    %v365 = vunpack.c.l.b16 %v347
    %v366 = vunpack.c.l.b16 %v348
    %v367 = vunpack.c.l.b16 %v349
    %v368 = vunpack.c.l.b16 %v350
    %v369 = vpack.c.b16 %v361, %v360
    %v370 = vpack.c.b16 %v363, %v362
    %v371 = vpack.c.b16 %v365, %v364
    %v372 = vpack.c.b16 %v367, %v366
    %v373 = vpack.c.b16 %v368, %v368
    %v379 = vsel %vm168, %v338, 0
    %v382 = vsel %vm168, %v339, 0
    %v385 = vsel %vm168, %v340, 0
    %v388 = vsel %vm178, %v373, 0
    %390 = vmatprep.subr.bf16.mxu0 0
    %391 = vmatpush1.bf16.msra.mxu0 %v369
    %392 = vmatprep.subr.bf16.mxu0 0
    %393 = vmatpush1.bf16.msra.mxu0 %v370
    %394 = vmatprep.subr.bf16.mxu0 0
    %395 = vmatpush1.bf16.msra.mxu0 %v371
    %396 = vmatprep.subr.bf16.mxu0 0
    %397 = vmatpush1.bf16.msra.mxu0 %v372
    %398 = vmatprep.subr.bf16.mxu0 0
    %399 = vmatpush1.bf16.msra.mxu0 %v388
    %400 = vmatprep.subr.bf16.mxu0 0
    %401 = vmatpush1.bf16.msra.mxu0 0
    %402 = vmatprep.subr.bf16.mxu0 0
    %403 = vmatpush1.bf16.msra.mxu0 0
    %404 = vmatprep.subr.bf16.mxu0 0
    %405 = vmatpush1.bf16.msra.mxu0 0
    %406 = vmatprep.subr.bf16.mxu0 0
    %407 = vmatpush1.bf16.msra.mxu0 0
    %408 = vmatprep.subr.bf16.mxu0 0
    %409 = vmatpush1.bf16.msra.mxu0 0
    %410 = vmatprep.subr.bf16.mxu0 0
    %411 = vmatpush1.bf16.msra.mxu0 0
    %412 = vmatprep.subr.bf16.mxu0 0
    %413 = vmatpush1.bf16.msra.mxu0 0
    %414 = vmatprep.subr.bf16.mxu0 0
    %415 = vmatpush1.bf16.msra.mxu0 0
    %416 = vmatprep.subr.bf16.mxu0 0
    %417 = vmatpush1.bf16.msra.mxu0 0
    %418 = vmatprep.subr.bf16.mxu0 0
    %419 = vmatpush1.bf16.msra.mxu0 0
    %420 = vmatprep.subr.bf16.mxu0 0
    %421 = vmatpush1.bf16.msra.mxu0 0
    %422 = vmatprep.mubr.bf16.mxu0 0
    %423 = vmatmul.mubr.bf16.gmra.mrb[0].mxu0 %v379
    %v424 = vpop.f32.mrb[0].mxu0
    %v425 = vadd.f32 0.0, %v424
    %v426 = vpop.f32.mrb[0].mxu0
    %v427 = vpop.f32.mrb[0].mxu0
    %v428 = vadd.f32 0.0, %v427
    %v429 = vpop.f32.mrb[0].mxu0
    %430 = vmatprep.mubr.bf16.mxu0 0
    %431 = vmatmul.mubr.bf16.gmra.mrb[0].mxu0 %v382
    %v432 = vpop.f32.mrb[0].mxu0
    %v433 = vadd.f32 0.0, %v432
    %v434 = vpop.f32.mrb[0].mxu0
    %v435 = vpop.f32.mrb[0].mxu0
    %v436 = vadd.f32 0.0, %v435
    %v437 = vpop.f32.mrb[0].mxu0
    %438 = vmatprep.mubr.bf16.mxu0 0
    %439 = vmatmul.mubr.bf16.gmra.mrb[0].mxu0 %v385
    %v440 = vpop.f32.mrb[0].mxu0
    %v441 = vadd.f32 0.0, %v440
    %v442 = vpop.f32.mrb[0].mxu0
    %v443 = vpop.f32.mrb[0].mxu0
    %v444 = vpop.f32.mrb[0].mxu0
    %445 = vdwg.mxu0
    %v446 = vadd.f32 %v312, %v425
    %v447 = vadd.f32 %v315, %v428
    %v448 = vadd.f32 %v320, %v433
    %v449 = vadd.f32 %v323, %v436
    %v450 = vadd.f32 %v328, %v441
    %452 = vset.pattern.permute.xlu0 0
    %453 = vperm.xlu0 %452, %v83
    %v454 = vpop.permute.xlu0 %453
    %457 = vset.pattern.permute.xlu0 0
    %458 = vperm.xlu0 %457, %v84
    %v459 = vpop.permute.xlu0 %458
    %462 = vset.pattern.permute.xlu0 0
    %463 = vperm.xlu0 %462, %v85
    %v464 = vpop.permute.xlu0 %463
    %467 = vset.pattern.permute.xlu0 0
    %468 = vperm.xlu0 %467, %v86
    %v469 = vpop.permute.xlu0 %468
    %472 = vset.pattern.permute.xlu0 0
    %473 = vperm.xlu0 %472, %v87
    %v474 = vpop.permute.xlu0 %473
    %v476 = vmul.f32 %v446, %v454
    %v477 = vmul.f32 %v447, %v459
    %v478 = vmul.f32 %v448, %v464
    %v479 = vmul.f32 %v449, %v469
    %v480 = vmul.f32 %v450, %v474
    %v481 = vadd.f32 %v476, %v477
    %v482 = vadd.f32 %v481, %v478
    %v483 = vadd.f32 %v482, %v479
    %v484 = vsel %vm178, %v480, 0.0
    %v485 = vadd.f32 %v483, %v484
    %v486 = vrot.slane %v485, 4
    %v487 = vadd.f32 %v485, %v486
    %v488 = vrot.slane %v487, 2
    %v489 = vadd.f32 %v487, %v488
    %v490 = vrot.slane %v489, 1
    %v491 = vadd.f32 %v489, %v490
    %492 = vmatprep.subr.mxu0 0.0
    %v493 = vand.u32 %v90, 4294901760
    %494 = vmatpush1.msra.mxu0 %v493
    %495 = vmatprep.subr.mxu0 0.0
    %v496 = vand.u32 %v91, 4294901760
    %497 = vmatpush1.msra.mxu0 %v496
    %498 = vmatprep.subr.mxu0 0.0
    %v499 = vand.u32 %v92, 4294901760
    %500 = vmatpush1.msra.mxu0 %v499
    %501 = vmatprep.subr.mxu0 0.0
    %v502 = vand.u32 %v93, 4294901760
    %503 = vmatpush1.msra.mxu0 %v502
    %504 = vmatprep.subr.mxu0 0.0
    %v505 = vand.u32 %v94, 4294901760
    %506 = vmatpush1.msra.mxu0 %v505
    %507 = vmatprep.subr.mxu0 0.0
    %v508 = vand.u32 %v95, 4294901760
    %509 = vmatpush1.msra.mxu0 %v508
    %510 = vmatprep.subr.mxu0 0.0
    %v511 = vand.u32 %v96, 4294901760
    %512 = vmatpush1.msra.mxu0 %v511
    %513 = vmatprep.subr.mxu0 0.0
    %v514 = vand.u32 %v97, 4294901760
    %515 = vmatpush1.msra.mxu0 %v514
    %516 = vmatprep.subr.mxu0 0.0
    %v517 = vand.u32 %v98, 4294901760
    %518 = vmatpush1.msra.mxu0 %v517
    %519 = vmatprep.subr.mxu0 0.0
    %v520 = vand.u32 %v99, 4294901760
    %521 = vmatpush1.msra.mxu0 %v520
    %522 = vmatprep.subr.mxu0 0.0
    %v523 = vand.u32 %v100, 4294901760
    %524 = vmatpush1.msra.mxu0 %v523
    %525 = vmatprep.subr.mxu0 0.0
    %v526 = vand.u32 %v101, 4294901760
    %527 = vmatpush1.msra.mxu0 %v526
    %528 = vmatprep.subr.mxu0 0.0
    %v529 = vand.u32 %v102, 4294901760
    %530 = vmatpush1.msra.mxu0 %v529
    %531 = vmatprep.subr.mxu0 0.0
    %v532 = vand.u32 %v103, 4294901760
    %533 = vmatpush1.msra.mxu0 %v532
    %534 = vmatprep.subr.mxu0 0.0
    %v535 = vand.u32 %v104, 4294901760
    %536 = vmatpush1.msra.mxu0 %v535
    %537 = vmatprep.subr.mxu0 0.0
    %v538 = vand.u32 %v105, 4294901760
    %539 = vmatpush1.msra.mxu0 %v538
    %540 = vmatprep.subr.mxu0 0.0
    %541 = vmatpush1.msra.mxu0 0.0
    %542 = vmatprep.subr.mxu0 0.0
    %543 = vmatpush1.msra.mxu0 0.0
    %544 = vmatprep.subr.mxu0 0.0
    %545 = vmatpush1.msra.mxu0 0.0
    %546 = vmatprep.subr.mxu0 0.0
    %547 = vmatpush1.msra.mxu0 0.0
    %548 = vmatprep.subr.mxu0 0.0
    %549 = vmatpush1.msra.mxu0 0.0
    %550 = vmatprep.subr.mxu0 0.0
    %551 = vmatpush1.msra.mxu0 0.0
    %552 = vmatprep.subr.mxu0 0.0
    %553 = vmatpush1.msra.mxu0 0.0
    %554 = vmatprep.subr.mxu0 0.0
    %555 = vmatpush1.msra.mxu0 0.0
    %556 = vmatprep.subr.mxu0 0.0
    %557 = vmatpush1.msra.mxu0 0.0
    %558 = vmatprep.subr.mxu0 0.0
    %559 = vmatpush1.msra.mxu0 0.0
    %560 = vmatprep.subr.mxu0 0.0
    %561 = vmatpush1.msra.mxu0 0.0
    %562 = vmatprep.subr.mxu0 0.0
    %563 = vmatpush1.msra.mxu0 0.0
    %564 = vmatprep.subr.mxu0 0.0
    %565 = vmatpush1.msra.mxu0 0.0
    %566 = vmatprep.subr.mxu0 0.0
    %567 = vmatpush1.msra.mxu0 0.0
    %568 = vmatprep.subr.mxu0 0.0
    %569 = vmatpush1.msra.mxu0 0.0
    %570 = vmatprep.subr.mxu0 0.0
    %571 = vmatpush1.msra.mxu0 0.0
    %572 = vmatprep.mubr.f32.mxu0 0.0
    %v573 = vand.u32 %v491, 4294901760
    %v574 = vsub.f32 %v491, %v573
    %v575 = vand.u32 %v574, 4294901760
    %v576 = vsub.f32 %v574, %v575
    %v577 = vand.u32 %v576, 4294901760
    %578 = vmatmul.mubr.f32.gmra.mrb[0].mxu0 %v577
    %v579 = vpop.f32.mrb[0].mxu0
    %v580 = vadd.f32 0.0, %v579
    %v581 = vpop.f32.mrb[0].mxu0
    %582 = vdwg.mxu0
    %583 = vmatprep.subr.mxu0 0.0
    %v584 = vand.u32 %v90, 4294901760
    %v585 = vsub.f32 %v90, %v584
    %v586 = vand.u32 %v585, 4294901760
    %v587 = vsub.f32 %v585, %v586
    %v588 = vand.u32 %v587, 4294901760
    %589 = vmatpush1.msra.mxu0 %v588
    %590 = vmatprep.subr.mxu0 0.0
    %v591 = vand.u32 %v91, 4294901760
    %v592 = vsub.f32 %v91, %v591
    %v593 = vand.u32 %v592, 4294901760
    %v594 = vsub.f32 %v592, %v593
    %v595 = vand.u32 %v594, 4294901760
    %596 = vmatpush1.msra.mxu0 %v595
    %597 = vmatprep.subr.mxu0 0.0
    %v598 = vand.u32 %v92, 4294901760
    %v599 = vsub.f32 %v92, %v598
    %v600 = vand.u32 %v599, 4294901760
    %v601 = vsub.f32 %v599, %v600
    %v602 = vand.u32 %v601, 4294901760
    %603 = vmatpush1.msra.mxu0 %v602
    %604 = vmatprep.subr.mxu0 0.0
    %v605 = vand.u32 %v93, 4294901760
    %v606 = vsub.f32 %v93, %v605
    %v607 = vand.u32 %v606, 4294901760
    %v608 = vsub.f32 %v606, %v607
    %v609 = vand.u32 %v608, 4294901760
    %610 = vmatpush1.msra.mxu0 %v609
    %611 = vmatprep.subr.mxu0 0.0
    %v612 = vand.u32 %v94, 4294901760
    %v613 = vsub.f32 %v94, %v612
    %v614 = vand.u32 %v613, 4294901760
    %v615 = vsub.f32 %v613, %v614
    %v616 = vand.u32 %v615, 4294901760
    %617 = vmatpush1.msra.mxu0 %v616
    %618 = vmatprep.subr.mxu0 0.0
    %v619 = vand.u32 %v95, 4294901760
    %v620 = vsub.f32 %v95, %v619
    %v621 = vand.u32 %v620, 4294901760
    %v622 = vsub.f32 %v620, %v621
    %v623 = vand.u32 %v622, 4294901760
    %624 = vmatpush1.msra.mxu0 %v623
    %625 = vmatprep.subr.mxu0 0.0
    %v626 = vand.u32 %v96, 4294901760
    %v627 = vsub.f32 %v96, %v626
    %v628 = vand.u32 %v627, 4294901760
    %v629 = vsub.f32 %v627, %v628
    %v630 = vand.u32 %v629, 4294901760
    %631 = vmatpush1.msra.mxu0 %v630
    %632 = vmatprep.subr.mxu0 0.0
    %v633 = vand.u32 %v97, 4294901760
    %v634 = vsub.f32 %v97, %v633
    %v635 = vand.u32 %v634, 4294901760
    %v636 = vsub.f32 %v634, %v635
    %v637 = vand.u32 %v636, 4294901760
    %638 = vmatpush1.msra.mxu0 %v637
    %639 = vmatprep.subr.mxu0 0.0
    %v640 = vand.u32 %v98, 4294901760
    %v641 = vsub.f32 %v98, %v640
    %v642 = vand.u32 %v641, 4294901760
    %v643 = vsub.f32 %v641, %v642
    %v644 = vand.u32 %v643, 4294901760
    %645 = vmatpush1.msra.mxu0 %v644
    %646 = vmatprep.subr.mxu0 0.0
    %v647 = vand.u32 %v99, 4294901760
    %v648 = vsub.f32 %v99, %v647
    %v649 = vand.u32 %v648, 4294901760
    %v650 = vsub.f32 %v648, %v649
    %v651 = vand.u32 %v650, 4294901760
    %652 = vmatpush1.msra.mxu0 %v651
    %653 = vmatprep.subr.mxu0 0.0
    %v654 = vand.u32 %v100, 4294901760
    %v655 = vsub.f32 %v100, %v654
    %v656 = vand.u32 %v655, 4294901760
    %v657 = vsub.f32 %v655, %v656
    %v658 = vand.u32 %v657, 4294901760
    %659 = vmatpush1.msra.mxu0 %v658
    %660 = vmatprep.subr.mxu0 0.0
    %v661 = vand.u32 %v101, 4294901760
    %v662 = vsub.f32 %v101, %v661
    %v663 = vand.u32 %v662, 4294901760
    %v664 = vsub.f32 %v662, %v663
    %v665 = vand.u32 %v664, 4294901760
    %666 = vmatpush1.msra.mxu0 %v665
    %667 = vmatprep.subr.mxu0 0.0
    %v668 = vand.u32 %v102, 4294901760
    %v669 = vsub.f32 %v102, %v668
    %v670 = vand.u32 %v669, 4294901760
    %v671 = vsub.f32 %v669, %v670
    %v672 = vand.u32 %v671, 4294901760
    %673 = vmatpush1.msra.mxu0 %v672
    %674 = vmatprep.subr.mxu0 0.0
    %v675 = vand.u32 %v103, 4294901760
    %v676 = vsub.f32 %v103, %v675
    %v677 = vand.u32 %v676, 4294901760
    %v678 = vsub.f32 %v676, %v677
    %v679 = vand.u32 %v678, 4294901760
    %680 = vmatpush1.msra.mxu0 %v679
    %681 = vmatprep.subr.mxu0 0.0
    %v682 = vand.u32 %v104, 4294901760
    %v683 = vsub.f32 %v104, %v682
    %v684 = vand.u32 %v683, 4294901760
    %v685 = vsub.f32 %v683, %v684
    %v686 = vand.u32 %v685, 4294901760
    %687 = vmatpush1.msra.mxu0 %v686
    %688 = vmatprep.subr.mxu0 0.0
    %v689 = vand.u32 %v105, 4294901760
    %v690 = vsub.f32 %v105, %v689
    %v691 = vand.u32 %v690, 4294901760
    %v692 = vsub.f32 %v690, %v691
    %v693 = vand.u32 %v692, 4294901760
    %694 = vmatpush1.msra.mxu0 %v693
    %695 = vmatprep.subr.mxu0 0.0
    %696 = vmatpush1.msra.mxu0 0.0
    %697 = vmatprep.subr.mxu0 0.0
    %698 = vmatpush1.msra.mxu0 0.0
    %699 = vmatprep.subr.mxu0 0.0
    %700 = vmatpush1.msra.mxu0 0.0
    %701 = vmatprep.subr.mxu0 0.0
    %702 = vmatpush1.msra.mxu0 0.0
    %703 = vmatprep.subr.mxu0 0.0
    %704 = vmatpush1.msra.mxu0 0.0
    %705 = vmatprep.subr.mxu0 0.0
    %706 = vmatpush1.msra.mxu0 0.0
    %707 = vmatprep.subr.mxu0 0.0
    %708 = vmatpush1.msra.mxu0 0.0
    %709 = vmatprep.subr.mxu0 0.0
    %710 = vmatpush1.msra.mxu0 0.0
    %711 = vmatprep.subr.mxu0 0.0
    %712 = vmatpush1.msra.mxu0 0.0
    %713 = vmatprep.subr.mxu0 0.0
    %714 = vmatpush1.msra.mxu0 0.0
    %715 = vmatprep.subr.mxu0 0.0
    %716 = vmatpush1.msra.mxu0 0.0
    %717 = vmatprep.subr.mxu0 0.0
    %718 = vmatpush1.msra.mxu0 0.0
    %719 = vmatprep.subr.mxu0 0.0
    %720 = vmatpush1.msra.mxu0 0.0
    %721 = vmatprep.subr.mxu0 0.0
    %722 = vmatpush1.msra.mxu0 0.0
    %723 = vmatprep.subr.mxu0 0.0
    %724 = vmatpush1.msra.mxu0 0.0
    %725 = vmatprep.subr.mxu0 0.0
    %726 = vmatpush1.msra.mxu0 0.0
    %727 = vmatprep.mubr.f32.mxu0 0.0
    %v728 = vand.u32 %v491, 4294901760
    %729 = vmatmul.mubr.f32.gmra.mrb[0].mxu0 %v728
    %v730 = vpop.f32.mrb[0].mxu0
    %v731 = vadd.f32 %v580, %v730
    %v732 = vpop.f32.mrb[0].mxu0
    %733 = vdwg.mxu0
    %734 = vmatprep.subr.mxu0 0.0
    %v735 = vand.u32 %v90, 4294901760
    %v736 = vsub.f32 %v90, %v735
    %737 = vmatpush1.msra.mxu0 %v736
    %738 = vmatprep.subr.mxu0 0.0
    %v739 = vand.u32 %v91, 4294901760
    %v740 = vsub.f32 %v91, %v739
    %741 = vmatpush1.msra.mxu0 %v740
    %742 = vmatprep.subr.mxu0 0.0
    %v743 = vand.u32 %v92, 4294901760
    %v744 = vsub.f32 %v92, %v743
    %745 = vmatpush1.msra.mxu0 %v744
    %746 = vmatprep.subr.mxu0 0.0
    %v747 = vand.u32 %v93, 4294901760
    %v748 = vsub.f32 %v93, %v747
    %749 = vmatpush1.msra.mxu0 %v748
    %750 = vmatprep.subr.mxu0 0.0
    %v751 = vand.u32 %v94, 4294901760
    %v752 = vsub.f32 %v94, %v751
    %753 = vmatpush1.msra.mxu0 %v752
    %754 = vmatprep.subr.mxu0 0.0
    %v755 = vand.u32 %v95, 4294901760
    %v756 = vsub.f32 %v95, %v755
    %757 = vmatpush1.msra.mxu0 %v756
    %758 = vmatprep.subr.mxu0 0.0
    %v759 = vand.u32 %v96, 4294901760
    %v760 = vsub.f32 %v96, %v759
    %761 = vmatpush1.msra.mxu0 %v760
    %762 = vmatprep.subr.mxu0 0.0
    %v763 = vand.u32 %v97, 4294901760
    %v764 = vsub.f32 %v97, %v763
    %765 = vmatpush1.msra.mxu0 %v764
    %766 = vmatprep.subr.mxu0 0.0
    %v767 = vand.u32 %v98, 4294901760
    %v768 = vsub.f32 %v98, %v767
    %769 = vmatpush1.msra.mxu0 %v768
    %770 = vmatprep.subr.mxu0 0.0
    %v771 = vand.u32 %v99, 4294901760
    %v772 = vsub.f32 %v99, %v771
    %773 = vmatpush1.msra.mxu0 %v772
    %774 = vmatprep.subr.mxu0 0.0
    %v775 = vand.u32 %v100, 4294901760
    %v776 = vsub.f32 %v100, %v775
    %777 = vmatpush1.msra.mxu0 %v776
    %778 = vmatprep.subr.mxu0 0.0
    %v779 = vand.u32 %v101, 4294901760
    %v780 = vsub.f32 %v101, %v779
    %781 = vmatpush1.msra.mxu0 %v780
    %782 = vmatprep.subr.mxu0 0.0
    %v783 = vand.u32 %v102, 4294901760
    %v784 = vsub.f32 %v102, %v783
    %785 = vmatpush1.msra.mxu0 %v784
    %786 = vmatprep.subr.mxu0 0.0
    %v787 = vand.u32 %v103, 4294901760
    %v788 = vsub.f32 %v103, %v787
    %789 = vmatpush1.msra.mxu0 %v788
    %790 = vmatprep.subr.mxu0 0.0
    %v791 = vand.u32 %v104, 4294901760
    %v792 = vsub.f32 %v104, %v791
    %793 = vmatpush1.msra.mxu0 %v792
    %794 = vmatprep.subr.mxu0 0.0
    %v795 = vand.u32 %v105, 4294901760
    %v796 = vsub.f32 %v105, %v795
    %797 = vmatpush1.msra.mxu0 %v796
    %798 = vmatprep.subr.mxu0 0.0
    %799 = vmatpush1.msra.mxu0 0.0
    %800 = vmatprep.subr.mxu0 0.0
    %801 = vmatpush1.msra.mxu0 0.0
    %802 = vmatprep.subr.mxu0 0.0
    %803 = vmatpush1.msra.mxu0 0.0
    %804 = vmatprep.subr.mxu0 0.0
    %805 = vmatpush1.msra.mxu0 0.0
    %806 = vmatprep.subr.mxu0 0.0
    %807 = vmatpush1.msra.mxu0 0.0
    %808 = vmatprep.subr.mxu0 0.0
    %809 = vmatpush1.msra.mxu0 0.0
    %810 = vmatprep.subr.mxu0 0.0
    %811 = vmatpush1.msra.mxu0 0.0
    %812 = vmatprep.subr.mxu0 0.0
    %813 = vmatpush1.msra.mxu0 0.0
    %814 = vmatprep.subr.mxu0 0.0
    %815 = vmatpush1.msra.mxu0 0.0
    %816 = vmatprep.subr.mxu0 0.0
    %817 = vmatpush1.msra.mxu0 0.0
    %818 = vmatprep.subr.mxu0 0.0
    %819 = vmatpush1.msra.mxu0 0.0
    %820 = vmatprep.subr.mxu0 0.0
    %821 = vmatpush1.msra.mxu0 0.0
    %822 = vmatprep.subr.mxu0 0.0
    %823 = vmatpush1.msra.mxu0 0.0
    %824 = vmatprep.subr.mxu0 0.0
    %825 = vmatpush1.msra.mxu0 0.0
    %826 = vmatprep.subr.mxu0 0.0
    %827 = vmatpush1.msra.mxu0 0.0
    %828 = vmatprep.subr.mxu0 0.0
    %829 = vmatpush1.msra.mxu0 0.0
    %830 = vmatprep.mubr.f32.mxu0 0.0
    %v831 = vand.u32 %v491, 4294901760
    %v832 = vsub.f32 %v491, %v831
    %833 = vmatmul.mubr.f32.gmra.mrb[0].mxu0 %v832
    %v834 = vpop.f32.mrb[0].mxu0
    %v835 = vadd.f32 %v731, %v834
    %v836 = vpop.f32.mrb[0].mxu0
    %837 = vdwg.mxu0
    %838 = vmatprep.subr.mxu0 0.0
    %v839 = vand.u32 %v90, 4294901760
    %840 = vmatpush1.msra.mxu0 %v839
    %841 = vmatprep.subr.mxu0 0.0
    %v842 = vand.u32 %v91, 4294901760
    %843 = vmatpush1.msra.mxu0 %v842
    %844 = vmatprep.subr.mxu0 0.0
    %v845 = vand.u32 %v92, 4294901760
    %846 = vmatpush1.msra.mxu0 %v845
    %847 = vmatprep.subr.mxu0 0.0
    %v848 = vand.u32 %v93, 4294901760
    %849 = vmatpush1.msra.mxu0 %v848
    %850 = vmatprep.subr.mxu0 0.0
    %v851 = vand.u32 %v94, 4294901760
    %852 = vmatpush1.msra.mxu0 %v851
    %853 = vmatprep.subr.mxu0 0.0
    %v854 = vand.u32 %v95, 4294901760
    %855 = vmatpush1.msra.mxu0 %v854
    %856 = vmatprep.subr.mxu0 0.0
    %v857 = vand.u32 %v96, 4294901760
    %858 = vmatpush1.msra.mxu0 %v857
    %859 = vmatprep.subr.mxu0 0.0
    %v860 = vand.u32 %v97, 4294901760
    %861 = vmatpush1.msra.mxu0 %v860
    %862 = vmatprep.subr.mxu0 0.0
    %v863 = vand.u32 %v98, 4294901760
    %864 = vmatpush1.msra.mxu0 %v863
    %865 = vmatprep.subr.mxu0 0.0
    %v866 = vand.u32 %v99, 4294901760
    %867 = vmatpush1.msra.mxu0 %v866
    %868 = vmatprep.subr.mxu0 0.0
    %v869 = vand.u32 %v100, 4294901760
    %870 = vmatpush1.msra.mxu0 %v869
    %871 = vmatprep.subr.mxu0 0.0
    %v872 = vand.u32 %v101, 4294901760
    %873 = vmatpush1.msra.mxu0 %v872
    %874 = vmatprep.subr.mxu0 0.0
    %v875 = vand.u32 %v102, 4294901760
    %876 = vmatpush1.msra.mxu0 %v875
    %877 = vmatprep.subr.mxu0 0.0
    %v878 = vand.u32 %v103, 4294901760
    %879 = vmatpush1.msra.mxu0 %v878
    %880 = vmatprep.subr.mxu0 0.0
    %v881 = vand.u32 %v104, 4294901760
    %882 = vmatpush1.msra.mxu0 %v881
    %883 = vmatprep.subr.mxu0 0.0
    %v884 = vand.u32 %v105, 4294901760
    %885 = vmatpush1.msra.mxu0 %v884
    %886 = vmatprep.subr.mxu0 0.0
    %887 = vmatpush1.msra.mxu0 0.0
    %888 = vmatprep.subr.mxu0 0.0
    %889 = vmatpush1.msra.mxu0 0.0
    %890 = vmatprep.subr.mxu0 0.0
    %891 = vmatpush1.msra.mxu0 0.0
    %892 = vmatprep.subr.mxu0 0.0
    %893 = vmatpush1.msra.mxu0 0.0
    %894 = vmatprep.subr.mxu0 0.0
    %895 = vmatpush1.msra.mxu0 0.0
    %896 = vmatprep.subr.mxu0 0.0
    %897 = vmatpush1.msra.mxu0 0.0
    %898 = vmatprep.subr.mxu0 0.0
    %899 = vmatpush1.msra.mxu0 0.0
    %900 = vmatprep.subr.mxu0 0.0
    %901 = vmatpush1.msra.mxu0 0.0
    %902 = vmatprep.subr.mxu0 0.0
    %903 = vmatpush1.msra.mxu0 0.0
    %904 = vmatprep.subr.mxu0 0.0
    %905 = vmatpush1.msra.mxu0 0.0
    %906 = vmatprep.subr.mxu0 0.0
    %907 = vmatpush1.msra.mxu0 0.0
    %908 = vmatprep.subr.mxu0 0.0
    %909 = vmatpush1.msra.mxu0 0.0
    %910 = vmatprep.subr.mxu0 0.0
    %911 = vmatpush1.msra.mxu0 0.0
    %912 = vmatprep.subr.mxu0 0.0
    %913 = vmatpush1.msra.mxu0 0.0
    %914 = vmatprep.subr.mxu0 0.0
    %915 = vmatpush1.msra.mxu0 0.0
    %916 = vmatprep.subr.mxu0 0.0
    %917 = vmatpush1.msra.mxu0 0.0
    %918 = vmatprep.mubr.f32.mxu0 0.0
    %v919 = vand.u32 %v491, 4294901760
    %v920 = vsub.f32 %v491, %v919
    %v921 = vand.u32 %v920, 4294901760
    %922 = vmatmul.mubr.f32.gmra.mrb[0].mxu0 %v921
    %v923 = vpop.f32.mrb[0].mxu0
    %v924 = vadd.f32 %v835, %v923
    %v925 = vpop.f32.mrb[0].mxu0
    %926 = vdwg.mxu0
    %927 = vmatprep.subr.mxu0 0.0
    %v928 = vand.u32 %v90, 4294901760
    %v929 = vsub.f32 %v90, %v928
    %v930 = vand.u32 %v929, 4294901760
    %931 = vmatpush1.msra.mxu0 %v930
    %932 = vmatprep.subr.mxu0 0.0
    %v933 = vand.u32 %v91, 4294901760
    %v934 = vsub.f32 %v91, %v933
    %v935 = vand.u32 %v934, 4294901760
    %936 = vmatpush1.msra.mxu0 %v935
    %937 = vmatprep.subr.mxu0 0.0
    %v938 = vand.u32 %v92, 4294901760
    %v939 = vsub.f32 %v92, %v938
    %v940 = vand.u32 %v939, 4294901760
    %941 = vmatpush1.msra.mxu0 %v940
    %942 = vmatprep.subr.mxu0 0.0
    %v943 = vand.u32 %v93, 4294901760
    %v944 = vsub.f32 %v93, %v943
    %v945 = vand.u32 %v944, 4294901760
    %946 = vmatpush1.msra.mxu0 %v945
    %947 = vmatprep.subr.mxu0 0.0
    %v948 = vand.u32 %v94, 4294901760
    %v949 = vsub.f32 %v94, %v948
    %v950 = vand.u32 %v949, 4294901760
    %951 = vmatpush1.msra.mxu0 %v950
    %952 = vmatprep.subr.mxu0 0.0
    %v953 = vand.u32 %v95, 4294901760
    %v954 = vsub.f32 %v95, %v953
    %v955 = vand.u32 %v954, 4294901760
    %956 = vmatpush1.msra.mxu0 %v955
    %957 = vmatprep.subr.mxu0 0.0
    %v958 = vand.u32 %v96, 4294901760
    %v959 = vsub.f32 %v96, %v958
    %v960 = vand.u32 %v959, 4294901760
    %961 = vmatpush1.msra.mxu0 %v960
    %962 = vmatprep.subr.mxu0 0.0
    %v963 = vand.u32 %v97, 4294901760
    %v964 = vsub.f32 %v97, %v963
    %v965 = vand.u32 %v964, 4294901760
    %966 = vmatpush1.msra.mxu0 %v965
    %967 = vmatprep.subr.mxu0 0.0
    %v968 = vand.u32 %v98, 4294901760
    %v969 = vsub.f32 %v98, %v968
    %v970 = vand.u32 %v969, 4294901760
    %971 = vmatpush1.msra.mxu0 %v970
    %972 = vmatprep.subr.mxu0 0.0
    %v973 = vand.u32 %v99, 4294901760
    %v974 = vsub.f32 %v99, %v973
    %v975 = vand.u32 %v974, 4294901760
    %976 = vmatpush1.msra.mxu0 %v975
    %977 = vmatprep.subr.mxu0 0.0
    %v978 = vand.u32 %v100, 4294901760
    %v979 = vsub.f32 %v100, %v978
    %v980 = vand.u32 %v979, 4294901760
    %981 = vmatpush1.msra.mxu0 %v980
    %982 = vmatprep.subr.mxu0 0.0
    %v983 = vand.u32 %v101, 4294901760
    %v984 = vsub.f32 %v101, %v983
    %v985 = vand.u32 %v984, 4294901760
    %986 = vmatpush1.msra.mxu0 %v985
    %987 = vmatprep.subr.mxu0 0.0
    %v988 = vand.u32 %v102, 4294901760
    %v989 = vsub.f32 %v102, %v988
    %v990 = vand.u32 %v989, 4294901760
    %991 = vmatpush1.msra.mxu0 %v990
    %992 = vmatprep.subr.mxu0 0.0
    %v993 = vand.u32 %v103, 4294901760
    %v994 = vsub.f32 %v103, %v993
    %v995 = vand.u32 %v994, 4294901760
    %996 = vmatpush1.msra.mxu0 %v995
    %997 = vmatprep.subr.mxu0 0.0
    %v998 = vand.u32 %v104, 4294901760
    %v999 = vsub.f32 %v104, %v998
    %v1000 = vand.u32 %v999, 4294901760
    %1001 = vmatpush1.msra.mxu0 %v1000
    %1002 = vmatprep.subr.mxu0 0.0
    %v1003 = vand.u32 %v105, 4294901760
    %v1004 = vsub.f32 %v105, %v1003
    %v1005 = vand.u32 %v1004, 4294901760
    %1006 = vmatpush1.msra.mxu0 %v1005
    %1007 = vmatprep.subr.mxu0 0.0
    %1008 = vmatpush1.msra.mxu0 0.0
    %1009 = vmatprep.subr.mxu0 0.0
    %1010 = vmatpush1.msra.mxu0 0.0
    %1011 = vmatprep.subr.mxu0 0.0
    %1012 = vmatpush1.msra.mxu0 0.0
    %1013 = vmatprep.subr.mxu0 0.0
    %1014 = vmatpush1.msra.mxu0 0.0
    %1015 = vmatprep.subr.mxu0 0.0
    %1016 = vmatpush1.msra.mxu0 0.0
    %1017 = vmatprep.subr.mxu0 0.0
    %1018 = vmatpush1.msra.mxu0 0.0
    %1019 = vmatprep.subr.mxu0 0.0
    %1020 = vmatpush1.msra.mxu0 0.0
    %1021 = vmatprep.subr.mxu0 0.0
    %1022 = vmatpush1.msra.mxu0 0.0
    %1023 = vmatprep.subr.mxu0 0.0
    %1024 = vmatpush1.msra.mxu0 0.0
    %1025 = vmatprep.subr.mxu0 0.0
    %1026 = vmatpush1.msra.mxu0 0.0
    %1027 = vmatprep.subr.mxu0 0.0
    %1028 = vmatpush1.msra.mxu0 0.0
    %1029 = vmatprep.subr.mxu0 0.0
    %1030 = vmatpush1.msra.mxu0 0.0
    %1031 = vmatprep.subr.mxu0 0.0
    %1032 = vmatpush1.msra.mxu0 0.0
    %1033 = vmatprep.subr.mxu0 0.0
    %1034 = vmatpush1.msra.mxu0 0.0
    %1035 = vmatprep.subr.mxu0 0.0
    %1036 = vmatpush1.msra.mxu0 0.0
    %1037 = vmatprep.subr.mxu0 0.0
    %1038 = vmatpush1.msra.mxu0 0.0
    %1039 = vmatprep.mubr.f32.mxu0 0.0
    %v1040 = vand.u32 %v491, 4294901760
    %1041 = vmatmul.mubr.f32.gmra.mrb[0].mxu0 %v1040
    %v1042 = vpop.f32.mrb[0].mxu0
    %v1043 = vadd.f32 %v924, %v1042
    %v1044 = vpop.f32.mrb[0].mxu0
    %1045 = vdwg.mxu0
    %1046 = vmatprep.subr.mxu0 0.0
    %v1047 = vand.u32 %v90, 4294901760
    %1048 = vmatpush1.msra.mxu0 %v1047
    %1049 = vmatprep.subr.mxu0 0.0
    %v1050 = vand.u32 %v91, 4294901760
    %1051 = vmatpush1.msra.mxu0 %v1050
    %1052 = vmatprep.subr.mxu0 0.0
    %v1053 = vand.u32 %v92, 4294901760
    %1054 = vmatpush1.msra.mxu0 %v1053
    %1055 = vmatprep.subr.mxu0 0.0
    %v1056 = vand.u32 %v93, 4294901760
    %1057 = vmatpush1.msra.mxu0 %v1056
    %1058 = vmatprep.subr.mxu0 0.0
    %v1059 = vand.u32 %v94, 4294901760
    %1060 = vmatpush1.msra.mxu0 %v1059
    %1061 = vmatprep.subr.mxu0 0.0
    %v1062 = vand.u32 %v95, 4294901760
    %1063 = vmatpush1.msra.mxu0 %v1062
    %1064 = vmatprep.subr.mxu0 0.0
    %v1065 = vand.u32 %v96, 4294901760
    %1066 = vmatpush1.msra.mxu0 %v1065
    %1067 = vmatprep.subr.mxu0 0.0
    %v1068 = vand.u32 %v97, 4294901760
    %1069 = vmatpush1.msra.mxu0 %v1068
    %1070 = vmatprep.subr.mxu0 0.0
    %v1071 = vand.u32 %v98, 4294901760
    %1072 = vmatpush1.msra.mxu0 %v1071
    %1073 = vmatprep.subr.mxu0 0.0
    %v1074 = vand.u32 %v99, 4294901760
    %1075 = vmatpush1.msra.mxu0 %v1074
    %1076 = vmatprep.subr.mxu0 0.0
    %v1077 = vand.u32 %v100, 4294901760
    %1078 = vmatpush1.msra.mxu0 %v1077
    %1079 = vmatprep.subr.mxu0 0.0
    %v1080 = vand.u32 %v101, 4294901760
    %1081 = vmatpush1.msra.mxu0 %v1080
    %1082 = vmatprep.subr.mxu0 0.0
    %v1083 = vand.u32 %v102, 4294901760
    %1084 = vmatpush1.msra.mxu0 %v1083
    %1085 = vmatprep.subr.mxu0 0.0
    %v1086 = vand.u32 %v103, 4294901760
    %1087 = vmatpush1.msra.mxu0 %v1086
    %1088 = vmatprep.subr.mxu0 0.0
    %v1089 = vand.u32 %v104, 4294901760
    %1090 = vmatpush1.msra.mxu0 %v1089
    %1091 = vmatprep.subr.mxu0 0.0
    %v1092 = vand.u32 %v105, 4294901760
    %1093 = vmatpush1.msra.mxu0 %v1092
    %1094 = vmatprep.subr.mxu0 0.0
    %1095 = vmatpush1.msra.mxu0 0.0
    %1096 = vmatprep.subr.mxu0 0.0
    %1097 = vmatpush1.msra.mxu0 0.0
    %1098 = vmatprep.subr.mxu0 0.0
    %1099 = vmatpush1.msra.mxu0 0.0
    %1100 = vmatprep.subr.mxu0 0.0
    %1101 = vmatpush1.msra.mxu0 0.0
    %1102 = vmatprep.subr.mxu0 0.0
    %1103 = vmatpush1.msra.mxu0 0.0
    %1104 = vmatprep.subr.mxu0 0.0
    %1105 = vmatpush1.msra.mxu0 0.0
    %1106 = vmatprep.subr.mxu0 0.0
    %1107 = vmatpush1.msra.mxu0 0.0
    %1108 = vmatprep.subr.mxu0 0.0
    %1109 = vmatpush1.msra.mxu0 0.0
    %1110 = vmatprep.subr.mxu0 0.0
    %1111 = vmatpush1.msra.mxu0 0.0
    %1112 = vmatprep.subr.mxu0 0.0
    %1113 = vmatpush1.msra.mxu0 0.0
    %1114 = vmatprep.subr.mxu0 0.0
    %1115 = vmatpush1.msra.mxu0 0.0
    %1116 = vmatprep.subr.mxu0 0.0
    %1117 = vmatpush1.msra.mxu0 0.0
    %1118 = vmatprep.subr.mxu0 0.0
    %1119 = vmatpush1.msra.mxu0 0.0
    %1120 = vmatprep.subr.mxu0 0.0
    %1121 = vmatpush1.msra.mxu0 0.0
    %1122 = vmatprep.subr.mxu0 0.0
    %1123 = vmatpush1.msra.mxu0 0.0
    %1124 = vmatprep.subr.mxu0 0.0
    %1125 = vmatpush1.msra.mxu0 0.0
    %1126 = vmatprep.mubr.f32.mxu0 0.0
    %v1127 = vand.u32 %v491, 4294901760
    %1128 = vmatmul.mubr.f32.gmra.mrb[0].mxu0 %v1127
    %v1129 = vpop.f32.mrb[0].mxu0
    %v1130 = vadd.f32 %v1043, %v1129
    %v1131 = vpop.f32.mrb[0].mxu0
    %1132 = vdwg.mxu0
    %v1133 = vmul.f32 %v476, %v476
    %v1134 = vmul.f32 %v477, %v477
    %v1135 = vmul.f32 %v478, %v478
    %v1136 = vmul.f32 %v479, %v479
    %v1137 = vmul.f32 %v480, %v480
    %v1138 = vadd.f32 %v1133, %v1134
    %v1139 = vadd.f32 %v1138, %v1135
    %v1140 = vadd.f32 %v1139, %v1136
    %v1141 = vsel %vm178, %v1137, 0.0
    %v1142 = vadd.f32 %v1140, %v1141
    %v1143 = vrot.slane %v1142, 4
    %v1144 = vadd.f32 %v1142, %v1143
    %v1145 = vrot.slane %v1144, 2
    %v1146 = vadd.f32 %v1144, %v1145
    %v1147 = vrot.slane %v1146, 1
    %v1148 = vadd.f32 %v1146, %v1147
    %1149 = vmatprep.subr.mxu0 0.0
    %v1150 = vand.u32 %v90, 4294901760
    %1151 = vmatpush1.msra.mxu0 %v1150
    %1152 = vmatprep.subr.mxu0 0.0
    %v1153 = vand.u32 %v91, 4294901760
    %1154 = vmatpush1.msra.mxu0 %v1153
    %1155 = vmatprep.subr.mxu0 0.0
    %v1156 = vand.u32 %v92, 4294901760
    %1157 = vmatpush1.msra.mxu0 %v1156
    %1158 = vmatprep.subr.mxu0 0.0
    %v1159 = vand.u32 %v93, 4294901760
    %1160 = vmatpush1.msra.mxu0 %v1159
    %1161 = vmatprep.subr.mxu0 0.0
    %v1162 = vand.u32 %v94, 4294901760
    %1163 = vmatpush1.msra.mxu0 %v1162
    %1164 = vmatprep.subr.mxu0 0.0
    %v1165 = vand.u32 %v95, 4294901760
    %1166 = vmatpush1.msra.mxu0 %v1165
    %1167 = vmatprep.subr.mxu0 0.0
    %v1168 = vand.u32 %v96, 4294901760
    %1169 = vmatpush1.msra.mxu0 %v1168
    %1170 = vmatprep.subr.mxu0 0.0
    %v1171 = vand.u32 %v97, 4294901760
    %1172 = vmatpush1.msra.mxu0 %v1171
    %1173 = vmatprep.subr.mxu0 0.0
    %v1174 = vand.u32 %v98, 4294901760
    %1175 = vmatpush1.msra.mxu0 %v1174
    %1176 = vmatprep.subr.mxu0 0.0
    %v1177 = vand.u32 %v99, 4294901760
    %1178 = vmatpush1.msra.mxu0 %v1177
    %1179 = vmatprep.subr.mxu0 0.0
    %v1180 = vand.u32 %v100, 4294901760
    %1181 = vmatpush1.msra.mxu0 %v1180
    %1182 = vmatprep.subr.mxu0 0.0
    %v1183 = vand.u32 %v101, 4294901760
    %1184 = vmatpush1.msra.mxu0 %v1183
    %1185 = vmatprep.subr.mxu0 0.0
    %v1186 = vand.u32 %v102, 4294901760
    %1187 = vmatpush1.msra.mxu0 %v1186
    %1188 = vmatprep.subr.mxu0 0.0
    %v1189 = vand.u32 %v103, 4294901760
    %1190 = vmatpush1.msra.mxu0 %v1189
    %1191 = vmatprep.subr.mxu0 0.0
    %v1192 = vand.u32 %v104, 4294901760
    %1193 = vmatpush1.msra.mxu0 %v1192
    %1194 = vmatprep.subr.mxu0 0.0
    %v1195 = vand.u32 %v105, 4294901760
    %1196 = vmatpush1.msra.mxu0 %v1195
    %1197 = vmatprep.subr.mxu0 0.0
    %1198 = vmatpush1.msra.mxu0 0.0
    %1199 = vmatprep.subr.mxu0 0.0
    %1200 = vmatpush1.msra.mxu0 0.0
    %1201 = vmatprep.subr.mxu0 0.0
    %1202 = vmatpush1.msra.mxu0 0.0
    %1203 = vmatprep.subr.mxu0 0.0
    %1204 = vmatpush1.msra.mxu0 0.0
    %1205 = vmatprep.subr.mxu0 0.0
    %1206 = vmatpush1.msra.mxu0 0.0
    %1207 = vmatprep.subr.mxu0 0.0
    %1208 = vmatpush1.msra.mxu0 0.0
    %1209 = vmatprep.subr.mxu0 0.0
    %1210 = vmatpush1.msra.mxu0 0.0
    %1211 = vmatprep.subr.mxu0 0.0
    %1212 = vmatpush1.msra.mxu0 0.0
    %1213 = vmatprep.subr.mxu0 0.0
    %1214 = vmatpush1.msra.mxu0 0.0
    %1215 = vmatprep.subr.mxu0 0.0
    %1216 = vmatpush1.msra.mxu0 0.0
    %1217 = vmatprep.subr.mxu0 0.0
    %1218 = vmatpush1.msra.mxu0 0.0
    %1219 = vmatprep.subr.mxu0 0.0
    %1220 = vmatpush1.msra.mxu0 0.0
    %1221 = vmatprep.subr.mxu0 0.0
    %1222 = vmatpush1.msra.mxu0 0.0
    %1223 = vmatprep.subr.mxu0 0.0
    %1224 = vmatpush1.msra.mxu0 0.0
    %1225 = vmatprep.subr.mxu0 0.0
    %1226 = vmatpush1.msra.mxu0 0.0
    %1227 = vmatprep.subr.mxu0 0.0
    %1228 = vmatpush1.msra.mxu0 0.0
    %1229 = vmatprep.mubr.f32.mxu0 0.0
    %v1230 = vand.u32 %v1148, 4294901760
    %v1231 = vsub.f32 %v1148, %v1230
    %v1232 = vand.u32 %v1231, 4294901760
    %v1233 = vsub.f32 %v1231, %v1232
    %v1234 = vand.u32 %v1233, 4294901760
    %1235 = vmatmul.mubr.f32.gmra.mrb[0].mxu0 %v1234
    %v1236 = vpop.f32.mrb[0].mxu0
    %v1237 = vadd.f32 0.0, %v1236
    %v1238 = vpop.f32.mrb[0].mxu0
    %1239 = vdwg.mxu0
    %1240 = vmatprep.subr.mxu0 0.0
    %v1241 = vand.u32 %v90, 4294901760
    %v1242 = vsub.f32 %v90, %v1241
    %v1243 = vand.u32 %v1242, 4294901760
    %v1244 = vsub.f32 %v1242, %v1243
    %v1245 = vand.u32 %v1244, 4294901760
    %1246 = vmatpush1.msra.mxu0 %v1245
    %1247 = vmatprep.subr.mxu0 0.0
    %v1248 = vand.u32 %v91, 4294901760
    %v1249 = vsub.f32 %v91, %v1248
    %v1250 = vand.u32 %v1249, 4294901760
    %v1251 = vsub.f32 %v1249, %v1250
    %v1252 = vand.u32 %v1251, 4294901760
    %1253 = vmatpush1.msra.mxu0 %v1252
    %1254 = vmatprep.subr.mxu0 0.0
    %v1255 = vand.u32 %v92, 4294901760
    %v1256 = vsub.f32 %v92, %v1255
    %v1257 = vand.u32 %v1256, 4294901760
    %v1258 = vsub.f32 %v1256, %v1257
    %v1259 = vand.u32 %v1258, 4294901760
    %1260 = vmatpush1.msra.mxu0 %v1259
    %1261 = vmatprep.subr.mxu0 0.0
    %v1262 = vand.u32 %v93, 4294901760
    %v1263 = vsub.f32 %v93, %v1262
    %v1264 = vand.u32 %v1263, 4294901760
    %v1265 = vsub.f32 %v1263, %v1264
    %v1266 = vand.u32 %v1265, 4294901760
    %1267 = vmatpush1.msra.mxu0 %v1266
    %1268 = vmatprep.subr.mxu0 0.0
    %v1269 = vand.u32 %v94, 4294901760
    %v1270 = vsub.f32 %v94, %v1269
    %v1271 = vand.u32 %v1270, 4294901760
    %v1272 = vsub.f32 %v1270, %v1271
    %v1273 = vand.u32 %v1272, 4294901760
    %1274 = vmatpush1.msra.mxu0 %v1273
    %1275 = vmatprep.subr.mxu0 0.0
    %v1276 = vand.u32 %v95, 4294901760
    %v1277 = vsub.f32 %v95, %v1276
    %v1278 = vand.u32 %v1277, 4294901760
    %v1279 = vsub.f32 %v1277, %v1278
    %v1280 = vand.u32 %v1279, 4294901760
    %1281 = vmatpush1.msra.mxu0 %v1280
    %1282 = vmatprep.subr.mxu0 0.0
    %v1283 = vand.u32 %v96, 4294901760
    %v1284 = vsub.f32 %v96, %v1283
    %v1285 = vand.u32 %v1284, 4294901760
    %v1286 = vsub.f32 %v1284, %v1285
    %v1287 = vand.u32 %v1286, 4294901760
    %1288 = vmatpush1.msra.mxu0 %v1287
    %1289 = vmatprep.subr.mxu0 0.0
    %v1290 = vand.u32 %v97, 4294901760
    %v1291 = vsub.f32 %v97, %v1290
    %v1292 = vand.u32 %v1291, 4294901760
    %v1293 = vsub.f32 %v1291, %v1292
    %v1294 = vand.u32 %v1293, 4294901760
    %1295 = vmatpush1.msra.mxu0 %v1294
    %1296 = vmatprep.subr.mxu0 0.0
    %v1297 = vand.u32 %v98, 4294901760
    %v1298 = vsub.f32 %v98, %v1297
    %v1299 = vand.u32 %v1298, 4294901760
    %v1300 = vsub.f32 %v1298, %v1299
    %v1301 = vand.u32 %v1300, 4294901760
    %1302 = vmatpush1.msra.mxu0 %v1301
    %1303 = vmatprep.subr.mxu0 0.0
    %v1304 = vand.u32 %v99, 4294901760
    %v1305 = vsub.f32 %v99, %v1304
    %v1306 = vand.u32 %v1305, 4294901760
    %v1307 = vsub.f32 %v1305, %v1306
    %v1308 = vand.u32 %v1307, 4294901760
    %1309 = vmatpush1.msra.mxu0 %v1308
    %1310 = vmatprep.subr.mxu0 0.0
    %v1311 = vand.u32 %v100, 4294901760
    %v1312 = vsub.f32 %v100, %v1311
    %v1313 = vand.u32 %v1312, 4294901760
    %v1314 = vsub.f32 %v1312, %v1313
    %v1315 = vand.u32 %v1314, 4294901760
    %1316 = vmatpush1.msra.mxu0 %v1315
    %1317 = vmatprep.subr.mxu0 0.0
    %v1318 = vand.u32 %v101, 4294901760
    %v1319 = vsub.f32 %v101, %v1318
    %v1320 = vand.u32 %v1319, 4294901760
    %v1321 = vsub.f32 %v1319, %v1320
    %v1322 = vand.u32 %v1321, 4294901760
    %1323 = vmatpush1.msra.mxu0 %v1322
    %1324 = vmatprep.subr.mxu0 0.0
    %v1325 = vand.u32 %v102, 4294901760
    %v1326 = vsub.f32 %v102, %v1325
    %v1327 = vand.u32 %v1326, 4294901760
    %v1328 = vsub.f32 %v1326, %v1327
    %v1329 = vand.u32 %v1328, 4294901760
    %1330 = vmatpush1.msra.mxu0 %v1329
    %1331 = vmatprep.subr.mxu0 0.0
    %v1332 = vand.u32 %v103, 4294901760
    %v1333 = vsub.f32 %v103, %v1332
    %v1334 = vand.u32 %v1333, 4294901760
    %v1335 = vsub.f32 %v1333, %v1334
    %v1336 = vand.u32 %v1335, 4294901760
    %1337 = vmatpush1.msra.mxu0 %v1336
    %1338 = vmatprep.subr.mxu0 0.0
    %v1339 = vand.u32 %v104, 4294901760
    %v1340 = vsub.f32 %v104, %v1339
    %v1341 = vand.u32 %v1340, 4294901760
    %v1342 = vsub.f32 %v1340, %v1341
    %v1343 = vand.u32 %v1342, 4294901760
    %1344 = vmatpush1.msra.mxu0 %v1343
    %1345 = vmatprep.subr.mxu0 0.0
    %v1346 = vand.u32 %v105, 4294901760
    %v1347 = vsub.f32 %v105, %v1346
    %v1348 = vand.u32 %v1347, 4294901760
    %v1349 = vsub.f32 %v1347, %v1348
    %v1350 = vand.u32 %v1349, 4294901760
    %1351 = vmatpush1.msra.mxu0 %v1350
    %1352 = vmatprep.subr.mxu0 0.0
    %1353 = vmatpush1.msra.mxu0 0.0
    %1354 = vmatprep.subr.mxu0 0.0
    %1355 = vmatpush1.msra.mxu0 0.0
    %1356 = vmatprep.subr.mxu0 0.0
    %1357 = vmatpush1.msra.mxu0 0.0
    %1358 = vmatprep.subr.mxu0 0.0
    %1359 = vmatpush1.msra.mxu0 0.0
    %1360 = vmatprep.subr.mxu0 0.0
    %1361 = vmatpush1.msra.mxu0 0.0
    %1362 = vmatprep.subr.mxu0 0.0
    %1363 = vmatpush1.msra.mxu0 0.0
    %1364 = vmatprep.subr.mxu0 0.0
    %1365 = vmatpush1.msra.mxu0 0.0
    %1366 = vmatprep.subr.mxu0 0.0
    %1367 = vmatpush1.msra.mxu0 0.0
    %1368 = vmatprep.subr.mxu0 0.0
    %1369 = vmatpush1.msra.mxu0 0.0
    %1370 = vmatprep.subr.mxu0 0.0
    %1371 = vmatpush1.msra.mxu0 0.0
    %1372 = vmatprep.subr.mxu0 0.0
    %1373 = vmatpush1.msra.mxu0 0.0
    %1374 = vmatprep.subr.mxu0 0.0
    %1375 = vmatpush1.msra.mxu0 0.0
    %1376 = vmatprep.subr.mxu0 0.0
    %1377 = vmatpush1.msra.mxu0 0.0
    %1378 = vmatprep.subr.mxu0 0.0
    %1379 = vmatpush1.msra.mxu0 0.0
    %1380 = vmatprep.subr.mxu0 0.0
    %1381 = vmatpush1.msra.mxu0 0.0
    %1382 = vmatprep.subr.mxu0 0.0
    %1383 = vmatpush1.msra.mxu0 0.0
    %1384 = vmatprep.mubr.f32.mxu0 0.0
    %v1385 = vand.u32 %v1148, 4294901760
    %1386 = vmatmul.mubr.f32.gmra.mrb[0].mxu0 %v1385
    %v1387 = vpop.f32.mrb[0].mxu0
    %v1388 = vadd.f32 %v1237, %v1387
    %v1389 = vpop.f32.mrb[0].mxu0
    %1390 = vdwg.mxu0
    %1391 = vmatprep.subr.mxu0 0.0
    %v1392 = vand.u32 %v90, 4294901760
    %v1393 = vsub.f32 %v90, %v1392
    %1394 = vmatpush1.msra.mxu0 %v1393
    %1395 = vmatprep.subr.mxu0 0.0
    %v1396 = vand.u32 %v91, 4294901760
    %v1397 = vsub.f32 %v91, %v1396
    %1398 = vmatpush1.msra.mxu0 %v1397
    %1399 = vmatprep.subr.mxu0 0.0
    %v1400 = vand.u32 %v92, 4294901760
    %v1401 = vsub.f32 %v92, %v1400
    %1402 = vmatpush1.msra.mxu0 %v1401
    %1403 = vmatprep.subr.mxu0 0.0
    %v1404 = vand.u32 %v93, 4294901760
    %v1405 = vsub.f32 %v93, %v1404
    %1406 = vmatpush1.msra.mxu0 %v1405
    %1407 = vmatprep.subr.mxu0 0.0
    %v1408 = vand.u32 %v94, 4294901760
    %v1409 = vsub.f32 %v94, %v1408
    %1410 = vmatpush1.msra.mxu0 %v1409
    %1411 = vmatprep.subr.mxu0 0.0
    %v1412 = vand.u32 %v95, 4294901760
    %v1413 = vsub.f32 %v95, %v1412
    %1414 = vmatpush1.msra.mxu0 %v1413
    %1415 = vmatprep.subr.mxu0 0.0
    %v1416 = vand.u32 %v96, 4294901760
    %v1417 = vsub.f32 %v96, %v1416
    %1418 = vmatpush1.msra.mxu0 %v1417
    %1419 = vmatprep.subr.mxu0 0.0
    %v1420 = vand.u32 %v97, 4294901760
    %v1421 = vsub.f32 %v97, %v1420
    %1422 = vmatpush1.msra.mxu0 %v1421
    %1423 = vmatprep.subr.mxu0 0.0
    %v1424 = vand.u32 %v98, 4294901760
    %v1425 = vsub.f32 %v98, %v1424
    %1426 = vmatpush1.msra.mxu0 %v1425
    %1427 = vmatprep.subr.mxu0 0.0
    %v1428 = vand.u32 %v99, 4294901760
    %v1429 = vsub.f32 %v99, %v1428
    %1430 = vmatpush1.msra.mxu0 %v1429
    %1431 = vmatprep.subr.mxu0 0.0
    %v1432 = vand.u32 %v100, 4294901760
    %v1433 = vsub.f32 %v100, %v1432
    %1434 = vmatpush1.msra.mxu0 %v1433
    %1435 = vmatprep.subr.mxu0 0.0
    %v1436 = vand.u32 %v101, 4294901760
    %v1437 = vsub.f32 %v101, %v1436
    %1438 = vmatpush1.msra.mxu0 %v1437
    %1439 = vmatprep.subr.mxu0 0.0
    %v1440 = vand.u32 %v102, 4294901760
    %v1441 = vsub.f32 %v102, %v1440
    %1442 = vmatpush1.msra.mxu0 %v1441
    %1443 = vmatprep.subr.mxu0 0.0
    %v1444 = vand.u32 %v103, 4294901760
    %v1445 = vsub.f32 %v103, %v1444
    %1446 = vmatpush1.msra.mxu0 %v1445
    %1447 = vmatprep.subr.mxu0 0.0
    %v1448 = vand.u32 %v104, 4294901760
    %v1449 = vsub.f32 %v104, %v1448
    %1450 = vmatpush1.msra.mxu0 %v1449
    %1451 = vmatprep.subr.mxu0 0.0
    %v1452 = vand.u32 %v105, 4294901760
    %v1453 = vsub.f32 %v105, %v1452
    %1454 = vmatpush1.msra.mxu0 %v1453
    %1455 = vmatprep.subr.mxu0 0.0
    %1456 = vmatpush1.msra.mxu0 0.0
    %1457 = vmatprep.subr.mxu0 0.0
    %1458 = vmatpush1.msra.mxu0 0.0
    %1459 = vmatprep.subr.mxu0 0.0
    %1460 = vmatpush1.msra.mxu0 0.0
    %1461 = vmatprep.subr.mxu0 0.0
    %1462 = vmatpush1.msra.mxu0 0.0
    %1463 = vmatprep.subr.mxu0 0.0
    %1464 = vmatpush1.msra.mxu0 0.0
    %1465 = vmatprep.subr.mxu0 0.0
    %1466 = vmatpush1.msra.mxu0 0.0
    %1467 = vmatprep.subr.mxu0 0.0
    %1468 = vmatpush1.msra.mxu0 0.0
    %1469 = vmatprep.subr.mxu0 0.0
    %1470 = vmatpush1.msra.mxu0 0.0
    %1471 = vmatprep.subr.mxu0 0.0
    %1472 = vmatpush1.msra.mxu0 0.0
    %1473 = vmatprep.subr.mxu0 0.0
    %1474 = vmatpush1.msra.mxu0 0.0
    %1475 = vmatprep.subr.mxu0 0.0
    %1476 = vmatpush1.msra.mxu0 0.0
    %1477 = vmatprep.subr.mxu0 0.0
    %1478 = vmatpush1.msra.mxu0 0.0
    %1479 = vmatprep.subr.mxu0 0.0
    %1480 = vmatpush1.msra.mxu0 0.0
    %1481 = vmatprep.subr.mxu0 0.0
    %1482 = vmatpush1.msra.mxu0 0.0
    %1483 = vmatprep.subr.mxu0 0.0
    %1484 = vmatpush1.msra.mxu0 0.0
    %1485 = vmatprep.subr.mxu0 0.0
    %1486 = vmatpush1.msra.mxu0 0.0
    %1487 = vmatprep.mubr.f32.mxu0 0.0
    %v1488 = vand.u32 %v1148, 4294901760
    %v1489 = vsub.f32 %v1148, %v1488
    %1490 = vmatmul.mubr.f32.gmra.mrb[0].mxu0 %v1489
    %v1491 = vpop.f32.mrb[0].mxu0
    %v1492 = vadd.f32 %v1388, %v1491
    %v1493 = vpop.f32.mrb[0].mxu0
    %1494 = vdwg.mxu0
    %1495 = vmatprep.subr.mxu0 0.0
    %v1496 = vand.u32 %v90, 4294901760
    %1497 = vmatpush1.msra.mxu0 %v1496
    %1498 = vmatprep.subr.mxu0 0.0
    %v1499 = vand.u32 %v91, 4294901760
    %1500 = vmatpush1.msra.mxu0 %v1499
    %1501 = vmatprep.subr.mxu0 0.0
    %v1502 = vand.u32 %v92, 4294901760
    %1503 = vmatpush1.msra.mxu0 %v1502
    %1504 = vmatprep.subr.mxu0 0.0
    %v1505 = vand.u32 %v93, 4294901760
    %1506 = vmatpush1.msra.mxu0 %v1505
    %1507 = vmatprep.subr.mxu0 0.0
    %v1508 = vand.u32 %v94, 4294901760
    %1509 = vmatpush1.msra.mxu0 %v1508
    %1510 = vmatprep.subr.mxu0 0.0
    %v1511 = vand.u32 %v95, 4294901760
    %1512 = vmatpush1.msra.mxu0 %v1511
    %1513 = vmatprep.subr.mxu0 0.0
    %v1514 = vand.u32 %v96, 4294901760
    %1515 = vmatpush1.msra.mxu0 %v1514
    %1516 = vmatprep.subr.mxu0 0.0
    %v1517 = vand.u32 %v97, 4294901760
    %1518 = vmatpush1.msra.mxu0 %v1517
    %1519 = vmatprep.subr.mxu0 0.0
    %v1520 = vand.u32 %v98, 4294901760
    %1521 = vmatpush1.msra.mxu0 %v1520
    %1522 = vmatprep.subr.mxu0 0.0
    %v1523 = vand.u32 %v99, 4294901760
    %1524 = vmatpush1.msra.mxu0 %v1523
    %1525 = vmatprep.subr.mxu0 0.0
    %v1526 = vand.u32 %v100, 4294901760
    %1527 = vmatpush1.msra.mxu0 %v1526
    %1528 = vmatprep.subr.mxu0 0.0
    %v1529 = vand.u32 %v101, 4294901760
    %1530 = vmatpush1.msra.mxu0 %v1529
    %1531 = vmatprep.subr.mxu0 0.0
    %v1532 = vand.u32 %v102, 4294901760
    %1533 = vmatpush1.msra.mxu0 %v1532
    %1534 = vmatprep.subr.mxu0 0.0
    %v1535 = vand.u32 %v103, 4294901760
    %1536 = vmatpush1.msra.mxu0 %v1535
    %1537 = vmatprep.subr.mxu0 0.0
    %v1538 = vand.u32 %v104, 4294901760
    %1539 = vmatpush1.msra.mxu0 %v1538
    %1540 = vmatprep.subr.mxu0 0.0
    %v1541 = vand.u32 %v105, 4294901760
    %1542 = vmatpush1.msra.mxu0 %v1541
    %1543 = vmatprep.subr.mxu0 0.0
    %1544 = vmatpush1.msra.mxu0 0.0
    %1545 = vmatprep.subr.mxu0 0.0
    %1546 = vmatpush1.msra.mxu0 0.0
    %1547 = vmatprep.subr.mxu0 0.0
    %1548 = vmatpush1.msra.mxu0 0.0
    %1549 = vmatprep.subr.mxu0 0.0
    %1550 = vmatpush1.msra.mxu0 0.0
    %1551 = vmatprep.subr.mxu0 0.0
    %1552 = vmatpush1.msra.mxu0 0.0
    %1553 = vmatprep.subr.mxu0 0.0
    %1554 = vmatpush1.msra.mxu0 0.0
    %1555 = vmatprep.subr.mxu0 0.0
    %1556 = vmatpush1.msra.mxu0 0.0
    %1557 = vmatprep.subr.mxu0 0.0
    %1558 = vmatpush1.msra.mxu0 0.0
    %1559 = vmatprep.subr.mxu0 0.0
    %1560 = vmatpush1.msra.mxu0 0.0
    %1561 = vmatprep.subr.mxu0 0.0
    %1562 = vmatpush1.msra.mxu0 0.0
    %1563 = vmatprep.subr.mxu0 0.0
    %1564 = vmatpush1.msra.mxu0 0.0
    %1565 = vmatprep.subr.mxu0 0.0
    %1566 = vmatpush1.msra.mxu0 0.0
    %1567 = vmatprep.subr.mxu0 0.0
    %1568 = vmatpush1.msra.mxu0 0.0
    %1569 = vmatprep.subr.mxu0 0.0
    %1570 = vmatpush1.msra.mxu0 0.0
    %1571 = vmatprep.subr.mxu0 0.0
    %1572 = vmatpush1.msra.mxu0 0.0
    %1573 = vmatprep.subr.mxu0 0.0
    %1574 = vmatpush1.msra.mxu0 0.0
    %1575 = vmatprep.mubr.f32.mxu0 0.0
    %v1576 = vand.u32 %v1148, 4294901760
    %v1577 = vsub.f32 %v1148, %v1576
    %v1578 = vand.u32 %v1577, 4294901760
    %1579 = vmatmul.mubr.f32.gmra.mrb[0].mxu0 %v1578
    %v1580 = vpop.f32.mrb[0].mxu0
    %v1581 = vadd.f32 %v1492, %v1580
    %v1582 = vpop.f32.mrb[0].mxu0
    %1583 = vdwg.mxu0
    %1584 = vmatprep.subr.mxu0 0.0
    %v1585 = vand.u32 %v90, 4294901760
    %v1586 = vsub.f32 %v90, %v1585
    %v1587 = vand.u32 %v1586, 4294901760
    %1588 = vmatpush1.msra.mxu0 %v1587
    %1589 = vmatprep.subr.mxu0 0.0
    %v1590 = vand.u32 %v91, 4294901760
    %v1591 = vsub.f32 %v91, %v1590
    %v1592 = vand.u32 %v1591, 4294901760
    %1593 = vmatpush1.msra.mxu0 %v1592
    %1594 = vmatprep.subr.mxu0 0.0
    %v1595 = vand.u32 %v92, 4294901760
    %v1596 = vsub.f32 %v92, %v1595
    %v1597 = vand.u32 %v1596, 4294901760
    %1598 = vmatpush1.msra.mxu0 %v1597
    %1599 = vmatprep.subr.mxu0 0.0
    %v1600 = vand.u32 %v93, 4294901760
    %v1601 = vsub.f32 %v93, %v1600
    %v1602 = vand.u32 %v1601, 4294901760
    %1603 = vmatpush1.msra.mxu0 %v1602
    %1604 = vmatprep.subr.mxu0 0.0
    %v1605 = vand.u32 %v94, 4294901760
    %v1606 = vsub.f32 %v94, %v1605
    %v1607 = vand.u32 %v1606, 4294901760
    %1608 = vmatpush1.msra.mxu0 %v1607
    %1609 = vmatprep.subr.mxu0 0.0
    %v1610 = vand.u32 %v95, 4294901760
    %v1611 = vsub.f32 %v95, %v1610
    %v1612 = vand.u32 %v1611, 4294901760
    %1613 = vmatpush1.msra.mxu0 %v1612
    %1614 = vmatprep.subr.mxu0 0.0
    %v1615 = vand.u32 %v96, 4294901760
    %v1616 = vsub.f32 %v96, %v1615
    %v1617 = vand.u32 %v1616, 4294901760
    %1618 = vmatpush1.msra.mxu0 %v1617
    %1619 = vmatprep.subr.mxu0 0.0
    %v1620 = vand.u32 %v97, 4294901760
    %v1621 = vsub.f32 %v97, %v1620
    %v1622 = vand.u32 %v1621, 4294901760
    %1623 = vmatpush1.msra.mxu0 %v1622
    %1624 = vmatprep.subr.mxu0 0.0
    %v1625 = vand.u32 %v98, 4294901760
    %v1626 = vsub.f32 %v98, %v1625
    %v1627 = vand.u32 %v1626, 4294901760
    %1628 = vmatpush1.msra.mxu0 %v1627
    %1629 = vmatprep.subr.mxu0 0.0
    %v1630 = vand.u32 %v99, 4294901760
    %v1631 = vsub.f32 %v99, %v1630
    %v1632 = vand.u32 %v1631, 4294901760
    %1633 = vmatpush1.msra.mxu0 %v1632
    %1634 = vmatprep.subr.mxu0 0.0
    %v1635 = vand.u32 %v100, 4294901760
    %v1636 = vsub.f32 %v100, %v1635
    %v1637 = vand.u32 %v1636, 4294901760
    %1638 = vmatpush1.msra.mxu0 %v1637
    %1639 = vmatprep.subr.mxu0 0.0
    %v1640 = vand.u32 %v101, 4294901760
    %v1641 = vsub.f32 %v101, %v1640
    %v1642 = vand.u32 %v1641, 4294901760
    %1643 = vmatpush1.msra.mxu0 %v1642
    %1644 = vmatprep.subr.mxu0 0.0
    %v1645 = vand.u32 %v102, 4294901760
    %v1646 = vsub.f32 %v102, %v1645
    %v1647 = vand.u32 %v1646, 4294901760
    %1648 = vmatpush1.msra.mxu0 %v1647
    %1649 = vmatprep.subr.mxu0 0.0
    %v1650 = vand.u32 %v103, 4294901760
    %v1651 = vsub.f32 %v103, %v1650
    %v1652 = vand.u32 %v1651, 4294901760
    %1653 = vmatpush1.msra.mxu0 %v1652
    %1654 = vmatprep.subr.mxu0 0.0
    %v1655 = vand.u32 %v104, 4294901760
    %v1656 = vsub.f32 %v104, %v1655
    %v1657 = vand.u32 %v1656, 4294901760
    %1658 = vmatpush1.msra.mxu0 %v1657
    %1659 = vmatprep.subr.mxu0 0.0
    %v1660 = vand.u32 %v105, 4294901760
    %v1661 = vsub.f32 %v105, %v1660
    %v1662 = vand.u32 %v1661, 4294901760
    %1663 = vmatpush1.msra.mxu0 %v1662
    %1664 = vmatprep.subr.mxu0 0.0
    %1665 = vmatpush1.msra.mxu0 0.0
    %1666 = vmatprep.subr.mxu0 0.0
    %1667 = vmatpush1.msra.mxu0 0.0
    %1668 = vmatprep.subr.mxu0 0.0
    %1669 = vmatpush1.msra.mxu0 0.0
    %1670 = vmatprep.subr.mxu0 0.0
    %1671 = vmatpush1.msra.mxu0 0.0
    %1672 = vmatprep.subr.mxu0 0.0
    %1673 = vmatpush1.msra.mxu0 0.0
    %1674 = vmatprep.subr.mxu0 0.0
    %1675 = vmatpush1.msra.mxu0 0.0
    %1676 = vmatprep.subr.mxu0 0.0
    %1677 = vmatpush1.msra.mxu0 0.0
    %1678 = vmatprep.subr.mxu0 0.0
    %1679 = vmatpush1.msra.mxu0 0.0
    %1680 = vmatprep.subr.mxu0 0.0
    %1681 = vmatpush1.msra.mxu0 0.0
    %1682 = vmatprep.subr.mxu0 0.0
    %1683 = vmatpush1.msra.mxu0 0.0
    %1684 = vmatprep.subr.mxu0 0.0
    %1685 = vmatpush1.msra.mxu0 0.0
    %1686 = vmatprep.subr.mxu0 0.0
    %1687 = vmatpush1.msra.mxu0 0.0
    %1688 = vmatprep.subr.mxu0 0.0
    %1689 = vmatpush1.msra.mxu0 0.0
    %1690 = vmatprep.subr.mxu0 0.0
    %1691 = vmatpush1.msra.mxu0 0.0
    %1692 = vmatprep.subr.mxu0 0.0
    %1693 = vmatpush1.msra.mxu0 0.0
    %1694 = vmatprep.subr.mxu0 0.0
    %1695 = vmatpush1.msra.mxu0 0.0
    %1696 = vmatprep.mubr.f32.mxu0 0.0
    %v1697 = vand.u32 %v1148, 4294901760
    %1698 = vmatmul.mubr.f32.gmra.mrb[0].mxu0 %v1697
    %v1699 = vpop.f32.mrb[0].mxu0
    %v1700 = vadd.f32 %v1581, %v1699
    %v1701 = vpop.f32.mrb[0].mxu0
    %1702 = vdwg.mxu0
    %1703 = vmatprep.subr.mxu0 0.0
    %v1704 = vand.u32 %v90, 4294901760
    %1705 = vmatpush1.msra.mxu0 %v1704
    %1706 = vmatprep.subr.mxu0 0.0
    %v1707 = vand.u32 %v91, 4294901760
    %1708 = vmatpush1.msra.mxu0 %v1707
    %1709 = vmatprep.subr.mxu0 0.0
    %v1710 = vand.u32 %v92, 4294901760
    %1711 = vmatpush1.msra.mxu0 %v1710
    %1712 = vmatprep.subr.mxu0 0.0
    %v1713 = vand.u32 %v93, 4294901760
    %1714 = vmatpush1.msra.mxu0 %v1713
    %1715 = vmatprep.subr.mxu0 0.0
    %v1716 = vand.u32 %v94, 4294901760
    %1717 = vmatpush1.msra.mxu0 %v1716
    %1718 = vmatprep.subr.mxu0 0.0
    %v1719 = vand.u32 %v95, 4294901760
    %1720 = vmatpush1.msra.mxu0 %v1719
    %1721 = vmatprep.subr.mxu0 0.0
    %v1722 = vand.u32 %v96, 4294901760
    %1723 = vmatpush1.msra.mxu0 %v1722
    %1724 = vmatprep.subr.mxu0 0.0
    %v1725 = vand.u32 %v97, 4294901760
    %1726 = vmatpush1.msra.mxu0 %v1725
    %1727 = vmatprep.subr.mxu0 0.0
    %v1728 = vand.u32 %v98, 4294901760
    %1729 = vmatpush1.msra.mxu0 %v1728
    %1730 = vmatprep.subr.mxu0 0.0
    %v1731 = vand.u32 %v99, 4294901760
    %1732 = vmatpush1.msra.mxu0 %v1731
    %1733 = vmatprep.subr.mxu0 0.0
    %v1734 = vand.u32 %v100, 4294901760
    %1735 = vmatpush1.msra.mxu0 %v1734
    %1736 = vmatprep.subr.mxu0 0.0
    %v1737 = vand.u32 %v101, 4294901760
    %1738 = vmatpush1.msra.mxu0 %v1737
    %1739 = vmatprep.subr.mxu0 0.0
    %v1740 = vand.u32 %v102, 4294901760
    %1741 = vmatpush1.msra.mxu0 %v1740
    %1742 = vmatprep.subr.mxu0 0.0
    %v1743 = vand.u32 %v103, 4294901760
    %1744 = vmatpush1.msra.mxu0 %v1743
    %1745 = vmatprep.subr.mxu0 0.0
    %v1746 = vand.u32 %v104, 4294901760
    %1747 = vmatpush1.msra.mxu0 %v1746
    %1748 = vmatprep.subr.mxu0 0.0
    %v1749 = vand.u32 %v105, 4294901760
    %1750 = vmatpush1.msra.mxu0 %v1749
    %1751 = vmatprep.subr.mxu0 0.0
    %1752 = vmatpush1.msra.mxu0 0.0
    %1753 = vmatprep.subr.mxu0 0.0
    %1754 = vmatpush1.msra.mxu0 0.0
    %1755 = vmatprep.subr.mxu0 0.0
    %1756 = vmatpush1.msra.mxu0 0.0
    %1757 = vmatprep.subr.mxu0 0.0
    %1758 = vmatpush1.msra.mxu0 0.0
    %1759 = vmatprep.subr.mxu0 0.0
    %1760 = vmatpush1.msra.mxu0 0.0
    %1761 = vmatprep.subr.mxu0 0.0
    %1762 = vmatpush1.msra.mxu0 0.0
    %1763 = vmatprep.subr.mxu0 0.0
    %1764 = vmatpush1.msra.mxu0 0.0
    %1765 = vmatprep.subr.mxu0 0.0
    %1766 = vmatpush1.msra.mxu0 0.0
    %1767 = vmatprep.subr.mxu0 0.0
    %1768 = vmatpush1.msra.mxu0 0.0
    %1769 = vmatprep.subr.mxu0 0.0
    %1770 = vmatpush1.msra.mxu0 0.0
    %1771 = vmatprep.subr.mxu0 0.0
    %1772 = vmatpush1.msra.mxu0 0.0
    %1773 = vmatprep.subr.mxu0 0.0
    %1774 = vmatpush1.msra.mxu0 0.0
    %1775 = vmatprep.subr.mxu0 0.0
    %1776 = vmatpush1.msra.mxu0 0.0
    %1777 = vmatprep.subr.mxu0 0.0
    %1778 = vmatpush1.msra.mxu0 0.0
    %1779 = vmatprep.subr.mxu0 0.0
    %1780 = vmatpush1.msra.mxu0 0.0
    %1781 = vmatprep.subr.mxu0 0.0
    %1782 = vmatpush1.msra.mxu0 0.0
    %1783 = vmatprep.mubr.f32.mxu0 0.0
    %v1784 = vand.u32 %v1148, 4294901760
    %1785 = vmatmul.mubr.f32.gmra.mrb[0].mxu0 %v1784
    %v1786 = vpop.f32.mrb[0].mxu0
    %v1787 = vadd.f32 %v1700, %v1786
    %v1788 = vpop.f32.mrb[0].mxu0
    %1789 = vdwg.mxu0
    %v1790 = vmul.f32 %v1130, %v1130
    %v1791 = vsub.f32 %v1787, %v1790
    %v1792 = vadd.f32 %v1791, 1e-05
    %v1793 = vrsqrt.pop %v1792
    %v1794 = vmul.f32 %v88, %v1793
    %v1795 = vmul.f32 %v1130, %v1794
    %v1796 = vsub.f32 %v89, %v1795
    %v1798 = vlaneseq
    %v1799 = vshrl.u32 %v1798, 7
    %v1800 = vsub.s32 0, %v1799
    %v1801 = vrot.slane %v1794, %v1800
    %v1803 = vmul.f32 %v476, %v1801
    %v1804 = vmul.f32 %v477, %v1801
    %v1805 = vmul.f32 %v478, %v1801
    %v1806 = vmul.f32 %v479, %v1801
    %v1807 = vmul.f32 %v480, %v1801
    %v1809 = vlaneseq
    %v1810 = vshrl.u32 %v1809, 7
    %v1811 = vsub.s32 0, %v1810
    %v1812 = vrot.slane %v1796, %v1811
    %v1814 = vadd.f32 %v1803, %v1812
    %v1815 = vadd.f32 %v1804, %v1812
    %v1816 = vadd.f32 %v1805, %v1812
    %v1817 = vadd.f32 %v1806, %v1812
    %v1818 = vadd.f32 %v1807, %v1812
    %v1819 = vmax.f32 %v1814, 0.0
    %v1820 = vmax.f32 %v1815, 0.0
    %v1821 = vmax.f32 %v1816, 0.0
    %v1822 = vmax.f32 %v1817, 0.0
    %v1823 = vmax.f32 %v1818, 0.0
    %v1824 = vmul.f32 %v1819, %v454
    %v1825 = vmul.f32 %v1820, %v459
    %v1826 = vmul.f32 %v1821, %v464
    %v1827 = vmul.f32 %v1822, %v469
    %v1828 = vmul.f32 %v1823, %v474
    %1829 = vst [vmem:[#allocation2] sm:$0xff] 0.0
    %1830 = vst [vmem:[#allocation2 + $0x28] sm:$0xff] 0.0
    %1831 = vst [vmem:[#allocation2 + $0x30] sm:$0xf] 0.0
    %1832 = vst [vmem:[#allocation2 + $0x8] sm:$0xff] %v1824
    %1833 = vst [vmem:[#allocation2 + $0x10] sm:$0xff] %v1825
    %1834 = vst [vmem:[#allocation2 + $0x18] sm:$0xff] %v1826
    %1835 = vst [vmem:[#allocation2 + $0x20] sm:$0xff] %v1827
    %1836 = vst [vmem:[#allocation2 + $0x28] sm:$0xf] %v1828
    %v1837 = vld [vmem:[#allocation2 + $0x7] sm:$0xff]
    %v1838 = vld [vmem:[#allocation2 + $0xf] sm:$0xff]
    %v1839 = vld [vmem:[#allocation2 + $0x17] sm:$0xff]
    %v1840 = vld [vmem:[#allocation2 + $0x1f] sm:$0xff]
    %v1841 = vld [vmem:[#allocation2 + $0x27] sm:$0xf]
    %v1842 = vpack.c.bf16 %v1838, %v1837
    %v1843 = vpack.c.bf16 %v1840, %v1839
    %v1844 = vpack.c.bf16 %v1841, %v1841
    %v1845 = vld [vmem:[#allocation8] sm:$0xf]
    %v1846 = vld [vmem:[#allocation8 + $0x4] sm:$0xf]
    %v1847 = vld [vmem:[#allocation8 + $0x8] sm:$0xf]
    %v1848 = vld [vmem:[#allocation8 + $0xc] sm:$0xf]
    %v1849 = vld [vmem:[#allocation8 + $0x10] sm:$0xf]
    %v1850 = vld [vmem:[#allocation8 + $0x14] sm:$0xf]
    %v1851 = vld [vmem:[#allocation8 + $0x18] sm:$0xf]
    %v1852 = vld [vmem:[#allocation8 + $0x1c] sm:$0xf]
    %v1853 = vld [vmem:[#allocation8 + $0x20] sm:$0xf]
    %v1854 = vld [vmem:[#allocation8 + $0x24] sm:$0xf]
    %v1855 = vld [vmem:[#allocation8 + $0x28] sm:$0xf]
    %v1856 = vld [vmem:[#allocation8 + $0x2c] sm:$0xf]
    %v1857 = vld [vmem:[#allocation8 + $0x30] sm:$0xf]
    %v1858 = vld [vmem:[#allocation8 + $0x34] sm:$0xf]
    %v1859 = vld [vmem:[#allocation8 + $0x38] sm:$0xf]
    %v1860 = vld [vmem:[#allocation8 + $0x3c] sm:$0xf]
    %v1861 = vld [vmem:[#allocation2 + $0x8] sm:$0xff]
    %v1862 = vld [vmem:[#allocation2 + $0x10] sm:$0xff]
    %v1863 = vld [vmem:[#allocation2 + $0x18] sm:$0xff]
    %v1864 = vld [vmem:[#allocation2 + $0x20] sm:$0xff]
    %v1865 = vld [vmem:[#allocation2 + $0x28] sm:$0xf]
    %v1866 = vpack.c.bf16 %v1862, %v1861
    %v1867 = vpack.c.bf16 %v1864, %v1863
    %v1868 = vpack.c.bf16 %v1865, %v1865
    %s1869 = scalar_lea.vmem [#allocation8], 64
    %v1870 = vld [vmem:[%s1869] sm:$0xf]
    %v1871 = vld [vmem:[%s1869 + $0x4] sm:$0xf]
    %v1872 = vld [vmem:[%s1869 + $0x8] sm:$0xf]
    %v1873 = vld [vmem:[%s1869 + $0xc] sm:$0xf]
    %v1874 = vld [vmem:[%s1869 + $0x10] sm:$0xf]
    %v1875 = vld [vmem:[%s1869 + $0x14] sm:$0xf]
    %v1876 = vld [vmem:[%s1869 + $0x18] sm:$0xf]
    %v1877 = vld [vmem:[%s1869 + $0x1c] sm:$0xf]
    %v1878 = vld [vmem:[%s1869 + $0x20] sm:$0xf]
    %v1879 = vld [vmem:[%s1869 + $0x24] sm:$0xf]
    %v1880 = vld [vmem:[%s1869 + $0x28] sm:$0xf]
    %v1881 = vld [vmem:[%s1869 + $0x2c] sm:$0xf]
    %v1882 = vld [vmem:[%s1869 + $0x30] sm:$0xf]
    %v1883 = vld [vmem:[%s1869 + $0x34] sm:$0xf]
    %v1884 = vld [vmem:[%s1869 + $0x38] sm:$0xf]
    %v1885 = vld [vmem:[%s1869 + $0x3c] sm:$0xf]
    %v1902 = vunpack.c.l.b16 %v1870
    %v1903 = vunpack.c.l.b16 %v1871
    %v1904 = vunpack.c.l.b16 %v1872
    %v1905 = vunpack.c.l.b16 %v1873
    %v1906 = vunpack.c.l.b16 %v1874
    %v1907 = vunpack.c.l.b16 %v1875
    %v1908 = vunpack.c.l.b16 %v1876
    %v1909 = vunpack.c.l.b16 %v1877
    %v1910 = vunpack.c.l.b16 %v1878
    %v1911 = vunpack.c.l.b16 %v1879
    %v1912 = vunpack.c.l.b16 %v1880
    %v1913 = vunpack.c.l.b16 %v1881
    %v1914 = vunpack.c.l.b16 %v1882
    %v1915 = vunpack.c.l.b16 %v1883
    %v1916 = vunpack.c.l.b16 %v1884
    %v1917 = vunpack.c.l.b16 %v1885
    %v1918 = vpack.c.b16 %v1903, %v1902
    %v1919 = vpack.c.b16 %v1905, %v1904
    %v1920 = vpack.c.b16 %v1907, %v1906
    %v1921 = vpack.c.b16 %v1909, %v1908
    %v1922 = vpack.c.b16 %v1911, %v1910
    %v1923 = vpack.c.b16 %v1913, %v1912
    %v1924 = vpack.c.b16 %v1915, %v1914
    %v1925 = vpack.c.b16 %v1917, %v1916
    %1934 = vmatprep.subr.bf16.mxu0 0
    %1935 = vmatpush1.bf16.msra.mxu0 %v1918
    %1936 = vmatprep.subr.bf16.mxu0 0
    %1937 = vmatpush1.bf16.msra.mxu0 %v1919
    %1938 = vmatprep.subr.bf16.mxu0 0
    %1939 = vmatpush1.bf16.msra.mxu0 %v1920
    %1940 = vmatprep.subr.bf16.mxu0 0
    %1941 = vmatpush1.bf16.msra.mxu0 %v1921
    %1942 = vmatprep.subr.bf16.mxu0 0
    %1943 = vmatpush1.bf16.msra.mxu0 %v1922
    %1944 = vmatprep.subr.bf16.mxu0 0
    %1945 = vmatpush1.bf16.msra.mxu0 %v1923
    %1946 = vmatprep.subr.bf16.mxu0 0
    %1947 = vmatpush1.bf16.msra.mxu0 %v1924
    %1948 = vmatprep.subr.bf16.mxu0 0
    %1949 = vmatpush1.bf16.msra.mxu0 %v1925
    %1950 = vmatprep.subr.bf16.mxu0 0
    %1951 = vmatpush1.bf16.msra.mxu0 0
    %1952 = vmatprep.subr.bf16.mxu0 0
    %1953 = vmatpush1.bf16.msra.mxu0 0
    %1954 = vmatprep.subr.bf16.mxu0 0
    %1955 = vmatpush1.bf16.msra.mxu0 0
    %1956 = vmatprep.subr.bf16.mxu0 0
    %1957 = vmatpush1.bf16.msra.mxu0 0
    %1958 = vmatprep.subr.bf16.mxu0 0
    %1959 = vmatpush1.bf16.msra.mxu0 0
    %1960 = vmatprep.subr.bf16.mxu0 0
    %1961 = vmatpush1.bf16.msra.mxu0 0
    %1962 = vmatprep.subr.bf16.mxu0 0
    %1963 = vmatpush1.bf16.msra.mxu0 0
    %1964 = vmatprep.subr.bf16.mxu0 0
    %1965 = vmatpush1.bf16.msra.mxu0 0
    %1966 = vmatprep.mubr.bf16.mxu0 0
    %1967 = vmatmul.mubr.bf16.gmra.mrb[0].mxu0 %v1866
    %v1968 = vpop.f32.mrb[0].mxu0
    %v1969 = vadd.f32 0.0, %v1968
    %v1970 = vpop.f32.mrb[0].mxu0
    %v1971 = vpop.f32.mrb[0].mxu0
    %v1972 = vadd.f32 0.0, %v1971
    %v1973 = vpop.f32.mrb[0].mxu0
    %1974 = vmatprep.mubr.bf16.mxu0 0
    %1975 = vmatmul.mubr.bf16.gmra.mrb[0].mxu0 %v1867
    %v1976 = vpop.f32.mrb[0].mxu0
    %v1977 = vadd.f32 0.0, %v1976
    %v1978 = vpop.f32.mrb[0].mxu0
    %v1979 = vpop.f32.mrb[0].mxu0
    %v1980 = vadd.f32 0.0, %v1979
    %v1981 = vpop.f32.mrb[0].mxu0
    %1982 = vmatprep.mubr.bf16.mxu0 0
    %1983 = vmatmul.mubr.bf16.gmra.mrb[0].mxu0 %v1868
    %v1984 = vpop.f32.mrb[0].mxu0
    %v1985 = vadd.f32 0.0, %v1984
    %v1986 = vpop.f32.mrb[0].mxu0
    %v1987 = vpop.f32.mrb[0].mxu0
    %v1988 = vpop.f32.mrb[0].mxu0
    %1989 = vdwg.mxu0
    %v2006 = vunpack.c.l.b16 %v1845
    %v2007 = vunpack.c.l.b16 %v1846
    %v2008 = vunpack.c.l.b16 %v1847
    %v2009 = vunpack.c.l.b16 %v1848
    %v2010 = vunpack.c.l.b16 %v1849
    %v2011 = vunpack.c.l.b16 %v1850
    %v2012 = vunpack.c.l.b16 %v1851
    %v2013 = vunpack.c.l.b16 %v1852
    %v2014 = vunpack.c.l.b16 %v1853
    %v2015 = vunpack.c.l.b16 %v1854
    %v2016 = vunpack.c.l.b16 %v1855
    %v2017 = vunpack.c.l.b16 %v1856
    %v2018 = vunpack.c.l.b16 %v1857
    %v2019 = vunpack.c.l.b16 %v1858
    %v2020 = vunpack.c.l.b16 %v1859
    %v2021 = vunpack.c.l.b16 %v1860
    %v2022 = vpack.c.b16 %v2007, %v2006
    %v2023 = vpack.c.b16 %v2009, %v2008
    %v2024 = vpack.c.b16 %v2011, %v2010
    %v2025 = vpack.c.b16 %v2013, %v2012
    %v2026 = vpack.c.b16 %v2015, %v2014
    %v2027 = vpack.c.b16 %v2017, %v2016
    %v2028 = vpack.c.b16 %v2019, %v2018
    %v2029 = vpack.c.b16 %v2021, %v2020
    %2038 = vmatprep.subr.bf16.mxu0 0
    %2039 = vmatpush1.bf16.msra.mxu0 %v2022
    %2040 = vmatprep.subr.bf16.mxu0 0
    %2041 = vmatpush1.bf16.msra.mxu0 %v2023
    %2042 = vmatprep.subr.bf16.mxu0 0
    %2043 = vmatpush1.bf16.msra.mxu0 %v2024
    %2044 = vmatprep.subr.bf16.mxu0 0
    %2045 = vmatpush1.bf16.msra.mxu0 %v2025
    %2046 = vmatprep.subr.bf16.mxu0 0
    %2047 = vmatpush1.bf16.msra.mxu0 %v2026
    %2048 = vmatprep.subr.bf16.mxu0 0
    %2049 = vmatpush1.bf16.msra.mxu0 %v2027
    %2050 = vmatprep.subr.bf16.mxu0 0
    %2051 = vmatpush1.bf16.msra.mxu0 %v2028
    %2052 = vmatprep.subr.bf16.mxu0 0
    %2053 = vmatpush1.bf16.msra.mxu0 %v2029
    %2054 = vmatprep.subr.bf16.mxu0 0
    %2055 = vmatpush1.bf16.msra.mxu0 0
    %2056 = vmatprep.subr.bf16.mxu0 0
    %2057 = vmatpush1.bf16.msra.mxu0 0
    %2058 = vmatprep.subr.bf16.mxu0 0
    %2059 = vmatpush1.bf16.msra.mxu0 0
    %2060 = vmatprep.subr.bf16.mxu0 0
    %2061 = vmatpush1.bf16.msra.mxu0 0
    %2062 = vmatprep.subr.bf16.mxu0 0
    %2063 = vmatpush1.bf16.msra.mxu0 0
    %2064 = vmatprep.subr.bf16.mxu0 0
    %2065 = vmatpush1.bf16.msra.mxu0 0
    %2066 = vmatprep.subr.bf16.mxu0 0
    %2067 = vmatpush1.bf16.msra.mxu0 0
    %2068 = vmatprep.subr.bf16.mxu0 0
    %2069 = vmatpush1.bf16.msra.mxu0 0
    %2070 = vmatprep.mubr.bf16.mxu0 0
    %2071 = vmatmul.mubr.bf16.gmra.mrb[0].mxu0 %v1842
    %v2072 = vpop.f32.mrb[0].mxu0
    %v2073 = vadd.f32 %v1969, %v2072
    %v2074 = vpop.f32.mrb[0].mxu0
    %v2075 = vpop.f32.mrb[0].mxu0
    %v2076 = vadd.f32 %v1972, %v2075
    %v2077 = vpop.f32.mrb[0].mxu0
    %2078 = vmatprep.mubr.bf16.mxu0 0
    %2079 = vmatmul.mubr.bf16.gmra.mrb[0].mxu0 %v1843
    %v2080 = vpop.f32.mrb[0].mxu0
    %v2081 = vadd.f32 %v1977, %v2080
    %v2082 = vpop.f32.mrb[0].mxu0
    %v2083 = vpop.f32.mrb[0].mxu0
    %v2084 = vadd.f32 %v1980, %v2083
    %v2085 = vpop.f32.mrb[0].mxu0
    %2086 = vmatprep.mubr.bf16.mxu0 0
    %2087 = vmatmul.mubr.bf16.gmra.mrb[0].mxu0 %v1844
    %v2088 = vpop.f32.mrb[0].mxu0
    %v2089 = vadd.f32 %v1985, %v2088
    %v2090 = vpop.f32.mrb[0].mxu0
    %v2091 = vpop.f32.mrb[0].mxu0
    %v2092 = vpop.f32.mrb[0].mxu0
    %2093 = vdwg.mxu0
    %v2094 = vld [vmem:[#allocation2 + $0x9] sm:$0xff]
    %v2095 = vld [vmem:[#allocation2 + $0x11] sm:$0xff]
    %v2096 = vld [vmem:[#allocation2 + $0x19] sm:$0xff]
    %v2097 = vld [vmem:[#allocation2 + $0x21] sm:$0xff]
    %v2098 = vld [vmem:[#allocation2 + $0x29] sm:$0xf]
    %v2099 = vpack.c.bf16 %v2095, %v2094
    %v2100 = vpack.c.bf16 %v2097, %v2096
    %v2101 = vpack.c.bf16 %v2098, %v2098
    %s2102 = scalar_lea.vmem [#allocation8], 128
    %v2103 = vld [vmem:[%s2102] sm:$0xf]
    %v2104 = vld [vmem:[%s2102 + $0x4] sm:$0xf]
    %v2105 = vld [vmem:[%s2102 + $0x8] sm:$0xf]
    %v2106 = vld [vmem:[%s2102 + $0xc] sm:$0xf]
    %v2107 = vld [vmem:[%s2102 + $0x10] sm:$0xf]
    %v2108 = vld [vmem:[%s2102 + $0x14] sm:$0xf]
    %v2109 = vld [vmem:[%s2102 + $0x18] sm:$0xf]
    %v2110 = vld [vmem:[%s2102 + $0x1c] sm:$0xf]
    %v2111 = vld [vmem:[%s2102 + $0x20] sm:$0xf]
    %v2112 = vld [vmem:[%s2102 + $0x24] sm:$0xf]
    %v2113 = vld [vmem:[%s2102 + $0x28] sm:$0xf]
    %v2114 = vld [vmem:[%s2102 + $0x2c] sm:$0xf]
    %v2115 = vld [vmem:[%s2102 + $0x30] sm:$0xf]
    %v2116 = vld [vmem:[%s2102 + $0x34] sm:$0xf]
    %v2117 = vld [vmem:[%s2102 + $0x38] sm:$0xf]
    %v2118 = vld [vmem:[%s2102 + $0x3c] sm:$0xf]
    %v2135 = vunpack.c.l.b16 %v2103
    %v2136 = vunpack.c.l.b16 %v2104
    %v2137 = vunpack.c.l.b16 %v2105
    %v2138 = vunpack.c.l.b16 %v2106
    %v2139 = vunpack.c.l.b16 %v2107
    %v2140 = vunpack.c.l.b16 %v2108
    %v2141 = vunpack.c.l.b16 %v2109
    %v2142 = vunpack.c.l.b16 %v2110
    %v2143 = vunpack.c.l.b16 %v2111
    %v2144 = vunpack.c.l.b16 %v2112
    %v2145 = vunpack.c.l.b16 %v2113
    %v2146 = vunpack.c.l.b16 %v2114
    %v2147 = vunpack.c.l.b16 %v2115
    %v2148 = vunpack.c.l.b16 %v2116
    %v2149 = vunpack.c.l.b16 %v2117
    %v2150 = vunpack.c.l.b16 %v2118
    %v2151 = vpack.c.b16 %v2136, %v2135
    %v2152 = vpack.c.b16 %v2138, %v2137
    %v2153 = vpack.c.b16 %v2140, %v2139
    %v2154 = vpack.c.b16 %v2142, %v2141
    %v2155 = vpack.c.b16 %v2144, %v2143
    %v2156 = vpack.c.b16 %v2146, %v2145
    %v2157 = vpack.c.b16 %v2148, %v2147
    %v2158 = vpack.c.b16 %v2150, %v2149
    %2167 = vmatprep.subr.bf16.mxu0 0
    %2168 = vmatpush1.bf16.msra.mxu0 %v2151
    %2169 = vmatprep.subr.bf16.mxu0 0
    %2170 = vmatpush1.bf16.msra.mxu0 %v2152
    %2171 = vmatprep.subr.bf16.mxu0 0
    %2172 = vmatpush1.bf16.msra.mxu0 %v2153
    %2173 = vmatprep.subr.bf16.mxu0 0
    %2174 = vmatpush1.bf16.msra.mxu0 %v2154
    %2175 = vmatprep.subr.bf16.mxu0 0
    %2176 = vmatpush1.bf16.msra.mxu0 %v2155
    %2177 = vmatprep.subr.bf16.mxu0 0
    %2178 = vmatpush1.bf16.msra.mxu0 %v2156
    %2179 = vmatprep.subr.bf16.mxu0 0
    %2180 = vmatpush1.bf16.msra.mxu0 %v2157
    %2181 = vmatprep.subr.bf16.mxu0 0
    %2182 = vmatpush1.bf16.msra.mxu0 %v2158
    %2183 = vmatprep.subr.bf16.mxu0 0
    %2184 = vmatpush1.bf16.msra.mxu0 0
    %2185 = vmatprep.subr.bf16.mxu0 0
    %2186 = vmatpush1.bf16.msra.mxu0 0
    %2187 = vmatprep.subr.bf16.mxu0 0
    %2188 = vmatpush1.bf16.msra.mxu0 0
    %2189 = vmatprep.subr.bf16.mxu0 0
    %2190 = vmatpush1.bf16.msra.mxu0 0
    %2191 = vmatprep.subr.bf16.mxu0 0
    %2192 = vmatpush1.bf16.msra.mxu0 0
    %2193 = vmatprep.subr.bf16.mxu0 0
    %2194 = vmatpush1.bf16.msra.mxu0 0
    %2195 = vmatprep.subr.bf16.mxu0 0
    %2196 = vmatpush1.bf16.msra.mxu0 0
    %2197 = vmatprep.subr.bf16.mxu0 0
    %2198 = vmatpush1.bf16.msra.mxu0 0
    %2199 = vmatprep.mubr.bf16.mxu0 0
    %2200 = vmatmul.mubr.bf16.gmra.mrb[0].mxu0 %v2099
    %v2201 = vpop.f32.mrb[0].mxu0
    %v2202 = vadd.f32 0.0, %v2201
    %v2203 = vpop.f32.mrb[0].mxu0
    %v2204 = vpop.f32.mrb[0].mxu0
    %v2205 = vadd.f32 0.0, %v2204
    %v2206 = vpop.f32.mrb[0].mxu0
    %2207 = vmatprep.mubr.bf16.mxu0 0
    %2208 = vmatmul.mubr.bf16.gmra.mrb[0].mxu0 %v2100
    %v2209 = vpop.f32.mrb[0].mxu0
    %v2210 = vadd.f32 0.0, %v2209
    %v2211 = vpop.f32.mrb[0].mxu0
    %v2212 = vpop.f32.mrb[0].mxu0
    %v2213 = vadd.f32 0.0, %v2212
    %v2214 = vpop.f32.mrb[0].mxu0
    %2215 = vmatprep.mubr.bf16.mxu0 0
    %2216 = vmatmul.mubr.bf16.gmra.mrb[0].mxu0 %v2101
    %v2217 = vpop.f32.mrb[0].mxu0
    %v2218 = vadd.f32 0.0, %v2217
    %v2219 = vpop.f32.mrb[0].mxu0
    %v2220 = vpop.f32.mrb[0].mxu0
    %v2221 = vpop.f32.mrb[0].mxu0
    %2222 = vdwg.mxu0
    %v2223 = vadd.f32 %v2073, %v2202
    %v2224 = vadd.f32 %v2076, %v2205
    %v2225 = vadd.f32 %v2081, %v2210
    %v2226 = vadd.f32 %v2084, %v2213
    %v2227 = vadd.f32 %v2089, %v2218
    %v2228 = vmul.f32 %v2223, %v454
    %v2229 = vmul.f32 %v2224, %v459
    %v2230 = vmul.f32 %v2225, %v464
    %v2231 = vmul.f32 %v2226, %v469
    %v2232 = vmul.f32 %v2227, %v474
    %v2233 = vadd.f32 %v2228, %v2229
    %v2234 = vadd.f32 %v2233, %v2230
    %v2235 = vadd.f32 %v2234, %v2231
    %v2236 = vsel %vm178, %v2232, 0.0
    %v2237 = vadd.f32 %v2235, %v2236
    %v2238 = vrot.slane %v2237, 4
    %v2239 = vadd.f32 %v2237, %v2238
    %v2240 = vrot.slane %v2239, 2
    %v2241 = vadd.f32 %v2239, %v2240
    %v2242 = vrot.slane %v2241, 1
    %v2243 = vadd.f32 %v2241, %v2242
    %2244 = vmatprep.subr.mxu0 0.0
    %v2245 = vand.u32 %v90, 4294901760
    %2246 = vmatpush1.msra.mxu0 %v2245
    %2247 = vmatprep.subr.mxu0 0.0
    %v2248 = vand.u32 %v91, 4294901760
    %2249 = vmatpush1.msra.mxu0 %v2248
    %2250 = vmatprep.subr.mxu0 0.0
    %v2251 = vand.u32 %v92, 4294901760
    %2252 = vmatpush1.msra.mxu0 %v2251
    %2253 = vmatprep.subr.mxu0 0.0
    %v2254 = vand.u32 %v93, 4294901760
    %2255 = vmatpush1.msra.mxu0 %v2254
    %2256 = vmatprep.subr.mxu0 0.0
    %v2257 = vand.u32 %v94, 4294901760
    %2258 = vmatpush1.msra.mxu0 %v2257
    %2259 = vmatprep.subr.mxu0 0.0
    %v2260 = vand.u32 %v95, 4294901760
    %2261 = vmatpush1.msra.mxu0 %v2260
    %2262 = vmatprep.subr.mxu0 0.0
    %v2263 = vand.u32 %v96, 4294901760
    %2264 = vmatpush1.msra.mxu0 %v2263
    %2265 = vmatprep.subr.mxu0 0.0
    %v2266 = vand.u32 %v97, 4294901760
    %2267 = vmatpush1.msra.mxu0 %v2266
    %2268 = vmatprep.subr.mxu0 0.0
    %v2269 = vand.u32 %v98, 4294901760
    %2270 = vmatpush1.msra.mxu0 %v2269
    %2271 = vmatprep.subr.mxu0 0.0
    %v2272 = vand.u32 %v99, 4294901760
    %2273 = vmatpush1.msra.mxu0 %v2272
    %2274 = vmatprep.subr.mxu0 0.0
    %v2275 = vand.u32 %v100, 4294901760
    %2276 = vmatpush1.msra.mxu0 %v2275
    %2277 = vmatprep.subr.mxu0 0.0
    %v2278 = vand.u32 %v101, 4294901760
    %2279 = vmatpush1.msra.mxu0 %v2278
    %2280 = vmatprep.subr.mxu0 0.0
    %v2281 = vand.u32 %v102, 4294901760
    %2282 = vmatpush1.msra.mxu0 %v2281
    %2283 = vmatprep.subr.mxu0 0.0
    %v2284 = vand.u32 %v103, 4294901760
    %2285 = vmatpush1.msra.mxu0 %v2284
    %2286 = vmatprep.subr.mxu0 0.0
    %v2287 = vand.u32 %v104, 4294901760
    %2288 = vmatpush1.msra.mxu0 %v2287
    %2289 = vmatprep.subr.mxu0 0.0
    %v2290 = vand.u32 %v105, 4294901760
    %2291 = vmatpush1.msra.mxu0 %v2290
    %2292 = vmatprep.subr.mxu0 0.0
    %2293 = vmatpush1.msra.mxu0 0.0
    %2294 = vmatprep.subr.mxu0 0.0
    %2295 = vmatpush1.msra.mxu0 0.0
    %2296 = vmatprep.subr.mxu0 0.0
    %2297 = vmatpush1.msra.mxu0 0.0
    %2298 = vmatprep.subr.mxu0 0.0
    %2299 = vmatpush1.msra.mxu0 0.0
    %2300 = vmatprep.subr.mxu0 0.0
    %2301 = vmatpush1.msra.mxu0 0.0
    %2302 = vmatprep.subr.mxu0 0.0
    %2303 = vmatpush1.msra.mxu0 0.0
    %2304 = vmatprep.subr.mxu0 0.0
    %2305 = vmatpush1.msra.mxu0 0.0
    %2306 = vmatprep.subr.mxu0 0.0
    %2307 = vmatpush1.msra.mxu0 0.0
    %2308 = vmatprep.subr.mxu0 0.0
    %2309 = vmatpush1.msra.mxu0 0.0
    %2310 = vmatprep.subr.mxu0 0.0
    %2311 = vmatpush1.msra.mxu0 0.0
    %2312 = vmatprep.subr.mxu0 0.0
    %2313 = vmatpush1.msra.mxu0 0.0
    %2314 = vmatprep.subr.mxu0 0.0
    %2315 = vmatpush1.msra.mxu0 0.0
    %2316 = vmatprep.subr.mxu0 0.0
    %2317 = vmatpush1.msra.mxu0 0.0
    %2318 = vmatprep.subr.mxu0 0.0
    %2319 = vmatpush1.msra.mxu0 0.0
    %2320 = vmatprep.subr.mxu0 0.0
    %2321 = vmatpush1.msra.mxu0 0.0
    %2322 = vmatprep.subr.mxu0 0.0
    %2323 = vmatpush1.msra.mxu0 0.0
    %2324 = vmatprep.mubr.f32.mxu0 0.0
    %v2325 = vand.u32 %v2243, 4294901760
    %v2326 = vsub.f32 %v2243, %v2325
    %v2327 = vand.u32 %v2326, 4294901760
    %v2328 = vsub.f32 %v2326, %v2327
    %v2329 = vand.u32 %v2328, 4294901760
    %2330 = vmatmul.mubr.f32.gmra.mrb[0].mxu0 %v2329
    %v2331 = vpop.f32.mrb[0].mxu0
    %v2332 = vadd.f32 0.0, %v2331
    %v2333 = vpop.f32.mrb[0].mxu0
    %2334 = vdwg.mxu0
    %2335 = vmatprep.subr.mxu0 0.0
    %v2336 = vand.u32 %v90, 4294901760
    %v2337 = vsub.f32 %v90, %v2336
    %v2338 = vand.u32 %v2337, 4294901760
    %v2339 = vsub.f32 %v2337, %v2338
    %v2340 = vand.u32 %v2339, 4294901760
    %2341 = vmatpush1.msra.mxu0 %v2340
    %2342 = vmatprep.subr.mxu0 0.0
    %v2343 = vand.u32 %v91, 4294901760
    %v2344 = vsub.f32 %v91, %v2343
    %v2345 = vand.u32 %v2344, 4294901760
    %v2346 = vsub.f32 %v2344, %v2345
    %v2347 = vand.u32 %v2346, 4294901760
    %2348 = vmatpush1.msra.mxu0 %v2347
    %2349 = vmatprep.subr.mxu0 0.0
    %v2350 = vand.u32 %v92, 4294901760
    %v2351 = vsub.f32 %v92, %v2350
    %v2352 = vand.u32 %v2351, 4294901760
    %v2353 = vsub.f32 %v2351, %v2352
    %v2354 = vand.u32 %v2353, 4294901760
    %2355 = vmatpush1.msra.mxu0 %v2354
    %2356 = vmatprep.subr.mxu0 0.0
    %v2357 = vand.u32 %v93, 4294901760
    %v2358 = vsub.f32 %v93, %v2357
    %v2359 = vand.u32 %v2358, 4294901760
    %v2360 = vsub.f32 %v2358, %v2359
    %v2361 = vand.u32 %v2360, 4294901760
    %2362 = vmatpush1.msra.mxu0 %v2361
    %2363 = vmatprep.subr.mxu0 0.0
    %v2364 = vand.u32 %v94, 4294901760
    %v2365 = vsub.f32 %v94, %v2364
    %v2366 = vand.u32 %v2365, 4294901760
    %v2367 = vsub.f32 %v2365, %v2366
    %v2368 = vand.u32 %v2367, 4294901760
    %2369 = vmatpush1.msra.mxu0 %v2368
    %2370 = vmatprep.subr.mxu0 0.0
    %v2371 = vand.u32 %v95, 4294901760
    %v2372 = vsub.f32 %v95, %v2371
    %v2373 = vand.u32 %v2372, 4294901760
    %v2374 = vsub.f32 %v2372, %v2373
    %v2375 = vand.u32 %v2374, 4294901760
    %2376 = vmatpush1.msra.mxu0 %v2375
    %2377 = vmatprep.subr.mxu0 0.0
    %v2378 = vand.u32 %v96, 4294901760
    %v2379 = vsub.f32 %v96, %v2378
    %v2380 = vand.u32 %v2379, 4294901760
    %v2381 = vsub.f32 %v2379, %v2380
    %v2382 = vand.u32 %v2381, 4294901760
    %2383 = vmatpush1.msra.mxu0 %v2382
    %2384 = vmatprep.subr.mxu0 0.0
    %v2385 = vand.u32 %v97, 4294901760
    %v2386 = vsub.f32 %v97, %v2385
    %v2387 = vand.u32 %v2386, 4294901760
    %v2388 = vsub.f32 %v2386, %v2387
    %v2389 = vand.u32 %v2388, 4294901760
    %2390 = vmatpush1.msra.mxu0 %v2389
    %2391 = vmatprep.subr.mxu0 0.0
    %v2392 = vand.u32 %v98, 4294901760
    %v2393 = vsub.f32 %v98, %v2392
    %v2394 = vand.u32 %v2393, 4294901760
    %v2395 = vsub.f32 %v2393, %v2394
    %v2396 = vand.u32 %v2395, 4294901760
    %2397 = vmatpush1.msra.mxu0 %v2396
    %2398 = vmatprep.subr.mxu0 0.0
    %v2399 = vand.u32 %v99, 4294901760
    %v2400 = vsub.f32 %v99, %v2399
    %v2401 = vand.u32 %v2400, 4294901760
    %v2402 = vsub.f32 %v2400, %v2401
    %v2403 = vand.u32 %v2402, 4294901760
    %2404 = vmatpush1.msra.mxu0 %v2403
    %2405 = vmatprep.subr.mxu0 0.0
    %v2406 = vand.u32 %v100, 4294901760
    %v2407 = vsub.f32 %v100, %v2406
    %v2408 = vand.u32 %v2407, 4294901760
    %v2409 = vsub.f32 %v2407, %v2408
    %v2410 = vand.u32 %v2409, 4294901760
    %2411 = vmatpush1.msra.mxu0 %v2410
    %2412 = vmatprep.subr.mxu0 0.0
    %v2413 = vand.u32 %v101, 4294901760
    %v2414 = vsub.f32 %v101, %v2413
    %v2415 = vand.u32 %v2414, 4294901760
    %v2416 = vsub.f32 %v2414, %v2415
    %v2417 = vand.u32 %v2416, 4294901760
    %2418 = vmatpush1.msra.mxu0 %v2417
    %2419 = vmatprep.subr.mxu0 0.0
    %v2420 = vand.u32 %v102, 4294901760
    %v2421 = vsub.f32 %v102, %v2420
    %v2422 = vand.u32 %v2421, 4294901760
    %v2423 = vsub.f32 %v2421, %v2422
    %v2424 = vand.u32 %v2423, 4294901760
    %2425 = vmatpush1.msra.mxu0 %v2424
    %2426 = vmatprep.subr.mxu0 0.0
    %v2427 = vand.u32 %v103, 4294901760
    %v2428 = vsub.f32 %v103, %v2427
    %v2429 = vand.u32 %v2428, 4294901760
    %v2430 = vsub.f32 %v2428, %v2429
    %v2431 = vand.u32 %v2430, 4294901760
    %2432 = vmatpush1.msra.mxu0 %v2431
    %2433 = vmatprep.subr.mxu0 0.0
    %v2434 = vand.u32 %v104, 4294901760
    %v2435 = vsub.f32 %v104, %v2434
    %v2436 = vand.u32 %v2435, 4294901760
    %v2437 = vsub.f32 %v2435, %v2436
    %v2438 = vand.u32 %v2437, 4294901760
    %2439 = vmatpush1.msra.mxu0 %v2438
    %2440 = vmatprep.subr.mxu0 0.0
    %v2441 = vand.u32 %v105, 4294901760
    %v2442 = vsub.f32 %v105, %v2441
    %v2443 = vand.u32 %v2442, 4294901760
    %v2444 = vsub.f32 %v2442, %v2443
    %v2445 = vand.u32 %v2444, 4294901760
    %2446 = vmatpush1.msra.mxu0 %v2445
    %2447 = vmatprep.subr.mxu0 0.0
    %2448 = vmatpush1.msra.mxu0 0.0
    %2449 = vmatprep.subr.mxu0 0.0
    %2450 = vmatpush1.msra.mxu0 0.0
    %2451 = vmatprep.subr.mxu0 0.0
    %2452 = vmatpush1.msra.mxu0 0.0
    %2453 = vmatprep.subr.mxu0 0.0
    %2454 = vmatpush1.msra.mxu0 0.0
    %2455 = vmatprep.subr.mxu0 0.0
    %2456 = vmatpush1.msra.mxu0 0.0
    %2457 = vmatprep.subr.mxu0 0.0
    %2458 = vmatpush1.msra.mxu0 0.0
    %2459 = vmatprep.subr.mxu0 0.0
    %2460 = vmatpush1.msra.mxu0 0.0
    %2461 = vmatprep.subr.mxu0 0.0
    %2462 = vmatpush1.msra.mxu0 0.0
    %2463 = vmatprep.subr.mxu0 0.0
    %2464 = vmatpush1.msra.mxu0 0.0
    %2465 = vmatprep.subr.mxu0 0.0
    %2466 = vmatpush1.msra.mxu0 0.0
    %2467 = vmatprep.subr.mxu0 0.0
    %2468 = vmatpush1.msra.mxu0 0.0
    %2469 = vmatprep.subr.mxu0 0.0
    %2470 = vmatpush1.msra.mxu0 0.0
    %2471 = vmatprep.subr.mxu0 0.0
    %2472 = vmatpush1.msra.mxu0 0.0
    %2473 = vmatprep.subr.mxu0 0.0
    %2474 = vmatpush1.msra.mxu0 0.0
    %2475 = vmatprep.subr.mxu0 0.0
    %2476 = vmatpush1.msra.mxu0 0.0
    %2477 = vmatprep.subr.mxu0 0.0
    %2478 = vmatpush1.msra.mxu0 0.0
    %2479 = vmatprep.mubr.f32.mxu0 0.0
    %v2480 = vand.u32 %v2243, 4294901760
    %2481 = vmatmul.mubr.f32.gmra.mrb[0].mxu0 %v2480
    %v2482 = vpop.f32.mrb[0].mxu0
    %v2483 = vadd.f32 %v2332, %v2482
    %v2484 = vpop.f32.mrb[0].mxu0
    %2485 = vdwg.mxu0
    %2486 = vmatprep.subr.mxu0 0.0
    %v2487 = vand.u32 %v90, 4294901760
    %v2488 = vsub.f32 %v90, %v2487
    %2489 = vmatpush1.msra.mxu0 %v2488
    %2490 = vmatprep.subr.mxu0 0.0
    %v2491 = vand.u32 %v91, 4294901760
    %v2492 = vsub.f32 %v91, %v2491
    %2493 = vmatpush1.msra.mxu0 %v2492
    %2494 = vmatprep.subr.mxu0 0.0
    %v2495 = vand.u32 %v92, 4294901760
    %v2496 = vsub.f32 %v92, %v2495
    %2497 = vmatpush1.msra.mxu0 %v2496
    %2498 = vmatprep.subr.mxu0 0.0
    %v2499 = vand.u32 %v93, 4294901760
    %v2500 = vsub.f32 %v93, %v2499
    %2501 = vmatpush1.msra.mxu0 %v2500
    %2502 = vmatprep.subr.mxu0 0.0
    %v2503 = vand.u32 %v94, 4294901760
    %v2504 = vsub.f32 %v94, %v2503
    %2505 = vmatpush1.msra.mxu0 %v2504
    %2506 = vmatprep.subr.mxu0 0.0
    %v2507 = vand.u32 %v95, 4294901760
    %v2508 = vsub.f32 %v95, %v2507
    %2509 = vmatpush1.msra.mxu0 %v2508
    %2510 = vmatprep.subr.mxu0 0.0
    %v2511 = vand.u32 %v96, 4294901760
    %v2512 = vsub.f32 %v96, %v2511
    %2513 = vmatpush1.msra.mxu0 %v2512
    %2514 = vmatprep.subr.mxu0 0.0
    %v2515 = vand.u32 %v97, 4294901760
    %v2516 = vsub.f32 %v97, %v2515
    %2517 = vmatpush1.msra.mxu0 %v2516
    %2518 = vmatprep.subr.mxu0 0.0
    %v2519 = vand.u32 %v98, 4294901760
    %v2520 = vsub.f32 %v98, %v2519
    %2521 = vmatpush1.msra.mxu0 %v2520
    %2522 = vmatprep.subr.mxu0 0.0
    %v2523 = vand.u32 %v99, 4294901760
    %v2524 = vsub.f32 %v99, %v2523
    %2525 = vmatpush1.msra.mxu0 %v2524
    %2526 = vmatprep.subr.mxu0 0.0
    %v2527 = vand.u32 %v100, 4294901760
    %v2528 = vsub.f32 %v100, %v2527
    %2529 = vmatpush1.msra.mxu0 %v2528
    %2530 = vmatprep.subr.mxu0 0.0
    %v2531 = vand.u32 %v101, 4294901760
    %v2532 = vsub.f32 %v101, %v2531
    %2533 = vmatpush1.msra.mxu0 %v2532
    %2534 = vmatprep.subr.mxu0 0.0
    %v2535 = vand.u32 %v102, 4294901760
    %v2536 = vsub.f32 %v102, %v2535
    %2537 = vmatpush1.msra.mxu0 %v2536
    %2538 = vmatprep.subr.mxu0 0.0
    %v2539 = vand.u32 %v103, 4294901760
    %v2540 = vsub.f32 %v103, %v2539
    %2541 = vmatpush1.msra.mxu0 %v2540
    %2542 = vmatprep.subr.mxu0 0.0
    %v2543 = vand.u32 %v104, 4294901760
    %v2544 = vsub.f32 %v104, %v2543
    %2545 = vmatpush1.msra.mxu0 %v2544
    %2546 = vmatprep.subr.mxu0 0.0
    %v2547 = vand.u32 %v105, 4294901760
    %v2548 = vsub.f32 %v105, %v2547
    %2549 = vmatpush1.msra.mxu0 %v2548
    %2550 = vmatprep.subr.mxu0 0.0
    %2551 = vmatpush1.msra.mxu0 0.0
    %2552 = vmatprep.subr.mxu0 0.0
    %2553 = vmatpush1.msra.mxu0 0.0
    %2554 = vmatprep.subr.mxu0 0.0
    %2555 = vmatpush1.msra.mxu0 0.0
    %2556 = vmatprep.subr.mxu0 0.0
    %2557 = vmatpush1.msra.mxu0 0.0
    %2558 = vmatprep.subr.mxu0 0.0
    %2559 = vmatpush1.msra.mxu0 0.0
    %2560 = vmatprep.subr.mxu0 0.0
    %2561 = vmatpush1.msra.mxu0 0.0
    %2562 = vmatprep.subr.mxu0 0.0
    %2563 = vmatpush1.msra.mxu0 0.0
    %2564 = vmatprep.subr.mxu0 0.0
    %2565 = vmatpush1.msra.mxu0 0.0
    %2566 = vmatprep.subr.mxu0 0.0
    %2567 = vmatpush1.msra.mxu0 0.0
    %2568 = vmatprep.subr.mxu0 0.0
    %2569 = vmatpush1.msra.mxu0 0.0
    %2570 = vmatprep.subr.mxu0 0.0
    %2571 = vmatpush1.msra.mxu0 0.0
    %2572 = vmatprep.subr.mxu0 0.0
    %2573 = vmatpush1.msra.mxu0 0.0
    %2574 = vmatprep.subr.mxu0 0.0
    %2575 = vmatpush1.msra.mxu0 0.0
    %2576 = vmatprep.subr.mxu0 0.0
    %2577 = vmatpush1.msra.mxu0 0.0
    %2578 = vmatprep.subr.mxu0 0.0
    %2579 = vmatpush1.msra.mxu0 0.0
    %2580 = vmatprep.subr.mxu0 0.0
    %2581 = vmatpush1.msra.mxu0 0.0
    %2582 = vmatprep.mubr.f32.mxu0 0.0
    %v2583 = vand.u32 %v2243, 4294901760
    %v2584 = vsub.f32 %v2243, %v2583
    %2585 = vmatmul.mubr.f32.gmra.mrb[0].mxu0 %v2584
    %v2586 = vpop.f32.mrb[0].mxu0
    %v2587 = vadd.f32 %v2483, %v2586
    %v2588 = vpop.f32.mrb[0].mxu0
    %2589 = vdwg.mxu0
    %2590 = vmatprep.subr.mxu0 0.0
    %v2591 = vand.u32 %v90, 4294901760
    %2592 = vmatpush1.msra.mxu0 %v2591
    %2593 = vmatprep.subr.mxu0 0.0
    %v2594 = vand.u32 %v91, 4294901760
    %2595 = vmatpush1.msra.mxu0 %v2594
    %2596 = vmatprep.subr.mxu0 0.0
    %v2597 = vand.u32 %v92, 4294901760
    %2598 = vmatpush1.msra.mxu0 %v2597
    %2599 = vmatprep.subr.mxu0 0.0
    %v2600 = vand.u32 %v93, 4294901760
    %2601 = vmatpush1.msra.mxu0 %v2600
    %2602 = vmatprep.subr.mxu0 0.0
    %v2603 = vand.u32 %v94, 4294901760
    %2604 = vmatpush1.msra.mxu0 %v2603
    %2605 = vmatprep.subr.mxu0 0.0
    %v2606 = vand.u32 %v95, 4294901760
    %2607 = vmatpush1.msra.mxu0 %v2606
    %2608 = vmatprep.subr.mxu0 0.0
    %v2609 = vand.u32 %v96, 4294901760
    %2610 = vmatpush1.msra.mxu0 %v2609
    %2611 = vmatprep.subr.mxu0 0.0
    %v2612 = vand.u32 %v97, 4294901760
    %2613 = vmatpush1.msra.mxu0 %v2612
    %2614 = vmatprep.subr.mxu0 0.0
    %v2615 = vand.u32 %v98, 4294901760
    %2616 = vmatpush1.msra.mxu0 %v2615
    %2617 = vmatprep.subr.mxu0 0.0
    %v2618 = vand.u32 %v99, 4294901760
    %2619 = vmatpush1.msra.mxu0 %v2618
    %2620 = vmatprep.subr.mxu0 0.0
    %v2621 = vand.u32 %v100, 4294901760
    %2622 = vmatpush1.msra.mxu0 %v2621
    %2623 = vmatprep.subr.mxu0 0.0
    %v2624 = vand.u32 %v101, 4294901760
    %2625 = vmatpush1.msra.mxu0 %v2624
    %2626 = vmatprep.subr.mxu0 0.0
    %v2627 = vand.u32 %v102, 4294901760
    %2628 = vmatpush1.msra.mxu0 %v2627
    %2629 = vmatprep.subr.mxu0 0.0
    %v2630 = vand.u32 %v103, 4294901760
    %2631 = vmatpush1.msra.mxu0 %v2630
    %2632 = vmatprep.subr.mxu0 0.0
    %v2633 = vand.u32 %v104, 4294901760
    %2634 = vmatpush1.msra.mxu0 %v2633
    %2635 = vmatprep.subr.mxu0 0.0
    %v2636 = vand.u32 %v105, 4294901760
    %2637 = vmatpush1.msra.mxu0 %v2636
    %2638 = vmatprep.subr.mxu0 0.0
    %2639 = vmatpush1.msra.mxu0 0.0
    %2640 = vmatprep.subr.mxu0 0.0
    %2641 = vmatpush1.msra.mxu0 0.0
    %2642 = vmatprep.subr.mxu0 0.0
    %2643 = vmatpush1.msra.mxu0 0.0
    %2644 = vmatprep.subr.mxu0 0.0
    %2645 = vmatpush1.msra.mxu0 0.0
    %2646 = vmatprep.subr.mxu0 0.0
    %2647 = vmatpush1.msra.mxu0 0.0
    %2648 = vmatprep.subr.mxu0 0.0
    %2649 = vmatpush1.msra.mxu0 0.0
    %2650 = vmatprep.subr.mxu0 0.0
    %2651 = vmatpush1.msra.mxu0 0.0
    %2652 = vmatprep.subr.mxu0 0.0
    %2653 = vmatpush1.msra.mxu0 0.0
    %2654 = vmatprep.subr.mxu0 0.0
    %2655 = vmatpush1.msra.mxu0 0.0
    %2656 = vmatprep.subr.mxu0 0.0
    %2657 = vmatpush1.msra.mxu0 0.0
    %2658 = vmatprep.subr.mxu0 0.0
    %2659 = vmatpush1.msra.mxu0 0.0
    %2660 = vmatprep.subr.mxu0 0.0
    %2661 = vmatpush1.msra.mxu0 0.0
    %2662 = vmatprep.subr.mxu0 0.0
    %2663 = vmatpush1.msra.mxu0 0.0
    %2664 = vmatprep.subr.mxu0 0.0
    %2665 = vmatpush1.msra.mxu0 0.0
    %2666 = vmatprep.subr.mxu0 0.0
    %2667 = vmatpush1.msra.mxu0 0.0
    %2668 = vmatprep.subr.mxu0 0.0
    %2669 = vmatpush1.msra.mxu0 0.0
    %2670 = vmatprep.mubr.f32.mxu0 0.0
    %v2671 = vand.u32 %v2243, 4294901760
    %v2672 = vsub.f32 %v2243, %v2671
    %v2673 = vand.u32 %v2672, 4294901760
    %2674 = vmatmul.mubr.f32.gmra.mrb[0].mxu0 %v2673
    %v2675 = vpop.f32.mrb[0].mxu0
    %v2676 = vadd.f32 %v2587, %v2675
    %v2677 = vpop.f32.mrb[0].mxu0
    %2678 = vdwg.mxu0
    %2679 = vmatprep.subr.mxu0 0.0
    %v2680 = vand.u32 %v90, 4294901760
    %v2681 = vsub.f32 %v90, %v2680
    %v2682 = vand.u32 %v2681, 4294901760
    %2683 = vmatpush1.msra.mxu0 %v2682
    %2684 = vmatprep.subr.mxu0 0.0
    %v2685 = vand.u32 %v91, 4294901760
    %v2686 = vsub.f32 %v91, %v2685
    %v2687 = vand.u32 %v2686, 4294901760
    %2688 = vmatpush1.msra.mxu0 %v2687
    %2689 = vmatprep.subr.mxu0 0.0
    %v2690 = vand.u32 %v92, 4294901760
    %v2691 = vsub.f32 %v92, %v2690
    %v2692 = vand.u32 %v2691, 4294901760
    %2693 = vmatpush1.msra.mxu0 %v2692
    %2694 = vmatprep.subr.mxu0 0.0
    %v2695 = vand.u32 %v93, 4294901760
    %v2696 = vsub.f32 %v93, %v2695
    %v2697 = vand.u32 %v2696, 4294901760
    %2698 = vmatpush1.msra.mxu0 %v2697
    %2699 = vmatprep.subr.mxu0 0.0
    %v2700 = vand.u32 %v94, 4294901760
    %v2701 = vsub.f32 %v94, %v2700
    %v2702 = vand.u32 %v2701, 4294901760
    %2703 = vmatpush1.msra.mxu0 %v2702
    %2704 = vmatprep.subr.mxu0 0.0
    %v2705 = vand.u32 %v95, 4294901760
    %v2706 = vsub.f32 %v95, %v2705
    %v2707 = vand.u32 %v2706, 4294901760
    %2708 = vmatpush1.msra.mxu0 %v2707
    %2709 = vmatprep.subr.mxu0 0.0
    %v2710 = vand.u32 %v96, 4294901760
    %v2711 = vsub.f32 %v96, %v2710
    %v2712 = vand.u32 %v2711, 4294901760
    %2713 = vmatpush1.msra.mxu0 %v2712
    %2714 = vmatprep.subr.mxu0 0.0
    %v2715 = vand.u32 %v97, 4294901760
    %v2716 = vsub.f32 %v97, %v2715
    %v2717 = vand.u32 %v2716, 4294901760
    %2718 = vmatpush1.msra.mxu0 %v2717
    %2719 = vmatprep.subr.mxu0 0.0
    %v2720 = vand.u32 %v98, 4294901760
    %v2721 = vsub.f32 %v98, %v2720
    %v2722 = vand.u32 %v2721, 4294901760
    %2723 = vmatpush1.msra.mxu0 %v2722
    %2724 = vmatprep.subr.mxu0 0.0
    %v2725 = vand.u32 %v99, 4294901760
    %v2726 = vsub.f32 %v99, %v2725
    %v2727 = vand.u32 %v2726, 4294901760
    %2728 = vmatpush1.msra.mxu0 %v2727
    %2729 = vmatprep.subr.mxu0 0.0
    %v2730 = vand.u32 %v100, 4294901760
    %v2731 = vsub.f32 %v100, %v2730
    %v2732 = vand.u32 %v2731, 4294901760
    %2733 = vmatpush1.msra.mxu0 %v2732
    %2734 = vmatprep.subr.mxu0 0.0
    %v2735 = vand.u32 %v101, 4294901760
    %v2736 = vsub.f32 %v101, %v2735
    %v2737 = vand.u32 %v2736, 4294901760
    %2738 = vmatpush1.msra.mxu0 %v2737
    %2739 = vmatprep.subr.mxu0 0.0
    %v2740 = vand.u32 %v102, 4294901760
    %v2741 = vsub.f32 %v102, %v2740
    %v2742 = vand.u32 %v2741, 4294901760
    %2743 = vmatpush1.msra.mxu0 %v2742
    %2744 = vmatprep.subr.mxu0 0.0
    %v2745 = vand.u32 %v103, 4294901760
    %v2746 = vsub.f32 %v103, %v2745
    %v2747 = vand.u32 %v2746, 4294901760
    %2748 = vmatpush1.msra.mxu0 %v2747
    %2749 = vmatprep.subr.mxu0 0.0
    %v2750 = vand.u32 %v104, 4294901760
    %v2751 = vsub.f32 %v104, %v2750
    %v2752 = vand.u32 %v2751, 4294901760
    %2753 = vmatpush1.msra.mxu0 %v2752
    %2754 = vmatprep.subr.mxu0 0.0
    %v2755 = vand.u32 %v105, 4294901760
    %v2756 = vsub.f32 %v105, %v2755
    %v2757 = vand.u32 %v2756, 4294901760
    %2758 = vmatpush1.msra.mxu0 %v2757
    %2759 = vmatprep.subr.mxu0 0.0
    %2760 = vmatpush1.msra.mxu0 0.0
    %2761 = vmatprep.subr.mxu0 0.0
    %2762 = vmatpush1.msra.mxu0 0.0
    %2763 = vmatprep.subr.mxu0 0.0
    %2764 = vmatpush1.msra.mxu0 0.0
    %2765 = vmatprep.subr.mxu0 0.0
    %2766 = vmatpush1.msra.mxu0 0.0
    %2767 = vmatprep.subr.mxu0 0.0
    %2768 = vmatpush1.msra.mxu0 0.0
    %2769 = vmatprep.subr.mxu0 0.0
    %2770 = vmatpush1.msra.mxu0 0.0
    %2771 = vmatprep.subr.mxu0 0.0
    %2772 = vmatpush1.msra.mxu0 0.0
    %2773 = vmatprep.subr.mxu0 0.0
    %2774 = vmatpush1.msra.mxu0 0.0
    %2775 = vmatprep.subr.mxu0 0.0
    %2776 = vmatpush1.msra.mxu0 0.0
    %2777 = vmatprep.subr.mxu0 0.0
    %2778 = vmatpush1.msra.mxu0 0.0
    %2779 = vmatprep.subr.mxu0 0.0
    %2780 = vmatpush1.msra.mxu0 0.0
    %2781 = vmatprep.subr.mxu0 0.0
    %2782 = vmatpush1.msra.mxu0 0.0
    %2783 = vmatprep.subr.mxu0 0.0
    %2784 = vmatpush1.msra.mxu0 0.0
    %2785 = vmatprep.subr.mxu0 0.0
    %2786 = vmatpush1.msra.mxu0 0.0
    %2787 = vmatprep.subr.mxu0 0.0
    %2788 = vmatpush1.msra.mxu0 0.0
    %2789 = vmatprep.subr.mxu0 0.0
    %2790 = vmatpush1.msra.mxu0 0.0
    %2791 = vmatprep.mubr.f32.mxu0 0.0
    %v2792 = vand.u32 %v2243, 4294901760
    %2793 = vmatmul.mubr.f32.gmra.mrb[0].mxu0 %v2792
    %v2794 = vpop.f32.mrb[0].mxu0
    %v2795 = vadd.f32 %v2676, %v2794
    %v2796 = vpop.f32.mrb[0].mxu0
    %2797 = vdwg.mxu0
    %2798 = vmatprep.subr.mxu0 0.0
    %v2799 = vand.u32 %v90, 4294901760
    %2800 = vmatpush1.msra.mxu0 %v2799
    %2801 = vmatprep.subr.mxu0 0.0
    %v2802 = vand.u32 %v91, 4294901760
    %2803 = vmatpush1.msra.mxu0 %v2802
    %2804 = vmatprep.subr.mxu0 0.0
    %v2805 = vand.u32 %v92, 4294901760
    %2806 = vmatpush1.msra.mxu0 %v2805
    %2807 = vmatprep.subr.mxu0 0.0
    %v2808 = vand.u32 %v93, 4294901760
    %2809 = vmatpush1.msra.mxu0 %v2808
    %2810 = vmatprep.subr.mxu0 0.0
    %v2811 = vand.u32 %v94, 4294901760
    %2812 = vmatpush1.msra.mxu0 %v2811
    %2813 = vmatprep.subr.mxu0 0.0
    %v2814 = vand.u32 %v95, 4294901760
    %2815 = vmatpush1.msra.mxu0 %v2814
    %2816 = vmatprep.subr.mxu0 0.0
    %v2817 = vand.u32 %v96, 4294901760
    %2818 = vmatpush1.msra.mxu0 %v2817
    %2819 = vmatprep.subr.mxu0 0.0
    %v2820 = vand.u32 %v97, 4294901760
    %2821 = vmatpush1.msra.mxu0 %v2820
    %2822 = vmatprep.subr.mxu0 0.0
    %v2823 = vand.u32 %v98, 4294901760
    %2824 = vmatpush1.msra.mxu0 %v2823
    %2825 = vmatprep.subr.mxu0 0.0
    %v2826 = vand.u32 %v99, 4294901760
    %2827 = vmatpush1.msra.mxu0 %v2826
    %2828 = vmatprep.subr.mxu0 0.0
    %v2829 = vand.u32 %v100, 4294901760
    %2830 = vmatpush1.msra.mxu0 %v2829
    %2831 = vmatprep.subr.mxu0 0.0
    %v2832 = vand.u32 %v101, 4294901760
    %2833 = vmatpush1.msra.mxu0 %v2832
    %2834 = vmatprep.subr.mxu0 0.0
    %v2835 = vand.u32 %v102, 4294901760
    %2836 = vmatpush1.msra.mxu0 %v2835
    %2837 = vmatprep.subr.mxu0 0.0
    %v2838 = vand.u32 %v103, 4294901760
    %2839 = vmatpush1.msra.mxu0 %v2838
    %2840 = vmatprep.subr.mxu0 0.0
    %v2841 = vand.u32 %v104, 4294901760
    %2842 = vmatpush1.msra.mxu0 %v2841
    %2843 = vmatprep.subr.mxu0 0.0
    %v2844 = vand.u32 %v105, 4294901760
    %2845 = vmatpush1.msra.mxu0 %v2844
    %2846 = vmatprep.subr.mxu0 0.0
    %2847 = vmatpush1.msra.mxu0 0.0
    %2848 = vmatprep.subr.mxu0 0.0
    %2849 = vmatpush1.msra.mxu0 0.0
    %2850 = vmatprep.subr.mxu0 0.0
    %2851 = vmatpush1.msra.mxu0 0.0
    %2852 = vmatprep.subr.mxu0 0.0
    %2853 = vmatpush1.msra.mxu0 0.0
    %2854 = vmatprep.subr.mxu0 0.0
    %2855 = vmatpush1.msra.mxu0 0.0
    %2856 = vmatprep.subr.mxu0 0.0
    %2857 = vmatpush1.msra.mxu0 0.0
    %2858 = vmatprep.subr.mxu0 0.0
    %2859 = vmatpush1.msra.mxu0 0.0
    %2860 = vmatprep.subr.mxu0 0.0
    %2861 = vmatpush1.msra.mxu0 0.0
    %2862 = vmatprep.subr.mxu0 0.0
    %2863 = vmatpush1.msra.mxu0 0.0
    %2864 = vmatprep.subr.mxu0 0.0
    %2865 = vmatpush1.msra.mxu0 0.0
    %2866 = vmatprep.subr.mxu0 0.0
    %2867 = vmatpush1.msra.mxu0 0.0
    %2868 = vmatprep.subr.mxu0 0.0
    %2869 = vmatpush1.msra.mxu0 0.0
    %2870 = vmatprep.subr.mxu0 0.0
    %2871 = vmatpush1.msra.mxu0 0.0
    %2872 = vmatprep.subr.mxu0 0.0
    %2873 = vmatpush1.msra.mxu0 0.0
    %2874 = vmatprep.subr.mxu0 0.0
    %2875 = vmatpush1.msra.mxu0 0.0
    %2876 = vmatprep.subr.mxu0 0.0
    %2877 = vmatpush1.msra.mxu0 0.0
    %2878 = vmatprep.mubr.f32.mxu0 0.0
    %v2879 = vand.u32 %v2243, 4294901760
    %2880 = vmatmul.mubr.f32.gmra.mrb[0].mxu0 %v2879
    %v2881 = vpop.f32.mrb[0].mxu0
    %v2882 = vadd.f32 %v2795, %v2881
    %v2883 = vpop.f32.mrb[0].mxu0
    %2884 = vdwg.mxu0
    %v2885 = vmul.f32 %v2228, %v2228
    %v2886 = vmul.f32 %v2229, %v2229
    %v2887 = vmul.f32 %v2230, %v2230
    %v2888 = vmul.f32 %v2231, %v2231
    %v2889 = vmul.f32 %v2232, %v2232
    %v2890 = vadd.f32 %v2885, %v2886
    %v2891 = vadd.f32 %v2890, %v2887
    %v2892 = vadd.f32 %v2891, %v2888
    %v2893 = vsel %vm178, %v2889, 0.0
    %v2894 = vadd.f32 %v2892, %v2893
    %v2895 = vrot.slane %v2894, 4
    %v2896 = vadd.f32 %v2894, %v2895
    %v2897 = vrot.slane %v2896, 2
    %v2898 = vadd.f32 %v2896, %v2897
    %v2899 = vrot.slane %v2898, 1
    %v2900 = vadd.f32 %v2898, %v2899
    %2901 = vmatprep.subr.mxu0 0.0
    %v2902 = vand.u32 %v90, 4294901760
    %2903 = vmatpush1.msra.mxu0 %v2902
    %2904 = vmatprep.subr.mxu0 0.0
    %v2905 = vand.u32 %v91, 4294901760
    %2906 = vmatpush1.msra.mxu0 %v2905
    %2907 = vmatprep.subr.mxu0 0.0
    %v2908 = vand.u32 %v92, 4294901760
    %2909 = vmatpush1.msra.mxu0 %v2908
    %2910 = vmatprep.subr.mxu0 0.0
    %v2911 = vand.u32 %v93, 4294901760
    %2912 = vmatpush1.msra.mxu0 %v2911
    %2913 = vmatprep.subr.mxu0 0.0
    %v2914 = vand.u32 %v94, 4294901760
    %2915 = vmatpush1.msra.mxu0 %v2914
    %2916 = vmatprep.subr.mxu0 0.0
    %v2917 = vand.u32 %v95, 4294901760
    %2918 = vmatpush1.msra.mxu0 %v2917
    %2919 = vmatprep.subr.mxu0 0.0
    %v2920 = vand.u32 %v96, 4294901760
    %2921 = vmatpush1.msra.mxu0 %v2920
    %2922 = vmatprep.subr.mxu0 0.0
    %v2923 = vand.u32 %v97, 4294901760
    %2924 = vmatpush1.msra.mxu0 %v2923
    %2925 = vmatprep.subr.mxu0 0.0
    %v2926 = vand.u32 %v98, 4294901760
    %2927 = vmatpush1.msra.mxu0 %v2926
    %2928 = vmatprep.subr.mxu0 0.0
    %v2929 = vand.u32 %v99, 4294901760
    %2930 = vmatpush1.msra.mxu0 %v2929
    %2931 = vmatprep.subr.mxu0 0.0
    %v2932 = vand.u32 %v100, 4294901760
    %2933 = vmatpush1.msra.mxu0 %v2932
    %2934 = vmatprep.subr.mxu0 0.0
    %v2935 = vand.u32 %v101, 4294901760
    %2936 = vmatpush1.msra.mxu0 %v2935
    %2937 = vmatprep.subr.mxu0 0.0
    %v2938 = vand.u32 %v102, 4294901760
    %2939 = vmatpush1.msra.mxu0 %v2938
    %2940 = vmatprep.subr.mxu0 0.0
    %v2941 = vand.u32 %v103, 4294901760
    %2942 = vmatpush1.msra.mxu0 %v2941
    %2943 = vmatprep.subr.mxu0 0.0
    %v2944 = vand.u32 %v104, 4294901760
    %2945 = vmatpush1.msra.mxu0 %v2944
    %2946 = vmatprep.subr.mxu0 0.0
    %v2947 = vand.u32 %v105, 4294901760
    %2948 = vmatpush1.msra.mxu0 %v2947
    %2949 = vmatprep.subr.mxu0 0.0
    %2950 = vmatpush1.msra.mxu0 0.0
    %2951 = vmatprep.subr.mxu0 0.0
    %2952 = vmatpush1.msra.mxu0 0.0
    %2953 = vmatprep.subr.mxu0 0.0
    %2954 = vmatpush1.msra.mxu0 0.0
    %2955 = vmatprep.subr.mxu0 0.0
    %2956 = vmatpush1.msra.mxu0 0.0
    %2957 = vmatprep.subr.mxu0 0.0
    %2958 = vmatpush1.msra.mxu0 0.0
    %2959 = vmatprep.subr.mxu0 0.0
    %2960 = vmatpush1.msra.mxu0 0.0
    %2961 = vmatprep.subr.mxu0 0.0
    %2962 = vmatpush1.msra.mxu0 0.0
    %2963 = vmatprep.subr.mxu0 0.0
    %2964 = vmatpush1.msra.mxu0 0.0
    %2965 = vmatprep.subr.mxu0 0.0
    %2966 = vmatpush1.msra.mxu0 0.0
    %2967 = vmatprep.subr.mxu0 0.0
    %2968 = vmatpush1.msra.mxu0 0.0
    %2969 = vmatprep.subr.mxu0 0.0
    %2970 = vmatpush1.msra.mxu0 0.0
    %2971 = vmatprep.subr.mxu0 0.0
    %2972 = vmatpush1.msra.mxu0 0.0
    %2973 = vmatprep.subr.mxu0 0.0
    %2974 = vmatpush1.msra.mxu0 0.0
    %2975 = vmatprep.subr.mxu0 0.0
    %2976 = vmatpush1.msra.mxu0 0.0
    %2977 = vmatprep.subr.mxu0 0.0
    %2978 = vmatpush1.msra.mxu0 0.0
    %2979 = vmatprep.subr.mxu0 0.0
    %2980 = vmatpush1.msra.mxu0 0.0
    %2981 = vmatprep.mubr.f32.mxu0 0.0
    %v2982 = vand.u32 %v2900, 4294901760
    %v2983 = vsub.f32 %v2900, %v2982
    %v2984 = vand.u32 %v2983, 4294901760
    %v2985 = vsub.f32 %v2983, %v2984
    %v2986 = vand.u32 %v2985, 4294901760
    %2987 = vmatmul.mubr.f32.gmra.mrb[0].mxu0 %v2986
    %v2988 = vpop.f32.mrb[0].mxu0
    %v2989 = vadd.f32 0.0, %v2988
    %v2990 = vpop.f32.mrb[0].mxu0
    %2991 = vdwg.mxu0
    %2992 = vmatprep.subr.mxu0 0.0
    %v2993 = vand.u32 %v90, 4294901760
    %v2994 = vsub.f32 %v90, %v2993
    %v2995 = vand.u32 %v2994, 4294901760
    %v2996 = vsub.f32 %v2994, %v2995
    %v2997 = vand.u32 %v2996, 4294901760
    %2998 = vmatpush1.msra.mxu0 %v2997
    %2999 = vmatprep.subr.mxu0 0.0
    %v3000 = vand.u32 %v91, 4294901760
    %v3001 = vsub.f32 %v91, %v3000
    %v3002 = vand.u32 %v3001, 4294901760
    %v3003 = vsub.f32 %v3001, %v3002
    %v3004 = vand.u32 %v3003, 4294901760
    %3005 = vmatpush1.msra.mxu0 %v3004
    %3006 = vmatprep.subr.mxu0 0.0
    %v3007 = vand.u32 %v92, 4294901760
    %v3008 = vsub.f32 %v92, %v3007
    %v3009 = vand.u32 %v3008, 4294901760
    %v3010 = vsub.f32 %v3008, %v3009
    %v3011 = vand.u32 %v3010, 4294901760
    %3012 = vmatpush1.msra.mxu0 %v3011
    %3013 = vmatprep.subr.mxu0 0.0
    %v3014 = vand.u32 %v93, 4294901760
    %v3015 = vsub.f32 %v93, %v3014
    %v3016 = vand.u32 %v3015, 4294901760
    %v3017 = vsub.f32 %v3015, %v3016
    %v3018 = vand.u32 %v3017, 4294901760
    %3019 = vmatpush1.msra.mxu0 %v3018
    %3020 = vmatprep.subr.mxu0 0.0
    %v3021 = vand.u32 %v94, 4294901760
    %v3022 = vsub.f32 %v94, %v3021
    %v3023 = vand.u32 %v3022, 4294901760
    %v3024 = vsub.f32 %v3022, %v3023
    %v3025 = vand.u32 %v3024, 4294901760
    %3026 = vmatpush1.msra.mxu0 %v3025
    %3027 = vmatprep.subr.mxu0 0.0
    %v3028 = vand.u32 %v95, 4294901760
    %v3029 = vsub.f32 %v95, %v3028
    %v3030 = vand.u32 %v3029, 4294901760
    %v3031 = vsub.f32 %v3029, %v3030
    %v3032 = vand.u32 %v3031, 4294901760
    %3033 = vmatpush1.msra.mxu0 %v3032
    %3034 = vmatprep.subr.mxu0 0.0
    %v3035 = vand.u32 %v96, 4294901760
    %v3036 = vsub.f32 %v96, %v3035
    %v3037 = vand.u32 %v3036, 4294901760
    %v3038 = vsub.f32 %v3036, %v3037
    %v3039 = vand.u32 %v3038, 4294901760
    %3040 = vmatpush1.msra.mxu0 %v3039
    %3041 = vmatprep.subr.mxu0 0.0
    %v3042 = vand.u32 %v97, 4294901760
    %v3043 = vsub.f32 %v97, %v3042
    %v3044 = vand.u32 %v3043, 4294901760
    %v3045 = vsub.f32 %v3043, %v3044
    %v3046 = vand.u32 %v3045, 4294901760
    %3047 = vmatpush1.msra.mxu0 %v3046
    %3048 = vmatprep.subr.mxu0 0.0
    %v3049 = vand.u32 %v98, 4294901760
    %v3050 = vsub.f32 %v98, %v3049
    %v3051 = vand.u32 %v3050, 4294901760
    %v3052 = vsub.f32 %v3050, %v3051
    %v3053 = vand.u32 %v3052, 4294901760
    %3054 = vmatpush1.msra.mxu0 %v3053
    %3055 = vmatprep.subr.mxu0 0.0
    %v3056 = vand.u32 %v99, 4294901760
    %v3057 = vsub.f32 %v99, %v3056
    %v3058 = vand.u32 %v3057, 4294901760
    %v3059 = vsub.f32 %v3057, %v3058
    %v3060 = vand.u32 %v3059, 4294901760
    %3061 = vmatpush1.msra.mxu0 %v3060
    %3062 = vmatprep.subr.mxu0 0.0
    %v3063 = vand.u32 %v100, 4294901760
    %v3064 = vsub.f32 %v100, %v3063
    %v3065 = vand.u32 %v3064, 4294901760
    %v3066 = vsub.f32 %v3064, %v3065
    %v3067 = vand.u32 %v3066, 4294901760
    %3068 = vmatpush1.msra.mxu0 %v3067
    %3069 = vmatprep.subr.mxu0 0.0
    %v3070 = vand.u32 %v101, 4294901760
    %v3071 = vsub.f32 %v101, %v3070
    %v3072 = vand.u32 %v3071, 4294901760
    %v3073 = vsub.f32 %v3071, %v3072
    %v3074 = vand.u32 %v3073, 4294901760
    %3075 = vmatpush1.msra.mxu0 %v3074
    %3076 = vmatprep.subr.mxu0 0.0
    %v3077 = vand.u32 %v102, 4294901760
    %v3078 = vsub.f32 %v102, %v3077
    %v3079 = vand.u32 %v3078, 4294901760
    %v3080 = vsub.f32 %v3078, %v3079
    %v3081 = vand.u32 %v3080, 4294901760
    %3082 = vmatpush1.msra.mxu0 %v3081
    %3083 = vmatprep.subr.mxu0 0.0
    %v3084 = vand.u32 %v103, 4294901760
    %v3085 = vsub.f32 %v103, %v3084
    %v3086 = vand.u32 %v3085, 4294901760
    %v3087 = vsub.f32 %v3085, %v3086
    %v3088 = vand.u32 %v3087, 4294901760
    %3089 = vmatpush1.msra.mxu0 %v3088
    %3090 = vmatprep.subr.mxu0 0.0
    %v3091 = vand.u32 %v104, 4294901760
    %v3092 = vsub.f32 %v104, %v3091
    %v3093 = vand.u32 %v3092, 4294901760
    %v3094 = vsub.f32 %v3092, %v3093
    %v3095 = vand.u32 %v3094, 4294901760
    %3096 = vmatpush1.msra.mxu0 %v3095
    %3097 = vmatprep.subr.mxu0 0.0
    %v3098 = vand.u32 %v105, 4294901760
    %v3099 = vsub.f32 %v105, %v3098
    %v3100 = vand.u32 %v3099, 4294901760
    %v3101 = vsub.f32 %v3099, %v3100
    %v3102 = vand.u32 %v3101, 4294901760
    %3103 = vmatpush1.msra.mxu0 %v3102
    %3104 = vmatprep.subr.mxu0 0.0
    %3105 = vmatpush1.msra.mxu0 0.0
    %3106 = vmatprep.subr.mxu0 0.0
    %3107 = vmatpush1.msra.mxu0 0.0
    %3108 = vmatprep.subr.mxu0 0.0
    %3109 = vmatpush1.msra.mxu0 0.0
    %3110 = vmatprep.subr.mxu0 0.0
    %3111 = vmatpush1.msra.mxu0 0.0
    %3112 = vmatprep.subr.mxu0 0.0
    %3113 = vmatpush1.msra.mxu0 0.0
    %3114 = vmatprep.subr.mxu0 0.0
    %3115 = vmatpush1.msra.mxu0 0.0
    %3116 = vmatprep.subr.mxu0 0.0
    %3117 = vmatpush1.msra.mxu0 0.0
    %3118 = vmatprep.subr.mxu0 0.0
    %3119 = vmatpush1.msra.mxu0 0.0
    %3120 = vmatprep.subr.mxu0 0.0
    %3121 = vmatpush1.msra.mxu0 0.0
    %3122 = vmatprep.subr.mxu0 0.0
    %3123 = vmatpush1.msra.mxu0 0.0
    %3124 = vmatprep.subr.mxu0 0.0
    %3125 = vmatpush1.msra.mxu0 0.0
    %3126 = vmatprep.subr.mxu0 0.0
    %3127 = vmatpush1.msra.mxu0 0.0
    %3128 = vmatprep.subr.mxu0 0.0
    %3129 = vmatpush1.msra.mxu0 0.0
    %3130 = vmatprep.subr.mxu0 0.0
    %3131 = vmatpush1.msra.mxu0 0.0
    %3132 = vmatprep.subr.mxu0 0.0
    %3133 = vmatpush1.msra.mxu0 0.0
    %3134 = vmatprep.subr.mxu0 0.0
    %3135 = vmatpush1.msra.mxu0 0.0
    %3136 = vmatprep.mubr.f32.mxu0 0.0
    %v3137 = vand.u32 %v2900, 4294901760
    %3138 = vmatmul.mubr.f32.gmra.mrb[0].mxu0 %v3137
    %v3139 = vpop.f32.mrb[0].mxu0
    %v3140 = vadd.f32 %v2989, %v3139
    %v3141 = vpop.f32.mrb[0].mxu0
    %3142 = vdwg.mxu0
    %3143 = vmatprep.subr.mxu0 0.0
    %v3144 = vand.u32 %v90, 4294901760
    %v3145 = vsub.f32 %v90, %v3144
    %3146 = vmatpush1.msra.mxu0 %v3145
    %3147 = vmatprep.subr.mxu0 0.0
    %v3148 = vand.u32 %v91, 4294901760
    %v3149 = vsub.f32 %v91, %v3148
    %3150 = vmatpush1.msra.mxu0 %v3149
    %3151 = vmatprep.subr.mxu0 0.0
    %v3152 = vand.u32 %v92, 4294901760
    %v3153 = vsub.f32 %v92, %v3152
    %3154 = vmatpush1.msra.mxu0 %v3153
    %3155 = vmatprep.subr.mxu0 0.0
    %v3156 = vand.u32 %v93, 4294901760
    %v3157 = vsub.f32 %v93, %v3156
    %3158 = vmatpush1.msra.mxu0 %v3157
    %3159 = vmatprep.subr.mxu0 0.0
    %v3160 = vand.u32 %v94, 4294901760
    %v3161 = vsub.f32 %v94, %v3160
    %3162 = vmatpush1.msra.mxu0 %v3161
    %3163 = vmatprep.subr.mxu0 0.0
    %v3164 = vand.u32 %v95, 4294901760
    %v3165 = vsub.f32 %v95, %v3164
    %3166 = vmatpush1.msra.mxu0 %v3165
    %3167 = vmatprep.subr.mxu0 0.0
    %v3168 = vand.u32 %v96, 4294901760
    %v3169 = vsub.f32 %v96, %v3168
    %3170 = vmatpush1.msra.mxu0 %v3169
    %3171 = vmatprep.subr.mxu0 0.0
    %v3172 = vand.u32 %v97, 4294901760
    %v3173 = vsub.f32 %v97, %v3172
    %3174 = vmatpush1.msra.mxu0 %v3173
    %3175 = vmatprep.subr.mxu0 0.0
    %v3176 = vand.u32 %v98, 4294901760
    %v3177 = vsub.f32 %v98, %v3176
    %3178 = vmatpush1.msra.mxu0 %v3177
    %3179 = vmatprep.subr.mxu0 0.0
    %v3180 = vand.u32 %v99, 4294901760
    %v3181 = vsub.f32 %v99, %v3180
    %3182 = vmatpush1.msra.mxu0 %v3181
    %3183 = vmatprep.subr.mxu0 0.0
    %v3184 = vand.u32 %v100, 4294901760
    %v3185 = vsub.f32 %v100, %v3184
    %3186 = vmatpush1.msra.mxu0 %v3185
    %3187 = vmatprep.subr.mxu0 0.0
    %v3188 = vand.u32 %v101, 4294901760
    %v3189 = vsub.f32 %v101, %v3188
    %3190 = vmatpush1.msra.mxu0 %v3189
    %3191 = vmatprep.subr.mxu0 0.0
    %v3192 = vand.u32 %v102, 4294901760
    %v3193 = vsub.f32 %v102, %v3192
    %3194 = vmatpush1.msra.mxu0 %v3193
    %3195 = vmatprep.subr.mxu0 0.0
    %v3196 = vand.u32 %v103, 4294901760
    %v3197 = vsub.f32 %v103, %v3196
    %3198 = vmatpush1.msra.mxu0 %v3197
    %3199 = vmatprep.subr.mxu0 0.0
    %v3200 = vand.u32 %v104, 4294901760
    %v3201 = vsub.f32 %v104, %v3200
    %3202 = vmatpush1.msra.mxu0 %v3201
    %3203 = vmatprep.subr.mxu0 0.0
    %v3204 = vand.u32 %v105, 4294901760
    %v3205 = vsub.f32 %v105, %v3204
    %3206 = vmatpush1.msra.mxu0 %v3205
    %3207 = vmatprep.subr.mxu0 0.0
    %3208 = vmatpush1.msra.mxu0 0.0
    %3209 = vmatprep.subr.mxu0 0.0
    %3210 = vmatpush1.msra.mxu0 0.0
    %3211 = vmatprep.subr.mxu0 0.0
    %3212 = vmatpush1.msra.mxu0 0.0
    %3213 = vmatprep.subr.mxu0 0.0
    %3214 = vmatpush1.msra.mxu0 0.0
    %3215 = vmatprep.subr.mxu0 0.0
    %3216 = vmatpush1.msra.mxu0 0.0
    %3217 = vmatprep.subr.mxu0 0.0
    %3218 = vmatpush1.msra.mxu0 0.0
    %3219 = vmatprep.subr.mxu0 0.0
    %3220 = vmatpush1.msra.mxu0 0.0
    %3221 = vmatprep.subr.mxu0 0.0
    %3222 = vmatpush1.msra.mxu0 0.0
    %3223 = vmatprep.subr.mxu0 0.0
    %3224 = vmatpush1.msra.mxu0 0.0
    %3225 = vmatprep.subr.mxu0 0.0
    %3226 = vmatpush1.msra.mxu0 0.0
    %3227 = vmatprep.subr.mxu0 0.0
    %3228 = vmatpush1.msra.mxu0 0.0
    %3229 = vmatprep.subr.mxu0 0.0
    %3230 = vmatpush1.msra.mxu0 0.0
    %3231 = vmatprep.subr.mxu0 0.0
    %3232 = vmatpush1.msra.mxu0 0.0
    %3233 = vmatprep.subr.mxu0 0.0
    %3234 = vmatpush1.msra.mxu0 0.0
    %3235 = vmatprep.subr.mxu0 0.0
    %3236 = vmatpush1.msra.mxu0 0.0
    %3237 = vmatprep.subr.mxu0 0.0
    %3238 = vmatpush1.msra.mxu0 0.0
    %3239 = vmatprep.mubr.f32.mxu0 0.0
    %v3240 = vand.u32 %v2900, 4294901760
    %v3241 = vsub.f32 %v2900, %v3240
    %3242 = vmatmul.mubr.f32.gmra.mrb[0].mxu0 %v3241
    %v3243 = vpop.f32.mrb[0].mxu0
    %v3244 = vadd.f32 %v3140, %v3243
    %v3245 = vpop.f32.mrb[0].mxu0
    %3246 = vdwg.mxu0
    %3247 = vmatprep.subr.mxu0 0.0
    %v3248 = vand.u32 %v90, 4294901760
    %3249 = vmatpush1.msra.mxu0 %v3248
    %3250 = vmatprep.subr.mxu0 0.0
    %v3251 = vand.u32 %v91, 4294901760
    %3252 = vmatpush1.msra.mxu0 %v3251
    %3253 = vmatprep.subr.mxu0 0.0
    %v3254 = vand.u32 %v92, 4294901760
    %3255 = vmatpush1.msra.mxu0 %v3254
    %3256 = vmatprep.subr.mxu0 0.0
    %v3257 = vand.u32 %v93, 4294901760
    %3258 = vmatpush1.msra.mxu0 %v3257
    %3259 = vmatprep.subr.mxu0 0.0
    %v3260 = vand.u32 %v94, 4294901760
    %3261 = vmatpush1.msra.mxu0 %v3260
    %3262 = vmatprep.subr.mxu0 0.0
    %v3263 = vand.u32 %v95, 4294901760
    %3264 = vmatpush1.msra.mxu0 %v3263
    %3265 = vmatprep.subr.mxu0 0.0
    %v3266 = vand.u32 %v96, 4294901760
    %3267 = vmatpush1.msra.mxu0 %v3266
    %3268 = vmatprep.subr.mxu0 0.0
    %v3269 = vand.u32 %v97, 4294901760
    %3270 = vmatpush1.msra.mxu0 %v3269
    %3271 = vmatprep.subr.mxu0 0.0
    %v3272 = vand.u32 %v98, 4294901760
    %3273 = vmatpush1.msra.mxu0 %v3272
    %3274 = vmatprep.subr.mxu0 0.0
    %v3275 = vand.u32 %v99, 4294901760
    %3276 = vmatpush1.msra.mxu0 %v3275
    %3277 = vmatprep.subr.mxu0 0.0
    %v3278 = vand.u32 %v100, 4294901760
    %3279 = vmatpush1.msra.mxu0 %v3278
    %3280 = vmatprep.subr.mxu0 0.0
    %v3281 = vand.u32 %v101, 4294901760
    %3282 = vmatpush1.msra.mxu0 %v3281
    %3283 = vmatprep.subr.mxu0 0.0
    %v3284 = vand.u32 %v102, 4294901760
    %3285 = vmatpush1.msra.mxu0 %v3284
    %3286 = vmatprep.subr.mxu0 0.0
    %v3287 = vand.u32 %v103, 4294901760
    %3288 = vmatpush1.msra.mxu0 %v3287
    %3289 = vmatprep.subr.mxu0 0.0
    %v3290 = vand.u32 %v104, 4294901760
    %3291 = vmatpush1.msra.mxu0 %v3290
    %3292 = vmatprep.subr.mxu0 0.0
    %v3293 = vand.u32 %v105, 4294901760
    %3294 = vmatpush1.msra.mxu0 %v3293
    %3295 = vmatprep.subr.mxu0 0.0
    %3296 = vmatpush1.msra.mxu0 0.0
    %3297 = vmatprep.subr.mxu0 0.0
    %3298 = vmatpush1.msra.mxu0 0.0
    %3299 = vmatprep.subr.mxu0 0.0
    %3300 = vmatpush1.msra.mxu0 0.0
    %3301 = vmatprep.subr.mxu0 0.0
    %3302 = vmatpush1.msra.mxu0 0.0
    %3303 = vmatprep.subr.mxu0 0.0
    %3304 = vmatpush1.msra.mxu0 0.0
    %3305 = vmatprep.subr.mxu0 0.0
    %3306 = vmatpush1.msra.mxu0 0.0
    %3307 = vmatprep.subr.mxu0 0.0
    %3308 = vmatpush1.msra.mxu0 0.0
    %3309 = vmatprep.subr.mxu0 0.0
    %3310 = vmatpush1.msra.mxu0 0.0
    %3311 = vmatprep.subr.mxu0 0.0
    %3312 = vmatpush1.msra.mxu0 0.0
    %3313 = vmatprep.subr.mxu0 0.0
    %3314 = vmatpush1.msra.mxu0 0.0
    %3315 = vmatprep.subr.mxu0 0.0
    %3316 = vmatpush1.msra.mxu0 0.0
    %3317 = vmatprep.subr.mxu0 0.0
    %3318 = vmatpush1.msra.mxu0 0.0
    %3319 = vmatprep.subr.mxu0 0.0
    %3320 = vmatpush1.msra.mxu0 0.0
    %3321 = vmatprep.subr.mxu0 0.0
    %3322 = vmatpush1.msra.mxu0 0.0
    %3323 = vmatprep.subr.mxu0 0.0
    %3324 = vmatpush1.msra.mxu0 0.0
    %3325 = vmatprep.subr.mxu0 0.0
    %3326 = vmatpush1.msra.mxu0 0.0
    %3327 = vmatprep.mubr.f32.mxu0 0.0
    %v3328 = vand.u32 %v2900, 4294901760
    %v3329 = vsub.f32 %v2900, %v3328
    %v3330 = vand.u32 %v3329, 4294901760
    %3331 = vmatmul.mubr.f32.gmra.mrb[0].mxu0 %v3330
    %v3332 = vpop.f32.mrb[0].mxu0
    %v3333 = vadd.f32 %v3244, %v3332
    %v3334 = vpop.f32.mrb[0].mxu0
    %3335 = vdwg.mxu0
    %3336 = vmatprep.subr.mxu0 0.0
    %v3337 = vand.u32 %v90, 4294901760
    %v3338 = vsub.f32 %v90, %v3337
    %v3339 = vand.u32 %v3338, 4294901760
    %3340 = vmatpush1.msra.mxu0 %v3339
    %3341 = vmatprep.subr.mxu0 0.0
    %v3342 = vand.u32 %v91, 4294901760
    %v3343 = vsub.f32 %v91, %v3342
    %v3344 = vand.u32 %v3343, 4294901760
    %3345 = vmatpush1.msra.mxu0 %v3344
    %3346 = vmatprep.subr.mxu0 0.0
    %v3347 = vand.u32 %v92, 4294901760
    %v3348 = vsub.f32 %v92, %v3347
    %v3349 = vand.u32 %v3348, 4294901760
    %3350 = vmatpush1.msra.mxu0 %v3349
    %3351 = vmatprep.subr.mxu0 0.0
    %v3352 = vand.u32 %v93, 4294901760
    %v3353 = vsub.f32 %v93, %v3352
    %v3354 = vand.u32 %v3353, 4294901760
    %3355 = vmatpush1.msra.mxu0 %v3354
    %3356 = vmatprep.subr.mxu0 0.0
    %v3357 = vand.u32 %v94, 4294901760
    %v3358 = vsub.f32 %v94, %v3357
    %v3359 = vand.u32 %v3358, 4294901760
    %3360 = vmatpush1.msra.mxu0 %v3359
    %3361 = vmatprep.subr.mxu0 0.0
    %v3362 = vand.u32 %v95, 4294901760
    %v3363 = vsub.f32 %v95, %v3362
    %v3364 = vand.u32 %v3363, 4294901760
    %3365 = vmatpush1.msra.mxu0 %v3364
    %3366 = vmatprep.subr.mxu0 0.0
    %v3367 = vand.u32 %v96, 4294901760
    %v3368 = vsub.f32 %v96, %v3367
    %v3369 = vand.u32 %v3368, 4294901760
    %3370 = vmatpush1.msra.mxu0 %v3369
    %3371 = vmatprep.subr.mxu0 0.0
    %v3372 = vand.u32 %v97, 4294901760
    %v3373 = vsub.f32 %v97, %v3372
    %v3374 = vand.u32 %v3373, 4294901760
    %3375 = vmatpush1.msra.mxu0 %v3374
    %3376 = vmatprep.subr.mxu0 0.0
    %v3377 = vand.u32 %v98, 4294901760
    %v3378 = vsub.f32 %v98, %v3377
    %v3379 = vand.u32 %v3378, 4294901760
    %3380 = vmatpush1.msra.mxu0 %v3379
    %3381 = vmatprep.subr.mxu0 0.0
    %v3382 = vand.u32 %v99, 4294901760
    %v3383 = vsub.f32 %v99, %v3382
    %v3384 = vand.u32 %v3383, 4294901760
    %3385 = vmatpush1.msra.mxu0 %v3384
    %3386 = vmatprep.subr.mxu0 0.0
    %v3387 = vand.u32 %v100, 4294901760
    %v3388 = vsub.f32 %v100, %v3387
    %v3389 = vand.u32 %v3388, 4294901760
    %3390 = vmatpush1.msra.mxu0 %v3389
    %3391 = vmatprep.subr.mxu0 0.0
    %v3392 = vand.u32 %v101, 4294901760
    %v3393 = vsub.f32 %v101, %v3392
    %v3394 = vand.u32 %v3393, 4294901760
    %3395 = vmatpush1.msra.mxu0 %v3394
    %3396 = vmatprep.subr.mxu0 0.0
    %v3397 = vand.u32 %v102, 4294901760
    %v3398 = vsub.f32 %v102, %v3397
    %v3399 = vand.u32 %v3398, 4294901760
    %3400 = vmatpush1.msra.mxu0 %v3399
    %3401 = vmatprep.subr.mxu0 0.0
    %v3402 = vand.u32 %v103, 4294901760
    %v3403 = vsub.f32 %v103, %v3402
    %v3404 = vand.u32 %v3403, 4294901760
    %3405 = vmatpush1.msra.mxu0 %v3404
    %3406 = vmatprep.subr.mxu0 0.0
    %v3407 = vand.u32 %v104, 4294901760
    %v3408 = vsub.f32 %v104, %v3407
    %v3409 = vand.u32 %v3408, 4294901760
    %3410 = vmatpush1.msra.mxu0 %v3409
    %3411 = vmatprep.subr.mxu0 0.0
    %v3412 = vand.u32 %v105, 4294901760
    %v3413 = vsub.f32 %v105, %v3412
    %v3414 = vand.u32 %v3413, 4294901760
    %3415 = vmatpush1.msra.mxu0 %v3414
    %3416 = vmatprep.subr.mxu0 0.0
    %3417 = vmatpush1.msra.mxu0 0.0
    %3418 = vmatprep.subr.mxu0 0.0
    %3419 = vmatpush1.msra.mxu0 0.0
    %3420 = vmatprep.subr.mxu0 0.0
    %3421 = vmatpush1.msra.mxu0 0.0
    %3422 = vmatprep.subr.mxu0 0.0
    %3423 = vmatpush1.msra.mxu0 0.0
    %3424 = vmatprep.subr.mxu0 0.0
    %3425 = vmatpush1.msra.mxu0 0.0
    %3426 = vmatprep.subr.mxu0 0.0
    %3427 = vmatpush1.msra.mxu0 0.0
    %3428 = vmatprep.subr.mxu0 0.0
    %3429 = vmatpush1.msra.mxu0 0.0
    %3430 = vmatprep.subr.mxu0 0.0
    %3431 = vmatpush1.msra.mxu0 0.0
    %3432 = vmatprep.subr.mxu0 0.0
    %3433 = vmatpush1.msra.mxu0 0.0
    %3434 = vmatprep.subr.mxu0 0.0
    %3435 = vmatpush1.msra.mxu0 0.0
    %3436 = vmatprep.subr.mxu0 0.0
    %3437 = vmatpush1.msra.mxu0 0.0
    %3438 = vmatprep.subr.mxu0 0.0
    %3439 = vmatpush1.msra.mxu0 0.0
    %3440 = vmatprep.subr.mxu0 0.0
    %3441 = vmatpush1.msra.mxu0 0.0
    %3442 = vmatprep.subr.mxu0 0.0
    %3443 = vmatpush1.msra.mxu0 0.0
    %3444 = vmatprep.subr.mxu0 0.0
    %3445 = vmatpush1.msra.mxu0 0.0
    %3446 = vmatprep.subr.mxu0 0.0
    %3447 = vmatpush1.msra.mxu0 0.0
    %3448 = vmatprep.mubr.f32.mxu0 0.0
    %v3449 = vand.u32 %v2900, 4294901760
    %3450 = vmatmul.mubr.f32.gmra.mrb[0].mxu0 %v3449
    %v3451 = vpop.f32.mrb[0].mxu0
    %v3452 = vadd.f32 %v3333, %v3451
    %v3453 = vpop.f32.mrb[0].mxu0
    %3454 = vdwg.mxu0
    %3455 = vmatprep.subr.mxu0 0.0
    %v3456 = vand.u32 %v90, 4294901760
    %3457 = vmatpush1.msra.mxu0 %v3456
    %3458 = vmatprep.subr.mxu0 0.0
    %v3459 = vand.u32 %v91, 4294901760
    %3460 = vmatpush1.msra.mxu0 %v3459
    %3461 = vmatprep.subr.mxu0 0.0
    %v3462 = vand.u32 %v92, 4294901760
    %3463 = vmatpush1.msra.mxu0 %v3462
    %3464 = vmatprep.subr.mxu0 0.0
    %v3465 = vand.u32 %v93, 4294901760
    %3466 = vmatpush1.msra.mxu0 %v3465
    %3467 = vmatprep.subr.mxu0 0.0
    %v3468 = vand.u32 %v94, 4294901760
    %3469 = vmatpush1.msra.mxu0 %v3468
    %3470 = vmatprep.subr.mxu0 0.0
    %v3471 = vand.u32 %v95, 4294901760
    %3472 = vmatpush1.msra.mxu0 %v3471
    %3473 = vmatprep.subr.mxu0 0.0
    %v3474 = vand.u32 %v96, 4294901760
    %3475 = vmatpush1.msra.mxu0 %v3474
    %3476 = vmatprep.subr.mxu0 0.0
    %v3477 = vand.u32 %v97, 4294901760
    %3478 = vmatpush1.msra.mxu0 %v3477
    %3479 = vmatprep.subr.mxu0 0.0
    %v3480 = vand.u32 %v98, 4294901760
    %3481 = vmatpush1.msra.mxu0 %v3480
    %3482 = vmatprep.subr.mxu0 0.0
    %v3483 = vand.u32 %v99, 4294901760
    %3484 = vmatpush1.msra.mxu0 %v3483
    %3485 = vmatprep.subr.mxu0 0.0
    %v3486 = vand.u32 %v100, 4294901760
    %3487 = vmatpush1.msra.mxu0 %v3486
    %3488 = vmatprep.subr.mxu0 0.0
    %v3489 = vand.u32 %v101, 4294901760
    %3490 = vmatpush1.msra.mxu0 %v3489
    %3491 = vmatprep.subr.mxu0 0.0
    %v3492 = vand.u32 %v102, 4294901760
    %3493 = vmatpush1.msra.mxu0 %v3492
    %3494 = vmatprep.subr.mxu0 0.0
    %v3495 = vand.u32 %v103, 4294901760
    %3496 = vmatpush1.msra.mxu0 %v3495
    %3497 = vmatprep.subr.mxu0 0.0
    %v3498 = vand.u32 %v104, 4294901760
    %3499 = vmatpush1.msra.mxu0 %v3498
    %3500 = vmatprep.subr.mxu0 0.0
    %v3501 = vand.u32 %v105, 4294901760
    %3502 = vmatpush1.msra.mxu0 %v3501
    %3503 = vmatprep.subr.mxu0 0.0
    %3504 = vmatpush1.msra.mxu0 0.0
    %3505 = vmatprep.subr.mxu0 0.0
    %3506 = vmatpush1.msra.mxu0 0.0
    %3507 = vmatprep.subr.mxu0 0.0
    %3508 = vmatpush1.msra.mxu0 0.0
    %3509 = vmatprep.subr.mxu0 0.0
    %3510 = vmatpush1.msra.mxu0 0.0
    %3511 = vmatprep.subr.mxu0 0.0
    %3512 = vmatpush1.msra.mxu0 0.0
    %3513 = vmatprep.subr.mxu0 0.0
    %3514 = vmatpush1.msra.mxu0 0.0
    %3515 = vmatprep.subr.mxu0 0.0
    %3516 = vmatpush1.msra.mxu0 0.0
    %3517 = vmatprep.subr.mxu0 0.0
    %3518 = vmatpush1.msra.mxu0 0.0
    %3519 = vmatprep.subr.mxu0 0.0
    %3520 = vmatpush1.msra.mxu0 0.0
    %3521 = vmatprep.subr.mxu0 0.0
    %3522 = vmatpush1.msra.mxu0 0.0
    %3523 = vmatprep.subr.mxu0 0.0
    %3524 = vmatpush1.msra.mxu0 0.0
    %3525 = vmatprep.subr.mxu0 0.0
    %3526 = vmatpush1.msra.mxu0 0.0
    %3527 = vmatprep.subr.mxu0 0.0
    %3528 = vmatpush1.msra.mxu0 0.0
    %3529 = vmatprep.subr.mxu0 0.0
    %3530 = vmatpush1.msra.mxu0 0.0
    %3531 = vmatprep.subr.mxu0 0.0
    %3532 = vmatpush1.msra.mxu0 0.0
    %3533 = vmatprep.subr.mxu0 0.0
    %3534 = vmatpush1.msra.mxu0 0.0
    %3535 = vmatprep.mubr.f32.mxu0 0.0
    %v3536 = vand.u32 %v2900, 4294901760
    %3537 = vmatmul.mubr.f32.gmra.mrb[0].mxu0 %v3536
    %v3538 = vpop.f32.mrb[0].mxu0
    %v3539 = vadd.f32 %v3452, %v3538
    %v3540 = vpop.f32.mrb[0].mxu0
    %3541 = vdwg.mxu0
    %v3542 = vmul.f32 %v2882, %v2882
    %v3543 = vsub.f32 %v3539, %v3542
    %v3544 = vadd.f32 %v3543, 1e-05
    %v3545 = vrsqrt.pop %v3544
    %v3546 = vmul.f32 %v88, %v3545
    %v3547 = vmul.f32 %v2882, %v3546
    %v3548 = vsub.f32 %v89, %v3547
    %v3550 = vlaneseq
    %v3551 = vshrl.u32 %v3550, 7
    %v3552 = vsub.s32 0, %v3551
    %v3553 = vrot.slane %v3546, %v3552
    %v3555 = vmul.f32 %v2228, %v3553
    %v3556 = vmul.f32 %v2229, %v3553
    %v3557 = vmul.f32 %v2230, %v3553
    %v3558 = vmul.f32 %v2231, %v3553
    %v3559 = vmul.f32 %v2232, %v3553
    %v3561 = vlaneseq
    %v3562 = vshrl.u32 %v3561, 7
    %v3563 = vsub.s32 0, %v3562
    %v3564 = vrot.slane %v3548, %v3563
    %v3566 = vadd.f32 %v3555, %v3564
    %v3567 = vadd.f32 %v3556, %v3564
    %v3568 = vadd.f32 %v3557, %v3564
    %v3569 = vadd.f32 %v3558, %v3564
    %v3570 = vadd.f32 %v3559, %v3564
    %v3571 = vmax.f32 %v3566, 0.0
    %v3572 = vmax.f32 %v3567, 0.0
    %v3573 = vmax.f32 %v3568, 0.0
    %v3574 = vmax.f32 %v3569, 0.0
    %v3575 = vmax.f32 %v3570, 0.0
    %3576 = vst [vmem:[#allocation11] sm:$0xff] %v3571
    %3577 = vst [vmem:[#allocation11 + $0x8] sm:$0xff] %v3572
    %3578 = vst [vmem:[#allocation11 + $0x10] sm:$0xff] %v3573
    %3579 = vst [vmem:[#allocation11 + $0x18] sm:$0xff] %v3574
    %3580 = vst [vmem:[#allocation11 + $0x20] sm:$0xf] %v3575
    // Predicated region
    $region46: #{tpu_custom_call.1} parent=1 // pred_check
      _
    $region47: #{tpu_custom_call.1} parent=1 // pred_check_branch
      %3582 = sbr.rel (0) target = $region49
    $region48: #{tpu_custom_call.1} parent=1 // pred_region
      %s3584 = ssub.s32 640, 640
      %3585 = vsyncadd [#allocation5], %s3584
      %s3586 = sshll.u32 [#allocation11], 4
      %s3587 = int_to_ptr.vmem [resolvable:$true] %s3586
      %3592 = dma.vmem_to_hbm [thread:$0]  %s3587, 640, %s7, [#allocation5], 128, 128, 8
    $region49: #{tpu_custom_call.1} parent=1 // pred_fallthru
      _
    // Predicated region
    $region50: #{tpu_custom_call.1} parent=1 // pred_check
      _
    $region51: #{tpu_custom_call.1} parent=1 // pred_check_branch
      %3594 = sbr.rel (0) target = $region53
    $region52: #{tpu_custom_call.1} parent=1 // pred_region
      %3595 = dma.done [#allocation5], 640
    $region53: #{tpu_custom_call.1} parent=1 // pred_fallthru
      _
    %3596 = vsyncpa [#allocation4], 1
    %3597 = vsyncpa [#allocation7], 1
    %3598 = vsyncpa [#allocation10], 1
    %3599 = vsyncpa [#allocation5], 1

</llo_original>
